<compile_context>
chip_gen: v7x
topology: tpu7x:2x2x1
jax: 0.10.0
libtpu: 0.0.40
codegen_flags: <defaults>
</compile_context>

<pallas_src>
import functools

import jax
import jax.numpy as jnp
from jax import lax
from jax.experimental import pallas as pl
from jax.experimental.pallas import tpu as pltpu


def _causal_attn_kernel(x_ref, wqkv_ref, bqkv_ref, wo_ref, bo_ref, o_ref,
                        ctx_ref, *, num_heads):
    TB, T, C = x_ref.shape
    D = C // num_heads

    # ---- QKV projection: (TB*T, C) @ (C, 3C), f32 accumulate, bias, one bf16 cast ----
    x = x_ref[...].reshape(TB * T, C).astype(jnp.bfloat16)     # cast in-kernel
    qkv = jnp.dot(x, wqkv_ref[...], preferred_element_type=jnp.float32)
    qkv = (qkv + bqkv_ref[...]).astype(jnp.bfloat16)           # (TB*T, 3C) bf16

    # ---- causal mask over frames, built once, broadcast over batch & heads ----
    row = lax.broadcasted_iota(jnp.int32, (1, T, T), 1)
    col = lax.broadcasted_iota(jnp.int32, (1, T, T), 2)
    causal = col <= row

    # ---- per-head attention; scale is pre-folded into the Q weight/bias ----
    for h in range(num_heads):
        q = qkv[:, h * D:(h + 1) * D].reshape(TB, T, D)
        k = qkv[:, C + h * D:C + (h + 1) * D].reshape(TB, T, D)
        v = qkv[:, 2 * C + h * D:2 * C + (h + 1) * D].reshape(TB, T, D)

        s = jnp.einsum('btd,bsd->bts', q, k, preferred_element_type=jnp.float32)
        s = jnp.where(causal, s, -1e30)          # finite fill: no NaN even if a row were fully masked
        m = jnp.max(s, axis=-1, keepdims=True)
        p = jnp.exp(s - m)
        p = p * pl.reciprocal(jnp.sum(p, axis=-1, keepdims=True), approx=True)
        # TODO(synk): attention dropout (attention_probs_dropout_prob) omitted; p=0.0 / eval mode.

        ctx = jnp.einsum('bts,bsd->btd', p.astype(jnp.bfloat16), v,
                         preferred_element_type=jnp.float32)
        ctx_ref[:, h * D:(h + 1) * D] = ctx.reshape(TB * T, D).astype(jnp.bfloat16)

    # ---- output dense: one big (TB*T, C) @ (C, C) MXU matmul + bias ----
    out = jnp.dot(ctx_ref[...], wo_ref[...],
                  preferred_element_type=jnp.float32) + bo_ref[...]
    o_ref[...] = out.reshape(TB, T, C).astype(o_ref.dtype)


def timesformer_causal_attention(hidden_states, w_qkv_t, b_qkv, w_out_t, b_out,
                                 *, num_heads, block_b=None, vmem_limit_bytes=None,
                                 out_dtype=None):
    """hidden_states: (B, T, C) f32.  w_qkv_t: (C, 3C) bf16 (scale folded into Q cols),
    b_qkv: (3C,) f32 (scale folded into Q part), w_out_t: (C, C) bf16, b_out: (C,) f32."""
    B, T, C = hidden_states.shape
    assert C % num_heads == 0, "hidden_size must be divisible by num_heads"
    H = num_heads
    D = C // H
    out_dtype = out_dtype or hidden_states.dtype

    # ---- per-chip tile / VMEM configuration ----
    try:
        vmem_cap = pltpu.get_tpu_info().vmem_capacity_bytes
    except Exception:
        vmem_cap = None
    if block_b is None:
        if vmem_cap is not None and vmem_cap >= 100 * 1024 * 1024:
            block_b = 256                      # v5e / v6e: 128 MiB VMEM -> big tiles
        else:
            block_b = 128                      # v7x: 64 MiB per TensorCore
            if 1 < B <= block_b:               # keep >= 2 grid steps so both v7x TCs get work
                block_b = -(-B // 2)
    if vmem_limit_bytes is None and vmem_cap is not None:
        vmem_limit_bytes = min(100 * 1024 * 1024, int(0.8 * vmem_cap))

    TB = min(block_b, B)
    n_blocks = pl.cdiv(B, TB)                  # partial last block allowed (rows independent)

    b_qkv2 = b_qkv.reshape(1, 3 * C).astype(jnp.float32)
    b_out2 = b_out.reshape(1, C).astype(jnp.float32)

    kernel = functools.partial(_causal_attn_kernel, num_heads=num_heads)

    flops = (2 * B * T * C * (3 * C)           # qkv projection
             + 4 * B * H * T * T * D           # scores + probs@v
             + 2 * B * T * C * C)              # output dense
    bytes_accessed = (B * T * C * hidden_states.dtype.itemsize
                      + B * T * C * jnp.dtype(out_dtype).itemsize
                      + w_qkv_t.size * 2 + w_out_t.size * 2
                      + b_qkv2.size * 4 + b_out2.size * 4)

    def _call(single_buffer_weights):
        def wspec(shape):
            idx = lambda i, _n=len(shape): (0,) * _n
            if single_buffer_weights:
                return pl.BlockSpec(shape, idx, pipeline_mode=pl.Buffered(1))
            return pl.BlockSpec(shape, idx)

        return pl.pallas_call(
            kernel,
            out_shape=jax.ShapeDtypeStruct((B, T, C), out_dtype),
            grid=(n_blocks,),
            in_specs=[
                pl.BlockSpec((TB, T, C), lambda i: (i, 0, 0)),   # activations stream
                wspec((C, 3 * C)),                               # W_qkv^T resident
                wspec((1, 3 * C)),                               # b_qkv resident
                wspec((C, C)),                                   # W_out^T resident
                wspec((1, C)),                                   # b_out resident
            ],
            out_specs=pl.BlockSpec((TB, T, C), lambda i: (i, 0, 0)),
            scratch_shapes=[pltpu.VMEM((TB * T, C), jnp.bfloat16)],  # merged-head ctx (bf16)
            compiler_params=pltpu.CompilerParams(
                dimension_semantics=("parallel",),               # megacore sharding on v7x
                vmem_limit_bytes=vmem_limit_bytes,
            ),
            cost_estimate=pl.CostEstimate(
                flops=int(flops),
                transcendentals=int(B * H * T * T),
                bytes_accessed=int(bytes_accessed),
            ),
        )(hidden_states, w_qkv_t, b_qkv2, w_out_t, b_out2)

    try:
        return _call(single_buffer_weights=True)
    except Exception:
        # pipeline_mode=pl.Buffered(1) not supported by this JAX build: fall back
        # to default (double-buffered) resident weights.
        return _call(single_buffer_weights=False)


class TimeSformerCausalAttentionPallas:
    """JAX/Pallas port of TimeSformerCausalAttention (causal self-attn + output dense)."""

    def __init__(self, hidden_size, num_attention_heads, num_frames, key,
                 qkv_bias=True, block_b=None):
        assert hidden_size % num_attention_heads == 0
        self.hidden_size = hidden_size
        self.num_heads = num_attention_heads
        self.num_frames = num_frames
        self.block_b = block_b

        C = hidden_size
        D = C // num_attention_heads
        kq, kqb, ko, kob = jax.random.split(key, 4)
        bound = 1.0 / (C ** 0.5)        # nn.Linear default init (fan_in = C)
        self.w_qkv = jax.random.uniform(kq, (3 * C, C), jnp.float32, -bound, bound)
        self.b_qkv = (jax.random.uniform(kqb, (3 * C,), jnp.float32, -bound, bound)
                      if qkv_bias else jnp.zeros((3 * C,), jnp.float32))
        self.w_out = jax.random.uniform(ko, (C, C), jnp.float32, -bound, bound)
        self.b_out = jax.random.uniform(kob, (C,), jnp.float32, -bound, bound)

        # One-time prep (outside hot path): transpose for X @ W^T, fold
        # head_dim**-0.5 into the Q block, cast weights to bf16 for the MXU.
        scale = D ** -0.5
        w_qkv_t = self.w_qkv.T                                    # (C, 3C)
        w_qkv_t = jnp.concatenate([w_qkv_t[:, :C] * scale, w_qkv_t[:, C:]], axis=1)
        self.w_qkv_t = w_qkv_t.astype(jnp.bfloat16)
        self.b_qkv_scaled = jnp.concatenate([self.b_qkv[:C] * scale, self.b_qkv[C:]])
        self.w_out_t = self.w_out.T.astype(jnp.bfloat16)          # (C, C)

    def __call__(self, hidden_states, output_attentions=False):
        # TODO(synk): output_attentions=True (returning probs) and the LoRA branch are not
        # implemented; hidden/attention dropout are p=0.0 (identity, eval mode).
        attn_out = timesformer_causal_attention(
            hidden_states, self.w_qkv_t, self.b_qkv_scaled, self.w_out_t, self.b_out,
            num_heads=self.num_heads, block_b=self.block_b)
        return (attn_out,)


if __name__ == "__main__":
    key = jax.random.PRNGKey(0)
    k_param, k_x = jax.random.split(key)

    # Small shapes consistent with the module's forward: (batch, num_frames, hidden)
    batch, num_frames, hidden, heads = 6, 8, 32, 4

    module = TimeSformerCausalAttentionPallas(
        hidden_size=hidden, num_attention_heads=heads, num_frames=num_frames,
        key=k_param, block_b=4)   # small block -> exercises multi-tile grid + partial last block

    x = jax.random.normal(k_x, (batch, num_frames, hidden), dtype=jnp.float32)

    (out,) = module(x)
    out = jax.block_until_ready(out)

    # Plain-JAX reference mirroring the kernel's bf16-matmul / f32-accumulate precision.
    def reference(x, w_qkv, b_qkv, w_out, b_out, H):
        B, T, C = x.shape
        D = C // H
        xb = x.astype(jnp.bfloat16)
        qkv = jnp.dot(xb, w_qkv.T.astype(jnp.bfloat16),
                      preferred_element_type=jnp.float32) + b_qkv
        qkv = qkv.reshape(B, T, 3, H, D).transpose(2, 0, 3, 1, 4)     # (3,B,H,T,D)
        q, k, v = qkv[0], qkv[1], qkv[2]
        s = jnp.einsum('bhtd,bhsd->bhts', q.astype(jnp.bfloat16), k.astype(jnp.bfloat16),
                       preferred_element_type=jnp.float32) * (D ** -0.5)
        mask = jnp.tril(jnp.ones((T, T), dtype=bool))
        s = jnp.where(mask, s, -jnp.inf)
        p = jax.nn.softmax(s, axis=-1)
        ctx = jnp.einsum('bhts,bhsd->bhtd', p.astype(jnp.bfloat16), v.astype(jnp.bfloat16),
                         preferred_element_type=jnp.float32)
        ctx = ctx.transpose(0, 2, 1, 3).reshape(B, T, C)
        return jnp.dot(ctx.astype(jnp.bfloat16), w_out.T.astype(jnp.bfloat16),
                       preferred_element_type=jnp.float32) + b_out

    ref = reference(x, module.w_qkv, module.b_qkv, module.w_out, module.b_out, heads)

    assert out.shape == (batch, num_frames, hidden)
    max_err = float(jnp.max(jnp.abs(out - ref)))
    # Tolerance covers bf16 rounding of the scale-folded Q weight and the approx
    # reciprocal in the softmax denominator.
    assert jnp.allclose(out, ref, atol=2e-2, rtol=2e-2), f"max abs err {max_err}"
    print("KERNEL_OK")
</pallas_src>

<mosaic_0001>
module attributes {stable_mosaic.version = 11 : i64} {
  func.func @_causal_attn_kernel(%arg0: i32, %arg1: memref<4x8x32xf32, #tpu.memory_space<vmem>>, %arg2: memref<32x96xbf16, #tpu.memory_space<vmem>>, %arg3: memref<1x96xf32, #tpu.memory_space<vmem>>, %arg4: memref<32x32xbf16, #tpu.memory_space<vmem>>, %arg5: memref<1x32xf32, #tpu.memory_space<vmem>>, %arg6: memref<4x8x32xf32, #tpu.memory_space<vmem>>, %arg7: memref<32x32xbf16, #tpu.memory_space<vmem>>) attributes {dimension_semantics = [#tpu.dimension_semantics<parallel>], iteration_bounds = array<i64: 2>, scalar_prefetch = 0 : i64, scratch_operands = 1 : i64, tpu.core_type = #tpu.core_type<tc>, window_params = [{transform_indices = @transform_0, window_bounds = array<i64: 4, 8, 32>}, {pipeline_mode = #tpu.pipeline_mode<synchronous>, transform_indices = @transform_1, window_bounds = array<i64: 32, 96>}, {pipeline_mode = #tpu.pipeline_mode<synchronous>, transform_indices = @transform_2, window_bounds = array<i64: 1, 96>}, {pipeline_mode = #tpu.pipeline_mode<synchronous>, transform_indices = @transform_3, window_bounds = array<i64: 32, 32>}, {pipeline_mode = #tpu.pipeline_mode<synchronous>, transform_indices = @transform_4, window_bounds = array<i64: 1, 32>}, {transform_indices = @transform_5, window_bounds = array<i64: 4, 8, 32>}]} {
    %c0 = arith.constant 0 : index
    %c0_0 = arith.constant 0 : index
    %c0_1 = arith.constant 0 : index
    %0 = vector.load %arg1[%c0, %c0_0, %c0_1] : memref<4x8x32xf32, #tpu.memory_space<vmem>>, vector<4x8x32xf32>
    %1 = vector.shape_cast %0 : vector<4x8x32xf32> to vector<32x32xf32>
    %2 = arith.truncf %1 : vector<32x32xf32> to vector<32x32xbf16>
    %c0_2 = arith.constant 0 : index
    %c0_3 = arith.constant 0 : index
    %3 = vector.load %arg2[%c0_2, %c0_3] : memref<32x96xbf16, #tpu.memory_space<vmem>>, vector<32x96xbf16>
    %cst = arith.constant dense<0.000000e+00> : vector<32x96xf32>
    %4 = tpu.matmul %2, %3, %cst {dimension_numbers = #tpu.dot_dimension_numbers<[1], [0], [0], [1], [0, 0, 1, 1], [], []>} : vector<32x32xbf16>, vector<32x96xbf16>, vector<32x96xf32> -> vector<32x96xf32>
    %c0_4 = arith.constant 0 : index
    %c0_5 = arith.constant 0 : index
    %5 = vector.load %arg3[%c0_4, %c0_5] : memref<1x96xf32, #tpu.memory_space<vmem>>, vector<1x96xf32>
    %6 = vector.broadcast %5 : vector<1x96xf32> to vector<32x96xf32>
    %7 = arith.addf %4, %6 : vector<32x96xf32>
    %8 = arith.truncf %7 : vector<32x96xf32> to vector<32x96xbf16>
    %9 = tpu.iota {dimensions = array<i32: 1>} : vector<1x8x8xi32>
    %10 = tpu.iota {dimensions = array<i32: 2>} : vector<1x8x8xi32>
    %11 = arith.cmpi sle, %10, %9 : vector<1x8x8xi32>
    %12 = vector.extract_strided_slice %8 {offsets = [0, 0], sizes = [32, 8], strides = [1, 1]} : vector<32x96xbf16> to vector<32x8xbf16>
    %13 = vector.shape_cast %12 : vector<32x8xbf16> to vector<4x8x8xbf16>
    %14 = vector.extract_strided_slice %8 {offsets = [0, 32], sizes = [32, 8], strides = [1, 1]} : vector<32x96xbf16> to vector<32x8xbf16>
    %15 = vector.shape_cast %14 : vector<32x8xbf16> to vector<4x8x8xbf16>
    %16 = vector.extract_strided_slice %8 {offsets = [0, 64], sizes = [32, 8], strides = [1, 1]} : vector<32x96xbf16> to vector<32x8xbf16>
    %17 = vector.shape_cast %16 : vector<32x8xbf16> to vector<4x8x8xbf16>
    "tpu.trace_start"() <{level = 10 : i32, message = "btd,bsd->bts"}> : () -> ()
    %cst_6 = arith.constant dense<0.000000e+00> : vector<4x8x8xf32>
    %18 = tpu.matmul %13, %15, %cst_6 {dimension_numbers = #tpu.dot_dimension_numbers<[2], [2], [1], [1], [0, 0, 0, 1, 1, 1], [0], [0]>} : vector<4x8x8xbf16>, vector<4x8x8xbf16>, vector<4x8x8xf32> -> vector<4x8x8xf32>
    %cst_7 = arith.constant -1.000000e+30 : f32
    "tpu.trace_stop"() : () -> ()
    %19 = vector.shape_cast %11 : vector<1x8x8xi1> to vector<1x8x8xi1>
    %20 = vector.broadcast %19 : vector<1x8x8xi1> to vector<4x8x8xi1>
    %21 = vector.broadcast %cst_7 : f32 to vector<4x8x8xf32>
    %22 = arith.select %20, %18, %21 : vector<4x8x8xi1>, vector<4x8x8xf32>
    %cst_8 = arith.constant dense<0xFF800000> : vector<4x8xf32>
    %23 = vector.multi_reduction <maximumf>, %22, %cst_8 [2] : vector<4x8x8xf32> to vector<4x8xf32>
    %24 = vector.shape_cast %23 : vector<4x8xf32> to vector<4x8x1xf32>
    %25 = vector.broadcast %24 : vector<4x8x1xf32> to vector<4x8x8xf32>
    %26 = arith.subf %22, %25 : vector<4x8x8xf32>
    %27 = math.exp %26 : vector<4x8x8xf32>
    %cst_9 = arith.constant dense<0.000000e+00> : vector<4x8xf32>
    %28 = vector.multi_reduction <add>, %27, %cst_9 [2] : vector<4x8x8xf32> to vector<4x8xf32>
    %29 = vector.shape_cast %28 : vector<4x8xf32> to vector<4x8x1xf32>
    %30 = tpu.reciprocal %29 {approx = true} : vector<4x8x1xf32> -> vector<4x8x1xf32>
    %31 = vector.broadcast %30 : vector<4x8x1xf32> to vector<4x8x8xf32>
    %32 = arith.mulf %27, %31 : vector<4x8x8xf32>
    %33 = arith.truncf %32 : vector<4x8x8xf32> to vector<4x8x8xbf16>
    "tpu.trace_start"() <{level = 10 : i32, message = "bts,bsd->btd"}> : () -> ()
    %cst_10 = arith.constant dense<0.000000e+00> : vector<4x8x8xf32>
    %34 = tpu.matmul %33, %17, %cst_10 {dimension_numbers = #tpu.dot_dimension_numbers<[2], [1], [1], [2], [0, 0, 0, 1, 1, 2], [0], [0]>} : vector<4x8x8xbf16>, vector<4x8x8xbf16>, vector<4x8x8xf32> -> vector<4x8x8xf32>
    "tpu.trace_stop"() : () -> ()
    %35 = vector.shape_cast %34 : vector<4x8x8xf32> to vector<32x8xf32>
    %36 = arith.truncf %35 : vector<32x8xf32> to vector<32x8xbf16>
    %c0_11 = arith.constant 0 : index
    %c0_12 = arith.constant 0 : index
    %37 = vector.load %arg7[%c0_11, %c0_12] : memref<32x32xbf16, #tpu.memory_space<vmem>>, vector<32x8xbf16>
    tpu.vector_store %arg7[%c0_11, %c0_12], %36 {strides = array<i32>} : memref<32x32xbf16, #tpu.memory_space<vmem>>, vector<32x8xbf16>,
    %38 = vector.extract_strided_slice %8 {offsets = [0, 8], sizes = [32, 8], strides = [1, 1]} : vector<32x96xbf16> to vector<32x8xbf16>
    %39 = vector.shape_cast %38 : vector<32x8xbf16> to vector<4x8x8xbf16>
    %40 = vector.extract_strided_slice %8 {offsets = [0, 40], sizes = [32, 8], strides = [1, 1]} : vector<32x96xbf16> to vector<32x8xbf16>
    %41 = vector.shape_cast %40 : vector<32x8xbf16> to vector<4x8x8xbf16>
    %42 = vector.extract_strided_slice %8 {offsets = [0, 72], sizes = [32, 8], strides = [1, 1]} : vector<32x96xbf16> to vector<32x8xbf16>
    %43 = vector.shape_cast %42 : vector<32x8xbf16> to vector<4x8x8xbf16>
    "tpu.trace_start"() <{level = 10 : i32, message = "btd,bsd->bts"}> : () -> ()
    %cst_13 = arith.constant dense<0.000000e+00> : vector<4x8x8xf32>
    %44 = tpu.matmul %39, %41, %cst_13 {dimension_numbers = #tpu.dot_dimension_numbers<[2], [2], [1], [1], [0, 0, 0, 1, 1, 1], [0], [0]>} : vector<4x8x8xbf16>, vector<4x8x8xbf16>, vector<4x8x8xf32> -> vector<4x8x8xf32>
    %cst_14 = arith.constant -1.000000e+30 : f32
    "tpu.trace_stop"() : () -> ()
    %45 = vector.shape_cast %11 : vector<1x8x8xi1> to vector<1x8x8xi1>
    %46 = vector.broadcast %45 : vector<1x8x8xi1> to vector<4x8x8xi1>
    %47 = vector.broadcast %cst_14 : f32 to vector<4x8x8xf32>
    %48 = arith.select %46, %44, %47 : vector<4x8x8xi1>, vector<4x8x8xf32>
    %cst_15 = arith.constant dense<0xFF800000> : vector<4x8xf32>
    %49 = vector.multi_reduction <maximumf>, %48, %cst_15 [2] : vector<4x8x8xf32> to vector<4x8xf32>
    %50 = vector.shape_cast %49 : vector<4x8xf32> to vector<4x8x1xf32>
    %51 = vector.broadcast %50 : vector<4x8x1xf32> to vector<4x8x8xf32>
    %52 = arith.subf %48, %51 : vector<4x8x8xf32>
    %53 = math.exp %52 : vector<4x8x8xf32>
    %cst_16 = arith.constant dense<0.000000e+00> : vector<4x8xf32>
    %54 = vector.multi_reduction <add>, %53, %cst_16 [2] : vector<4x8x8xf32> to vector<4x8xf32>
    %55 = vector.shape_cast %54 : vector<4x8xf32> to vector<4x8x1xf32>
    %56 = tpu.reciprocal %55 {approx = true} : vector<4x8x1xf32> -> vector<4x8x1xf32>
    %57 = vector.broadcast %56 : vector<4x8x1xf32> to vector<4x8x8xf32>
    %58 = arith.mulf %53, %57 : vector<4x8x8xf32>
    %59 = arith.truncf %58 : vector<4x8x8xf32> to vector<4x8x8xbf16>
    "tpu.trace_start"() <{level = 10 : i32, message = "bts,bsd->btd"}> : () -> ()
    %cst_17 = arith.constant dense<0.000000e+00> : vector<4x8x8xf32>
    %60 = tpu.matmul %59, %43, %cst_17 {dimension_numbers = #tpu.dot_dimension_numbers<[2], [1], [1], [2], [0, 0, 0, 1, 1, 2], [0], [0]>} : vector<4x8x8xbf16>, vector<4x8x8xbf16>, vector<4x8x8xf32> -> vector<4x8x8xf32>
    "tpu.trace_stop"() : () -> ()
    %61 = vector.shape_cast %60 : vector<4x8x8xf32> to vector<32x8xf32>
    %62 = arith.truncf %61 : vector<32x8xf32> to vector<32x8xbf16>
    %c0_18 = arith.constant 0 : index
    %c8 = arith.constant 8 : index
    %63 = vector.load %arg7[%c0_18, %c8] : memref<32x32xbf16, #tpu.memory_space<vmem>>, vector<32x8xbf16>
    tpu.vector_store %arg7[%c0_18, %c8], %62 {strides = array<i32>} : memref<32x32xbf16, #tpu.memory_space<vmem>>, vector<32x8xbf16>,
    %64 = vector.extract_strided_slice %8 {offsets = [0, 16], sizes = [32, 8], strides = [1, 1]} : vector<32x96xbf16> to vector<32x8xbf16>
    %65 = vector.shape_cast %64 : vector<32x8xbf16> to vector<4x8x8xbf16>
    %66 = vector.extract_strided_slice %8 {offsets = [0, 48], sizes = [32, 8], strides = [1, 1]} : vector<32x96xbf16> to vector<32x8xbf16>
    %67 = vector.shape_cast %66 : vector<32x8xbf16> to vector<4x8x8xbf16>
    %68 = vector.extract_strided_slice %8 {offsets = [0, 80], sizes = [32, 8], strides = [1, 1]} : vector<32x96xbf16> to vector<32x8xbf16>
    %69 = vector.shape_cast %68 : vector<32x8xbf16> to vector<4x8x8xbf16>
    "tpu.trace_start"() <{level = 10 : i32, message = "btd,bsd->bts"}> : () -> ()
    %cst_19 = arith.constant dense<0.000000e+00> : vector<4x8x8xf32>
    %70 = tpu.matmul %65, %67, %cst_19 {dimension_numbers = #tpu.dot_dimension_numbers<[2], [2], [1], [1], [0, 0, 0, 1, 1, 1], [0], [0]>} : vector<4x8x8xbf16>, vector<4x8x8xbf16>, vector<4x8x8xf32> -> vector<4x8x8xf32>
    %cst_20 = arith.constant -1.000000e+30 : f32
    "tpu.trace_stop"() : () -> ()
    %71 = vector.shape_cast %11 : vector<1x8x8xi1> to vector<1x8x8xi1>
    %72 = vector.broadcast %71 : vector<1x8x8xi1> to vector<4x8x8xi1>
    %73 = vector.broadcast %cst_20 : f32 to vector<4x8x8xf32>
    %74 = arith.select %72, %70, %73 : vector<4x8x8xi1>, vector<4x8x8xf32>
    %cst_21 = arith.constant dense<0xFF800000> : vector<4x8xf32>
    %75 = vector.multi_reduction <maximumf>, %74, %cst_21 [2] : vector<4x8x8xf32> to vector<4x8xf32>
    %76 = vector.shape_cast %75 : vector<4x8xf32> to vector<4x8x1xf32>
    %77 = vector.broadcast %76 : vector<4x8x1xf32> to vector<4x8x8xf32>
    %78 = arith.subf %74, %77 : vector<4x8x8xf32>
    %79 = math.exp %78 : vector<4x8x8xf32>
    %cst_22 = arith.constant dense<0.000000e+00> : vector<4x8xf32>
    %80 = vector.multi_reduction <add>, %79, %cst_22 [2] : vector<4x8x8xf32> to vector<4x8xf32>
    %81 = vector.shape_cast %80 : vector<4x8xf32> to vector<4x8x1xf32>
    %82 = tpu.reciprocal %81 {approx = true} : vector<4x8x1xf32> -> vector<4x8x1xf32>
    %83 = vector.broadcast %82 : vector<4x8x1xf32> to vector<4x8x8xf32>
    %84 = arith.mulf %79, %83 : vector<4x8x8xf32>
    %85 = arith.truncf %84 : vector<4x8x8xf32> to vector<4x8x8xbf16>
    "tpu.trace_start"() <{level = 10 : i32, message = "bts,bsd->btd"}> : () -> ()
    %cst_23 = arith.constant dense<0.000000e+00> : vector<4x8x8xf32>
    %86 = tpu.matmul %85, %69, %cst_23 {dimension_numbers = #tpu.dot_dimension_numbers<[2], [1], [1], [2], [0, 0, 0, 1, 1, 2], [0], [0]>} : vector<4x8x8xbf16>, vector<4x8x8xbf16>, vector<4x8x8xf32> -> vector<4x8x8xf32>
    "tpu.trace_stop"() : () -> ()
    %87 = vector.shape_cast %86 : vector<4x8x8xf32> to vector<32x8xf32>
    %88 = arith.truncf %87 : vector<32x8xf32> to vector<32x8xbf16>
    %c0_24 = arith.constant 0 : index
    %c16 = arith.constant 16 : index
    %89 = vector.load %arg7[%c0_24, %c16] : memref<32x32xbf16, #tpu.memory_space<vmem>>, vector<32x8xbf16>
    tpu.vector_store %arg7[%c0_24, %c16], %88 {strides = array<i32>} : memref<32x32xbf16, #tpu.memory_space<vmem>>, vector<32x8xbf16>,
    %90 = vector.extract_strided_slice %8 {offsets = [0, 24], sizes = [32, 8], strides = [1, 1]} : vector<32x96xbf16> to vector<32x8xbf16>
    %91 = vector.shape_cast %90 : vector<32x8xbf16> to vector<4x8x8xbf16>
    %92 = vector.extract_strided_slice %8 {offsets = [0, 56], sizes = [32, 8], strides = [1, 1]} : vector<32x96xbf16> to vector<32x8xbf16>
    %93 = vector.shape_cast %92 : vector<32x8xbf16> to vector<4x8x8xbf16>
    %94 = vector.extract_strided_slice %8 {offsets = [0, 88], sizes = [32, 8], strides = [1, 1]} : vector<32x96xbf16> to vector<32x8xbf16>
    %95 = vector.shape_cast %94 : vector<32x8xbf16> to vector<4x8x8xbf16>
    "tpu.trace_start"() <{level = 10 : i32, message = "btd,bsd->bts"}> : () -> ()
    %cst_25 = arith.constant dense<0.000000e+00> : vector<4x8x8xf32>
    %96 = tpu.matmul %91, %93, %cst_25 {dimension_numbers = #tpu.dot_dimension_numbers<[2], [2], [1], [1], [0, 0, 0, 1, 1, 1], [0], [0]>} : vector<4x8x8xbf16>, vector<4x8x8xbf16>, vector<4x8x8xf32> -> vector<4x8x8xf32>
    %cst_26 = arith.constant -1.000000e+30 : f32
    "tpu.trace_stop"() : () -> ()
    %97 = vector.shape_cast %11 : vector<1x8x8xi1> to vector<1x8x8xi1>
    %98 = vector.broadcast %97 : vector<1x8x8xi1> to vector<4x8x8xi1>
    %99 = vector.broadcast %cst_26 : f32 to vector<4x8x8xf32>
    %100 = arith.select %98, %96, %99 : vector<4x8x8xi1>, vector<4x8x8xf32>
    %cst_27 = arith.constant dense<0xFF800000> : vector<4x8xf32>
    %101 = vector.multi_reduction <maximumf>, %100, %cst_27 [2] : vector<4x8x8xf32> to vector<4x8xf32>
    %102 = vector.shape_cast %101 : vector<4x8xf32> to vector<4x8x1xf32>
    %103 = vector.broadcast %102 : vector<4x8x1xf32> to vector<4x8x8xf32>
    %104 = arith.subf %100, %103 : vector<4x8x8xf32>
    %105 = math.exp %104 : vector<4x8x8xf32>
    %cst_28 = arith.constant dense<0.000000e+00> : vector<4x8xf32>
    %106 = vector.multi_reduction <add>, %105, %cst_28 [2] : vector<4x8x8xf32> to vector<4x8xf32>
    %107 = vector.shape_cast %106 : vector<4x8xf32> to vector<4x8x1xf32>
    %108 = tpu.reciprocal %107 {approx = true} : vector<4x8x1xf32> -> vector<4x8x1xf32>
    %109 = vector.broadcast %108 : vector<4x8x1xf32> to vector<4x8x8xf32>
    %110 = arith.mulf %105, %109 : vector<4x8x8xf32>
    %111 = arith.truncf %110 : vector<4x8x8xf32> to vector<4x8x8xbf16>
    "tpu.trace_start"() <{level = 10 : i32, message = "bts,bsd->btd"}> : () -> ()
    %cst_29 = arith.constant dense<0.000000e+00> : vector<4x8x8xf32>
    %112 = tpu.matmul %111, %95, %cst_29 {dimension_numbers = #tpu.dot_dimension_numbers<[2], [1], [1], [2], [0, 0, 0, 1, 1, 2], [0], [0]>} : vector<4x8x8xbf16>, vector<4x8x8xbf16>, vector<4x8x8xf32> -> vector<4x8x8xf32>
    "tpu.trace_stop"() : () -> ()
    %113 = vector.shape_cast %112 : vector<4x8x8xf32> to vector<32x8xf32>
    %114 = arith.truncf %113 : vector<32x8xf32> to vector<32x8xbf16>
    %c0_30 = arith.constant 0 : index
    %c24 = arith.constant 24 : index
    %115 = vector.load %arg7[%c0_30, %c24] : memref<32x32xbf16, #tpu.memory_space<vmem>>, vector<32x8xbf16>
    tpu.vector_store %arg7[%c0_30, %c24], %114 {strides = array<i32>} : memref<32x32xbf16, #tpu.memory_space<vmem>>, vector<32x8xbf16>,
    %c0_31 = arith.constant 0 : index
    %c0_32 = arith.constant 0 : index
    %116 = vector.load %arg7[%c0_31, %c0_32] : memref<32x32xbf16, #tpu.memory_space<vmem>>, vector<32x32xbf16>
    %c0_33 = arith.constant 0 : index
    %c0_34 = arith.constant 0 : index
    %117 = vector.load %arg4[%c0_33, %c0_34] : memref<32x32xbf16, #tpu.memory_space<vmem>>, vector<32x32xbf16>
    %cst_35 = arith.constant dense<0.000000e+00> : vector<32x32xf32>
    %118 = tpu.matmul %116, %117, %cst_35 {dimension_numbers = #tpu.dot_dimension_numbers<[1], [0], [0], [1], [0, 0, 1, 1], [], []>} : vector<32x32xbf16>, vector<32x32xbf16>, vector<32x32xf32> -> vector<32x32xf32>
    %c0_36 = arith.constant 0 : index
    %c0_37 = arith.constant 0 : index
    %119 = vector.load %arg5[%c0_36, %c0_37] : memref<1x32xf32, #tpu.memory_space<vmem>>, vector<1x32xf32>
    %120 = vector.broadcast %119 : vector<1x32xf32> to vector<32x32xf32>
    %121 = arith.addf %118, %120 : vector<32x32xf32>
    %122 = vector.shape_cast %121 : vector<32x32xf32> to vector<4x8x32xf32>
    %c0_38 = arith.constant 0 : index
    %c0_39 = arith.constant 0 : index
    %c0_40 = arith.constant 0 : index
    %123 = vector.load %arg6[%c0_38, %c0_39, %c0_40] : memref<4x8x32xf32, #tpu.memory_space<vmem>>, vector<4x8x32xf32>
    tpu.vector_store %arg6[%c0_38, %c0_39, %c0_40], %122 {strides = array<i32>} : memref<4x8x32xf32, #tpu.memory_space<vmem>>, vector<4x8x32xf32>,
    return
  }
  func.func @transform_0(%arg0: i32) -> (i32, i32, i32) {
    %c0_i32 = arith.constant 0 : i32
    %c0_i32_0 = arith.constant 0 : i32
    %c0_i32_1 = arith.constant 0 : i32
    return %arg0, %c0_i32, %c0_i32_0 : i32, i32, i32
  }
  func.func @transform_1(%arg0: i32) -> (i32, i32) {
    %c0_i32 = arith.constant 0 : i32
    %c0_i32_0 = arith.constant 0 : i32
    %c0_i32_1 = arith.constant 0 : i32
    return %c0_i32, %c0_i32_0 : i32, i32
  }
  func.func @transform_2(%arg0: i32) -> (i32, i32) {
    %c0_i32 = arith.constant 0 : i32
    %c0_i32_0 = arith.constant 0 : i32
    %c0_i32_1 = arith.constant 0 : i32
    return %c0_i32, %c0_i32_0 : i32, i32
  }
  func.func @transform_3(%arg0: i32) -> (i32, i32) {
    %c0_i32 = arith.constant 0 : i32
    %c0_i32_0 = arith.constant 0 : i32
    %c0_i32_1 = arith.constant 0 : i32
    return %c0_i32, %c0_i32_0 : i32, i32
  }
  func.func @transform_4(%arg0: i32) -> (i32, i32) {
    %c0_i32 = arith.constant 0 : i32
    %c0_i32_0 = arith.constant 0 : i32
    %c0_i32_1 = arith.constant 0 : i32
    return %c0_i32, %c0_i32_0 : i32, i32
  }
  func.func @transform_5(%arg0: i32) -> (i32, i32, i32) {
    %c0_i32 = arith.constant 0 : i32
    %c0_i32_0 = arith.constant 0 : i32
    %c0_i32_1 = arith.constant 0 : i32
    return %arg0, %c0_i32, %c0_i32_0 : i32, i32, i32
  }
}

module attributes {stable_mosaic.version = 11 : i64} {
  func.func @_causal_attn_kernel(%arg0: i32, %arg1: memref<4x8x32xf32, #tpu.memory_space<vmem>>, %arg2: memref<32x96xbf16, #tpu.memory_space<vmem>>, %arg3: memref<1x96xf32, #tpu.memory_space<vmem>>, %arg4: memref<32x32xbf16, #tpu.memory_space<vmem>>, %arg5: memref<1x32xf32, #tpu.memory_space<vmem>>, %arg6: memref<4x8x32xf32, #tpu.memory_space<vmem>>, %arg7: memref<32x32xbf16, #tpu.memory_space<vmem>>) attributes {dimension_semantics = [#tpu.dimension_semantics<parallel>], iteration_bounds = array<i64: 2>, scalar_prefetch = 0 : i64, scratch_operands = 1 : i64, tpu.core_type = #tpu.core_type<tc>, window_params = [{transform_indices = @transform_0, window_bounds = array<i64: 4, 8, 32>}, {pipeline_mode = #tpu.pipeline_mode<synchronous>, transform_indices = @transform_1, window_bounds = array<i64: 32, 96>}, {pipeline_mode = #tpu.pipeline_mode<synchronous>, transform_indices = @transform_2, window_bounds = array<i64: 1, 96>}, {pipeline_mode = #tpu.pipeline_mode<synchronous>, transform_indices = @transform_3, window_bounds = array<i64: 32, 32>}, {pipeline_mode = #tpu.pipeline_mode<synchronous>, transform_indices = @transform_4, window_bounds = array<i64: 1, 32>}, {transform_indices = @transform_5, window_bounds = array<i64: 4, 8, 32>}]} {
    %c0 = arith.constant 0 : index
    %c0_0 = arith.constant 0 : index
    %c0_1 = arith.constant 0 : index
    %0 = vector.load %arg1[%c0, %c0_0, %c0_1] : memref<4x8x32xf32, #tpu.memory_space<vmem>>, vector<4x8x32xf32>
    %1 = vector.shape_cast %0 : vector<4x8x32xf32> to vector<32x32xf32>
    %2 = arith.truncf %1 : vector<32x32xf32> to vector<32x32xbf16>
    %c0_2 = arith.constant 0 : index
    %c0_3 = arith.constant 0 : index
    %3 = vector.load %arg2[%c0_2, %c0_3] : memref<32x96xbf16, #tpu.memory_space<vmem>>, vector<32x96xbf16>
    %cst = arith.constant dense<0.000000e+00> : vector<32x96xf32>
    %4 = tpu.matmul %2, %3, %cst {dimension_numbers = #tpu.dot_dimension_numbers<[1], [0], [0], [1], [0, 0, 1, 1], [], []>} : vector<32x32xbf16>, vector<32x96xbf16>, vector<32x96xf32> -> vector<32x96xf32>
    %c0_4 = arith.constant 0 : index
    %c0_5 = arith.constant 0 : index
    %5 = vector.load %arg3[%c0_4, %c0_5] : memref<1x96xf32, #tpu.memory_space<vmem>>, vector<1x96xf32>
    %6 = vector.broadcast %5 : vector<1x96xf32> to vector<32x96xf32>
    %7 = arith.addf %4, %6 : vector<32x96xf32>
    %8 = arith.truncf %7 : vector<32x96xf32> to vector<32x96xbf16>
    %9 = tpu.iota {dimensions = array<i32: 1>} : vector<1x8x8xi32>
    %10 = tpu.iota {dimensions = array<i32: 2>} : vector<1x8x8xi32>
    %11 = arith.cmpi sle, %10, %9 : vector<1x8x8xi32>
    %12 = vector.extract_strided_slice %8 {offsets = [0, 0], sizes = [32, 8], strides = [1, 1]} : vector<32x96xbf16> to vector<32x8xbf16>
    %13 = vector.shape_cast %12 : vector<32x8xbf16> to vector<4x8x8xbf16>
    %14 = vector.extract_strided_slice %8 {offsets = [0, 32], sizes = [32, 8], strides = [1, 1]} : vector<32x96xbf16> to vector<32x8xbf16>
    %15 = vector.shape_cast %14 : vector<32x8xbf16> to vector<4x8x8xbf16>
    %16 = vector.extract_strided_slice %8 {offsets = [0, 64], sizes = [32, 8], strides = [1, 1]} : vector<32x96xbf16> to vector<32x8xbf16>
    %17 = vector.shape_cast %16 : vector<32x8xbf16> to vector<4x8x8xbf16>
    "tpu.trace_start"() <{level = 10 : i32, message = "btd,bsd->bts"}> : () -> ()
    %cst_6 = arith.constant dense<0.000000e+00> : vector<4x8x8xf32>
    %18 = tpu.matmul %13, %15, %cst_6 {dimension_numbers = #tpu.dot_dimension_numbers<[2], [2], [1], [1], [0, 0, 0, 1, 1, 1], [0], [0]>} : vector<4x8x8xbf16>, vector<4x8x8xbf16>, vector<4x8x8xf32> -> vector<4x8x8xf32>
    %cst_7 = arith.constant -1.000000e+30 : f32
    "tpu.trace_stop"() : () -> ()
    %19 = vector.shape_cast %11 : vector<1x8x8xi1> to vector<1x8x8xi1>
    %20 = vector.broadcast %19 : vector<1x8x8xi1> to vector<4x8x8xi1>
    %21 = vector.broadcast %cst_7 : f32 to vector<4x8x8xf32>
    %22 = arith.select %20, %18, %21 : vector<4x8x8xi1>, vector<4x8x8xf32>
    %cst_8 = arith.constant dense<0xFF800000> : vector<4x8xf32>
    %23 = vector.multi_reduction <maximumf>, %22, %cst_8 [2] : vector<4x8x8xf32> to vector<4x8xf32>
    %24 = vector.shape_cast %23 : vector<4x8xf32> to vector<4x8x1xf32>
    %25 = vector.broadcast %24 : vector<4x8x1xf32> to vector<4x8x8xf32>
    %26 = arith.subf %22, %25 : vector<4x8x8xf32>
    %27 = math.exp %26 : vector<4x8x8xf32>
    %cst_9 = arith.constant dense<0.000000e+00> : vector<4x8xf32>
    %28 = vector.multi_reduction <add>, %27, %cst_9 [2] : vector<4x8x8xf32> to vector<4x8xf32>
    %29 = vector.shape_cast %28 : vector<4x8xf32> to vector<4x8x1xf32>
    %30 = tpu.reciprocal %29 {approx = true} : vector<4x8x1xf32> -> vector<4x8x1xf32>
    %31 = vector.broadcast %30 : vector<4x8x1xf32> to vector<4x8x8xf32>
    %32 = arith.mulf %27, %31 : vector<4x8x8xf32>
    %33 = arith.truncf %32 : vector<4x8x8xf32> to vector<4x8x8xbf16>
    "tpu.trace_start"() <{level = 10 : i32, message = "bts,bsd->btd"}> : () -> ()
    %cst_10 = arith.constant dense<0.000000e+00> : vector<4x8x8xf32>
    %34 = tpu.matmul %33, %17, %cst_10 {dimension_numbers = #tpu.dot_dimension_numbers<[2], [1], [1], [2], [0, 0, 0, 1, 1, 2], [0], [0]>} : vector<4x8x8xbf16>, vector<4x8x8xbf16>, vector<4x8x8xf32> -> vector<4x8x8xf32>
    "tpu.trace_stop"() : () -> ()
    %35 = vector.shape_cast %34 : vector<4x8x8xf32> to vector<32x8xf32>
    %36 = arith.truncf %35 : vector<32x8xf32> to vector<32x8xbf16>
    %c0_11 = arith.constant 0 : index
    %c0_12 = arith.constant 0 : index
    %37 = vector.load %arg7[%c0_11, %c0_12] : memref<32x32xbf16, #tpu.memory_space<vmem>>, vector<32x8xbf16>
    tpu.vector_store %arg7[%c0_11, %c0_12], %36 {strides = array<i32>} : memref<32x32xbf16, #tpu.memory_space<vmem>>, vector<32x8xbf16>,
    %38 = vector.extract_strided_slice %8 {offsets = [0, 8], sizes = [32, 8], strides = [1, 1]} : vector<32x96xbf16> to vector<32x8xbf16>
    %39 = vector.shape_cast %38 : vector<32x8xbf16> to vector<4x8x8xbf16>
    %40 = vector.extract_strided_slice %8 {offsets = [0, 40], sizes = [32, 8], strides = [1, 1]} : vector<32x96xbf16> to vector<32x8xbf16>
    %41 = vector.shape_cast %40 : vector<32x8xbf16> to vector<4x8x8xbf16>
    %42 = vector.extract_strided_slice %8 {offsets = [0, 72], sizes = [32, 8], strides = [1, 1]} : vector<32x96xbf16> to vector<32x8xbf16>
    %43 = vector.shape_cast %42 : vector<32x8xbf16> to vector<4x8x8xbf16>
    "tpu.trace_start"() <{level = 10 : i32, message = "btd,bsd->bts"}> : () -> ()
    %cst_13 = arith.constant dense<0.000000e+00> : vector<4x8x8xf32>
    %44 = tpu.matmul %39, %41, %cst_13 {dimension_numbers = #tpu.dot_dimension_numbers<[2], [2], [1], [1], [0, 0, 0, 1, 1, 1], [0], [0]>} : vector<4x8x8xbf16>, vector<4x8x8xbf16>, vector<4x8x8xf32> -> vector<4x8x8xf32>
    %cst_14 = arith.constant -1.000000e+30 : f32
    "tpu.trace_stop"() : () -> ()
    %45 = vector.shape_cast %11 : vector<1x8x8xi1> to vector<1x8x8xi1>
    %46 = vector.broadcast %45 : vector<1x8x8xi1> to vector<4x8x8xi1>
    %47 = vector.broadcast %cst_14 : f32 to vector<4x8x8xf32>
    %48 = arith.select %46, %44, %47 : vector<4x8x8xi1>, vector<4x8x8xf32>
    %cst_15 = arith.constant dense<0xFF800000> : vector<4x8xf32>
    %49 = vector.multi_reduction <maximumf>, %48, %cst_15 [2] : vector<4x8x8xf32> to vector<4x8xf32>
    %50 = vector.shape_cast %49 : vector<4x8xf32> to vector<4x8x1xf32>
    %51 = vector.broadcast %50 : vector<4x8x1xf32> to vector<4x8x8xf32>
    %52 = arith.subf %48, %51 : vector<4x8x8xf32>
    %53 = math.exp %52 : vector<4x8x8xf32>
    %cst_16 = arith.constant dense<0.000000e+00> : vector<4x8xf32>
    %54 = vector.multi_reduction <add>, %53, %cst_16 [2] : vector<4x8x8xf32> to vector<4x8xf32>
    %55 = vector.shape_cast %54 : vector<4x8xf32> to vector<4x8x1xf32>
    %56 = tpu.reciprocal %55 {approx = true} : vector<4x8x1xf32> -> vector<4x8x1xf32>
    %57 = vector.broadcast %56 : vector<4x8x1xf32> to vector<4x8x8xf32>
    %58 = arith.mulf %53, %57 : vector<4x8x8xf32>
    %59 = arith.truncf %58 : vector<4x8x8xf32> to vector<4x8x8xbf16>
    "tpu.trace_start"() <{level = 10 : i32, message = "bts,bsd->btd"}> : () -> ()
    %cst_17 = arith.constant dense<0.000000e+00> : vector<4x8x8xf32>
    %60 = tpu.matmul %59, %43, %cst_17 {dimension_numbers = #tpu.dot_dimension_numbers<[2], [1], [1], [2], [0, 0, 0, 1, 1, 2], [0], [0]>} : vector<4x8x8xbf16>, vector<4x8x8xbf16>, vector<4x8x8xf32> -> vector<4x8x8xf32>
    "tpu.trace_stop"() : () -> ()
    %61 = vector.shape_cast %60 : vector<4x8x8xf32> to vector<32x8xf32>
    %62 = arith.truncf %61 : vector<32x8xf32> to vector<32x8xbf16>
    %c0_18 = arith.constant 0 : index
    %c8 = arith.constant 8 : index
    %63 = vector.load %arg7[%c0_18, %c8] : memref<32x32xbf16, #tpu.memory_space<vmem>>, vector<32x8xbf16>
    tpu.vector_store %arg7[%c0_18, %c8], %62 {strides = array<i32>} : memref<32x32xbf16, #tpu.memory_space<vmem>>, vector<32x8xbf16>,
    %64 = vector.extract_strided_slice %8 {offsets = [0, 16], sizes = [32, 8], strides = [1, 1]} : vector<32x96xbf16> to vector<32x8xbf16>
    %65 = vector.shape_cast %64 : vector<32x8xbf16> to vector<4x8x8xbf16>
    %66 = vector.extract_strided_slice %8 {offsets = [0, 48], sizes = [32, 8], strides = [1, 1]} : vector<32x96xbf16> to vector<32x8xbf16>
    %67 = vector.shape_cast %66 : vector<32x8xbf16> to vector<4x8x8xbf16>
    %68 = vector.extract_strided_slice %8 {offsets = [0, 80], sizes = [32, 8], strides = [1, 1]} : vector<32x96xbf16> to vector<32x8xbf16>
    %69 = vector.shape_cast %68 : vector<32x8xbf16> to vector<4x8x8xbf16>
    "tpu.trace_start"() <{level = 10 : i32, message = "btd,bsd->bts"}> : () -> ()
    %cst_19 = arith.constant dense<0.000000e+00> : vector<4x8x8xf32>
    %70 = tpu.matmul %65, %67, %cst_19 {dimension_numbers = #tpu.dot_dimension_numbers<[2], [2], [1], [1], [0, 0, 0, 1, 1, 1], [0], [0]>} : vector<4x8x8xbf16>, vector<4x8x8xbf16>, vector<4x8x8xf32> -> vector<4x8x8xf32>
    %cst_20 = arith.constant -1.000000e+30 : f32
    "tpu.trace_stop"() : () -> ()
    %71 = vector.shape_cast %11 : vector<1x8x8xi1> to vector<1x8x8xi1>
    %72 = vector.broadcast %71 : vector<1x8x8xi1> to vector<4x8x8xi1>
    %73 = vector.broadcast %cst_20 : f32 to vector<4x8x8xf32>
    %74 = arith.select %72, %70, %73 : vector<4x8x8xi1>, vector<4x8x8xf32>
    %cst_21 = arith.constant dense<0xFF800000> : vector<4x8xf32>
    %75 = vector.multi_reduction <maximumf>, %74, %cst_21 [2] : vector<4x8x8xf32> to vector<4x8xf32>
    %76 = vector.shape_cast %75 : vector<4x8xf32> to vector<4x8x1xf32>
    %77 = vector.broadcast %76 : vector<4x8x1xf32> to vector<4x8x8xf32>
    %78 = arith.subf %74, %77 : vector<4x8x8xf32>
    %79 = math.exp %78 : vector<4x8x8xf32>
    %cst_22 = arith.constant dense<0.000000e+00> : vector<4x8xf32>
    %80 = vector.multi_reduction <add>, %79, %cst_22 [2] : vector<4x8x8xf32> to vector<4x8xf32>
    %81 = vector.shape_cast %80 : vector<4x8xf32> to vector<4x8x1xf32>
    %82 = tpu.reciprocal %81 {approx = true} : vector<4x8x1xf32> -> vector<4x8x1xf32>
    %83 = vector.broadcast %82 : vector<4x8x1xf32> to vector<4x8x8xf32>
    %84 = arith.mulf %79, %83 : vector<4x8x8xf32>
    %85 = arith.truncf %84 : vector<4x8x8xf32> to vector<4x8x8xbf16>
    "tpu.trace_start"() <{level = 10 : i32, message = "bts,bsd->btd"}> : () -> ()
    %cst_23 = arith.constant dense<0.000000e+00> : vector<4x8x8xf32>
    %86 = tpu.matmul %85, %69, %cst_23 {dimension_numbers = #tpu.dot_dimension_numbers<[2], [1], [1], [2], [0, 0, 0, 1, 1, 2], [0], [0]>} : vector<4x8x8xbf16>, vector<4x8x8xbf16>, vector<4x8x8xf32> -> vector<4x8x8xf32>
    "tpu.trace_stop"() : () -> ()
    %87 = vector.shape_cast %86 : vector<4x8x8xf32> to vector<32x8xf32>
    %88 = arith.truncf %87 : vector<32x8xf32> to vector<32x8xbf16>
    %c0_24 = arith.constant 0 : index
    %c16 = arith.constant 16 : index
    %89 = vector.load %arg7[%c0_24, %c16] : memref<32x32xbf16, #tpu.memory_space<vmem>>, vector<32x8xbf16>
    tpu.vector_store %arg7[%c0_24, %c16], %88 {strides = array<i32>} : memref<32x32xbf16, #tpu.memory_space<vmem>>, vector<32x8xbf16>,
    %90 = vector.extract_strided_slice %8 {offsets = [0, 24], sizes = [32, 8], strides = [1, 1]} : vector<32x96xbf16> to vector<32x8xbf16>
    %91 = vector.shape_cast %90 : vector<32x8xbf16> to vector<4x8x8xbf16>
    %92 = vector.extract_strided_slice %8 {offsets = [0, 56], sizes = [32, 8], strides = [1, 1]} : vector<32x96xbf16> to vector<32x8xbf16>
    %93 = vector.shape_cast %92 : vector<32x8xbf16> to vector<4x8x8xbf16>
    %94 = vector.extract_strided_slice %8 {offsets = [0, 88], sizes = [32, 8], strides = [1, 1]} : vector<32x96xbf16> to vector<32x8xbf16>
    %95 = vector.shape_cast %94 : vector<32x8xbf16> to vector<4x8x8xbf16>
    "tpu.trace_start"() <{level = 10 : i32, message = "btd,bsd->bts"}> : () -> ()
    %cst_25 = arith.constant dense<0.000000e+00> : vector<4x8x8xf32>
    %96 = tpu.matmul %91, %93, %cst_25 {dimension_numbers = #tpu.dot_dimension_numbers<[2], [2], [1], [1], [0, 0, 0, 1, 1, 1], [0], [0]>} : vector<4x8x8xbf16>, vector<4x8x8xbf16>, vector<4x8x8xf32> -> vector<4x8x8xf32>
    %cst_26 = arith.constant -1.000000e+30 : f32
    "tpu.trace_stop"() : () -> ()
    %97 = vector.shape_cast %11 : vector<1x8x8xi1> to vector<1x8x8xi1>
    %98 = vector.broadcast %97 : vector<1x8x8xi1> to vector<4x8x8xi1>
    %99 = vector.broadcast %cst_26 : f32 to vector<4x8x8xf32>
    %100 = arith.select %98, %96, %99 : vector<4x8x8xi1>, vector<4x8x8xf32>
    %cst_27 = arith.constant dense<0xFF800000> : vector<4x8xf32>
    %101 = vector.multi_reduction <maximumf>, %100, %cst_27 [2] : vector<4x8x8xf32> to vector<4x8xf32>
    %102 = vector.shape_cast %101 : vector<4x8xf32> to vector<4x8x1xf32>
    %103 = vector.broadcast %102 : vector<4x8x1xf32> to vector<4x8x8xf32>
    %104 = arith.subf %100, %103 : vector<4x8x8xf32>
    %105 = math.exp %104 : vector<4x8x8xf32>
    %cst_28 = arith.constant dense<0.000000e+00> : vector<4x8xf32>
    %106 = vector.multi_reduction <add>, %105, %cst_28 [2] : vector<4x8x8xf32> to vector<4x8xf32>
    %107 = vector.shape_cast %106 : vector<4x8xf32> to vector<4x8x1xf32>
    %108 = tpu.reciprocal %107 {approx = true} : vector<4x8x1xf32> -> vector<4x8x1xf32>
    %109 = vector.broadcast %108 : vector<4x8x1xf32> to vector<4x8x8xf32>
    %110 = arith.mulf %105, %109 : vector<4x8x8xf32>
    %111 = arith.truncf %110 : vector<4x8x8xf32> to vector<4x8x8xbf16>
    "tpu.trace_start"() <{level = 10 : i32, message = "bts,bsd->btd"}> : () -> ()
    %cst_29 = arith.constant dense<0.000000e+00> : vector<4x8x8xf32>
    %112 = tpu.matmul %111, %95, %cst_29 {dimension_numbers = #tpu.dot_dimension_numbers<[2], [1], [1], [2], [0, 0, 0, 1, 1, 2], [0], [0]>} : vector<4x8x8xbf16>, vector<4x8x8xbf16>, vector<4x8x8xf32> -> vector<4x8x8xf32>
    "tpu.trace_stop"() : () -> ()
    %113 = vector.shape_cast %112 : vector<4x8x8xf32> to vector<32x8xf32>
    %114 = arith.truncf %113 : vector<32x8xf32> to vector<32x8xbf16>
    %c0_30 = arith.constant 0 : index
    %c24 = arith.constant 24 : index
    %115 = vector.load %arg7[%c0_30, %c24] : memref<32x32xbf16, #tpu.memory_space<vmem>>, vector<32x8xbf16>
    tpu.vector_store %arg7[%c0_30, %c24], %114 {strides = array<i32>} : memref<32x32xbf16, #tpu.memory_space<vmem>>, vector<32x8xbf16>,
    %c0_31 = arith.constant 0 : index
    %c0_32 = arith.constant 0 : index
    %116 = vector.load %arg7[%c0_31, %c0_32] : memref<32x32xbf16, #tpu.memory_space<vmem>>, vector<32x32xbf16>
    %c0_33 = arith.constant 0 : index
    %c0_34 = arith.constant 0 : index
    %117 = vector.load %arg4[%c0_33, %c0_34] : memref<32x32xbf16, #tpu.memory_space<vmem>>, vector<32x32xbf16>
    %cst_35 = arith.constant dense<0.000000e+00> : vector<32x32xf32>
    %118 = tpu.matmul %116, %117, %cst_35 {dimension_numbers = #tpu.dot_dimension_numbers<[1], [0], [0], [1], [0, 0, 1, 1], [], []>} : vector<32x32xbf16>, vector<32x32xbf16>, vector<32x32xf32> -> vector<32x32xf32>
    %c0_36 = arith.constant 0 : index
    %c0_37 = arith.constant 0 : index
    %119 = vector.load %arg5[%c0_36, %c0_37] : memref<1x32xf32, #tpu.memory_space<vmem>>, vector<1x32xf32>
    %120 = vector.broadcast %119 : vector<1x32xf32> to vector<32x32xf32>
    %121 = arith.addf %118, %120 : vector<32x32xf32>
    %122 = vector.shape_cast %121 : vector<32x32xf32> to vector<4x8x32xf32>
    %c0_38 = arith.constant 0 : index
    %c0_39 = arith.constant 0 : index
    %c0_40 = arith.constant 0 : index
    %123 = vector.load %arg6[%c0_38, %c0_39, %c0_40] : memref<4x8x32xf32, #tpu.memory_space<vmem>>, vector<4x8x32xf32>
    tpu.vector_store %arg6[%c0_38, %c0_39, %c0_40], %122 {strides = array<i32>} : memref<4x8x32xf32, #tpu.memory_space<vmem>>, vector<4x8x32xf32>,
    return
  }
  func.func @transform_0(%arg0: i32) -> (i32, i32, i32) {
    %c0_i32 = arith.constant 0 : i32
    %c0_i32_0 = arith.constant 0 : i32
    %c0_i32_1 = arith.constant 0 : i32
    return %arg0, %c0_i32, %c0_i32_0 : i32, i32, i32
  }
  func.func @transform_1(%arg0: i32) -> (i32, i32) {
    %c0_i32 = arith.constant 0 : i32
    %c0_i32_0 = arith.constant 0 : i32
    %c0_i32_1 = arith.constant 0 : i32
    return %c0_i32, %c0_i32_0 : i32, i32
  }
  func.func @transform_2(%arg0: i32) -> (i32, i32) {
    %c0_i32 = arith.constant 0 : i32
    %c0_i32_0 = arith.constant 0 : i32
    %c0_i32_1 = arith.constant 0 : i32
    return %c0_i32, %c0_i32_0 : i32, i32
  }
  func.func @transform_3(%arg0: i32) -> (i32, i32) {
    %c0_i32 = arith.constant 0 : i32
    %c0_i32_0 = arith.constant 0 : i32
    %c0_i32_1 = arith.constant 0 : i32
    return %c0_i32, %c0_i32_0 : i32, i32
  }
  func.func @transform_4(%arg0: i32) -> (i32, i32) {
    %c0_i32 = arith.constant 0 : i32
    %c0_i32_0 = arith.constant 0 : i32
    %c0_i32_1 = arith.constant 0 : i32
    return %c0_i32, %c0_i32_0 : i32, i32
  }
  func.func @transform_5(%arg0: i32) -> (i32, i32, i32) {
    %c0_i32 = arith.constant 0 : i32
    %c0_i32_0 = arith.constant 0 : i32
    %c0_i32_1 = arith.constant 0 : i32
    return %arg0, %c0_i32, %c0_i32_0 : i32, i32, i32
  }
}

</mosaic_0001>

<llo_original>
// kernel: tpu_custom_call.1
$region0: #{tpu_custom_call.1}
  #allocation0 [shape = 'u32[]', space=smem, size = 0x4, offset = 0x4, fixed_abs, tag = 'smem constant byte address 0x4 - core index']
  #allocation1 [shape = 'u32[144,128]{1,0:T(1,128)}', space=vmem, size = 0x12000, scoped, tag = 'internal scratch']
  #allocation2 [shape = 'bf16[32,32]{1,0:T(16,128)(2,1)}', space=vmem, size = 0x2000, scoped, tag = 'scratch operand']
  %s0 = inlined_call_operand.hbm [shape: f32[6,8,32], index: 0, kind: input, shape index: {}]
  %s1 = inlined_call_operand.hbm [shape: bf16[32,96], index: 1, kind: input, shape index: {}]
  %s2 = inlined_call_operand.vmem [shape: f32[1,96], index: 2, kind: input, shape index: {}]
  %s3 = inlined_call_operand.hbm [shape: bf16[32,32], index: 3, kind: input, shape index: {}]
  %s4 = inlined_call_operand.vmem [shape: f32[1,32], index: 4, kind: input, shape index: {}]
  %s5 = inlined_call_operand.hbm [shape: f32[6,8,32], index: 5, kind: output, shape index: {}]
  %s6 = sld [smem:[#allocation0]]
  $region65: #{tpu_custom_call.1} parent=0
    _
  %s8 = ssub.s32 1, %s6
  %s9 = scalar_select 0, %s8, %s6
  $region1: #{tpu_custom_call.1} parent=0
    #allocation3 [shape = 'u8[32768]{0}', space=vmem, size = 0x8000, scoped, tag = 'input window, operand 0']
    #allocation4 [shape = 's32[2]{0}', space=sflag, size = 0x8, scoped, tag = 'scoped memory for tpu_custom_call.1']
    #allocation5 [shape = 's32[2]{0}', space=sflag, size = 0x8, scoped, tag = 'scoped memory for tpu_custom_call.1']
    #allocation6 [shape = 'u8[8192]{0}', space=vmem, size = 0x2000, scoped, tag = 'input window, operand 1, single buffered']
    #allocation7 [shape = 's32[1]{0}', space=sflag, size = 0x4, scoped, tag = 'scoped memory for tpu_custom_call.1']
    #allocation8 [shape = 'u8[8192]{0}', space=vmem, size = 0x2000, scoped, tag = 'input window, operand 3, single buffered']
    #allocation9 [shape = 'u8[32768]{0}', space=vmem, size = 0x8000, scoped, tag = 'output window, operand 0']
    %10 = vsyncpa [#allocation4], 0
    %s11 = scalar_lea.sflag [#allocation4], 1
    %12 = vsyncpa %s11, 0
    %13 = vsyncpa [#allocation7], 0
    %14 = vsyncpa [#allocation5], 0
    %s15 = scalar_lea.sflag [#allocation5], 1
    %16 = vsyncpa %s15, 0
    loop: start=0, step=1, limit=4
    $region2: #{tpu_custom_call.1} parent=1 // loop_pre_header
      _
    $region3: #{tpu_custom_call.1} parent=1 // loop_header
      %s18 = sphi 0, %s22
      %p19 = scmp.ge.s32.totalorder %s18, 4
      %s28 = sphi 0, %s30
      %s31 = sphi 0, %s28
      %s32 = sphi 0, %s31
      %s48 = sphi 0, %s32
      %s52 = sphi 0, %s52
      %s54 = sphi 0, %s52
      %s55 = sphi 0, %s54
      %s69 = sphi 0, %s55
      %s73 = sphi 0, %s73
      %s75 = sphi 0, %s73
      %s76 = sphi 0, %s75
      %s90 = sphi 0, %s76
      %s94 = sphi 0, %s94
      %s96 = sphi 0, %s94
      %s97 = sphi 0, %s96
      %s111 = sphi 0, %s97
      %s115 = sphi 0, %s115
      %s117 = sphi 0, %s115
      %s118 = sphi 0, %s117
      %s132 = sphi 0, %s118
      %s138 = sphi 0, %s140
      %s141 = sphi 0, %s138
      %s142 = sphi 0, %s141
      %s158 = sphi 0, %s142
    $region4: #{tpu_custom_call.1} parent=1 // loop_header_branch
      %21 = sbr.rel (%p19) target = $region8
    $region5: #{tpu_custom_call.1} parent=1 // loop_body
      %s23 = ssub.s32 %s18, 1
      %s24 = ssub.s32 %s18, 2
      %s25 = sadd.s32 %s18, 1
      %s26 = ssub.s32 %s18, %s25
      %p27 = scmp.eq.s32.totalorder %s26, 0
      %s29 = sadd.s32 %s28, 1
      %s30 = scalar_select %p27, %s28, %s29
      %p33 = pneg %p27
      %p34 = scmp.eq.s32.totalorder %s18, 1
      %p35 = por %p33, %p34
      %p36 = scmp.ne.s32.totalorder %s28, %s31
      %p37 = scmp.eq.s32.totalorder %s18, 0
      %p38 = por %p36, %p37
      %p39 = scmp.ne.s32.totalorder %s28, %s31
      %p40 = scmp.eq.s32.totalorder %s23, 1
      %p41 = por %p39, %p40
      %p42 = scmp.ne.s32.totalorder %s31, %s32
      %p43 = scmp.eq.s32.totalorder %s23, 0
      %p44 = por %p42, %p43
      %p45 = scmp.ne.s32.totalorder %s31, %s32
      %p46 = scmp.eq.s32.totalorder %s24, 1
      %p47 = por %p45, %p46
      %p49 = scmp.ne.s32.totalorder %s32, %s48
      %p50 = scmp.eq.s32.totalorder %s24, 0
      %p51 = por %p49, %p50
      %s53 = sadd.s32 %s52, 1
      %p56 = scmp.eq.s32.totalorder %s18, 1
      %p57 = scmp.ne.s32.totalorder %s52, %s54
      %p58 = scmp.eq.s32.totalorder %s18, 0
      %p59 = por %p57, %p58
      %p60 = scmp.ne.s32.totalorder %s52, %s54
      %p61 = scmp.eq.s32.totalorder %s23, 1
      %p62 = por %p60, %p61
      %p63 = scmp.ne.s32.totalorder %s54, %s55
      %p64 = scmp.eq.s32.totalorder %s23, 0
      %p65 = por %p63, %p64
      %p66 = scmp.ne.s32.totalorder %s54, %s55
      %p67 = scmp.eq.s32.totalorder %s24, 1
      %p68 = por %p66, %p67
      %p70 = scmp.ne.s32.totalorder %s55, %s69
      %p71 = scmp.eq.s32.totalorder %s24, 0
      %p72 = por %p70, %p71
      %s74 = sadd.s32 %s73, 1
      %p77 = scmp.eq.s32.totalorder %s18, 1
      %p78 = scmp.ne.s32.totalorder %s73, %s75
      %p79 = scmp.eq.s32.totalorder %s18, 0
      %p80 = por %p78, %p79
      %p81 = scmp.ne.s32.totalorder %s73, %s75
      %p82 = scmp.eq.s32.totalorder %s23, 1
      %p83 = por %p81, %p82
      %p84 = scmp.ne.s32.totalorder %s75, %s76
      %p85 = scmp.eq.s32.totalorder %s23, 0
      %p86 = por %p84, %p85
      %p87 = scmp.ne.s32.totalorder %s75, %s76
      %p88 = scmp.eq.s32.totalorder %s24, 1
      %p89 = por %p87, %p88
      %p91 = scmp.ne.s32.totalorder %s76, %s90
      %p92 = scmp.eq.s32.totalorder %s24, 0
      %p93 = por %p91, %p92
      %s95 = sadd.s32 %s94, 1
      %p98 = scmp.eq.s32.totalorder %s18, 1
      %p99 = scmp.ne.s32.totalorder %s94, %s96
      %p100 = scmp.eq.s32.totalorder %s18, 0
      %p101 = por %p99, %p100
      %p102 = scmp.ne.s32.totalorder %s94, %s96
      %p103 = scmp.eq.s32.totalorder %s23, 1
      %p104 = por %p102, %p103
      %p105 = scmp.ne.s32.totalorder %s96, %s97
      %p106 = scmp.eq.s32.totalorder %s23, 0
      %p107 = por %p105, %p106
      %p108 = scmp.ne.s32.totalorder %s96, %s97
      %p109 = scmp.eq.s32.totalorder %s24, 1
      %p110 = por %p108, %p109
      %p112 = scmp.ne.s32.totalorder %s97, %s111
      %p113 = scmp.eq.s32.totalorder %s24, 0
      %p114 = por %p112, %p113
      %s116 = sadd.s32 %s115, 1
      %p119 = scmp.eq.s32.totalorder %s18, 1
      %p120 = scmp.ne.s32.totalorder %s115, %s117
      %p121 = scmp.eq.s32.totalorder %s18, 0
      %p122 = por %p120, %p121
      %p123 = scmp.ne.s32.totalorder %s115, %s117
      %p124 = scmp.eq.s32.totalorder %s23, 1
      %p125 = por %p123, %p124
      %p126 = scmp.ne.s32.totalorder %s117, %s118
      %p127 = scmp.eq.s32.totalorder %s23, 0
      %p128 = por %p126, %p127
      %p129 = scmp.ne.s32.totalorder %s117, %s118
      %p130 = scmp.eq.s32.totalorder %s24, 1
      %p131 = por %p129, %p130
      %p133 = scmp.ne.s32.totalorder %s118, %s132
      %p134 = scmp.eq.s32.totalorder %s24, 0
      %p135 = por %p133, %p134
      %s136 = ssub.s32 %s18, %s25
      %p137 = scmp.eq.s32.totalorder %s136, 0
      %s139 = sadd.s32 %s138, 1
      %s140 = scalar_select %p137, %s138, %s139
      %p143 = pneg %p137
      %p144 = scmp.eq.s32.totalorder %s18, 1
      %p145 = por %p143, %p144
      %p146 = scmp.ne.s32.totalorder %s138, %s141
      %p147 = scmp.eq.s32.totalorder %s18, 0
      %p148 = por %p146, %p147
      %p149 = scmp.ne.s32.totalorder %s138, %s141
      %p150 = scmp.eq.s32.totalorder %s23, 1
      %p151 = por %p149, %p150
      %p152 = scmp.ne.s32.totalorder %s141, %s142
      %p153 = scmp.eq.s32.totalorder %s23, 0
      %p154 = por %p152, %p153
      %p155 = scmp.ne.s32.totalorder %s141, %s142
      %p156 = scmp.eq.s32.totalorder %s24, 1
      %p157 = por %p155, %p156
      %p159 = scmp.ne.s32.totalorder %s142, %s158
      %p160 = scmp.eq.s32.totalorder %s24, 0
      %p161 = por %p159, %p160
      %p162 = scmp.le.s32.totalorder 1, %s18
      %p163 = scmp.lt.s32.totalorder %s18, 3
      %p164 = pnand %p162, %p163
      %p165 = pneg %p164
      // Predicated region
      $region9: #{tpu_custom_call.1} parent=5 // pred_check
        _
      $region10: #{tpu_custom_call.1} parent=5 // pred_check_branch
        %167 = sbr.rel (%p164) target = $region12
      $region11: #{tpu_custom_call.1} parent=5 // pred_region
        %s168 = ssub.s32 %s18, 1
        // Predicated region
        $region13: #{tpu_custom_call.1} parent=11 // pred_check
          %p169 = pneg %p65
        $region14: #{tpu_custom_call.1} parent=11 // pred_check_branch
          %171 = sbr.rel (%p169) target = $region16
        $region15: #{tpu_custom_call.1} parent=11 // pred_region
          %s173 = ssub.s32 256, 256
          %174 = vsyncadd [#allocation7], %s173
          %s175 = sshll.u32 [#allocation6], 4
          %s176 = int_to_ptr.vmem [resolvable:$true] %s175
          %181 = dma.hbm_to_vmem [thread:$0]  %s1, 256, %s176, [#allocation7], 64, 64, 4
        $region16: #{tpu_custom_call.1} parent=11 // pred_fallthru
          _
        // Predicated region
        $region17: #{tpu_custom_call.1} parent=11 // pred_check
          %p182 = pneg %p86
        $region18: #{tpu_custom_call.1} parent=11 // pred_check_branch
          %184 = sbr.rel (%p182) target = $region20
        $region19: #{tpu_custom_call.1} parent=11 // pred_region
          _
        $region20: #{tpu_custom_call.1} parent=11 // pred_fallthru
          _
        // Predicated region
        $region21: #{tpu_custom_call.1} parent=11 // pred_check
          %p185 = pneg %p107
        $region22: #{tpu_custom_call.1} parent=11 // pred_check_branch
          %187 = sbr.rel (%p185) target = $region24
        $region23: #{tpu_custom_call.1} parent=11 // pred_region
          %s189 = ssub.s32 256, 256
          %190 = vsyncadd [#allocation7], %s189
          %s191 = sshll.u32 [#allocation8], 4
          %s192 = int_to_ptr.vmem [resolvable:$true] %s191
          %197 = dma.hbm_to_vmem [thread:$0]  %s3, 256, %s192, [#allocation7], 64, 64, 4
        $region24: #{tpu_custom_call.1} parent=11 // pred_fallthru
          _
        // Predicated region
        $region25: #{tpu_custom_call.1} parent=11 // pred_check
          %p198 = pneg %p128
        $region26: #{tpu_custom_call.1} parent=11 // pred_check_branch
          %200 = sbr.rel (%p198) target = $region28
        $region27: #{tpu_custom_call.1} parent=11 // pred_region
          _
        $region28: #{tpu_custom_call.1} parent=11 // pred_fallthru
          _
      $region12: #{tpu_custom_call.1} parent=5 // pred_fallthru
        _
      %p201 = scmp.lt.s32.totalorder %s18, 2
      // Predicated region
      $region29: #{tpu_custom_call.1} parent=5 // pred_check
        %p202 = pneg %p201
      $region30: #{tpu_custom_call.1} parent=5 // pred_check_branch
        %204 = sbr.rel (%p202) target = $region32
      $region31: #{tpu_custom_call.1} parent=5 // pred_region
        // Predicated region
        $region33: #{tpu_custom_call.1} parent=31 // pred_check
          %p205 = pneg %p38
        $region34: #{tpu_custom_call.1} parent=31 // pred_check_branch
          %207 = sbr.rel (%p205) target = $region36
        $region35: #{tpu_custom_call.1} parent=31 // pred_region
          %s208 = sand.u32 %s28, 1
          %s209 = scalar_lea.sflag [#allocation4], %s208
          %s210 = sand.u32 %s28, 1
          %s211 = smul.addr %s210, 32
          %s212 = scalar_lea.vmem [#allocation3], %s211
          %s213 = smul.u32 4, %s18
          %s214 = ssub.s32 6, %s213
          %p215 = scmp.lt.s32.totalorder %s214, 4
          %s216 = scalar_select %p215, %s214, 4
          %s217 = smul.u32 128, %s216
          %s219 = ssub.s32 512, %s217
          %220 = vsyncadd %s209, %s219
          %p221 = scmp.ne.s32.totalorder 0, %s217
          %s222 = smul.addr %s213, 128
          %s223 = scalar_lea.hbm %s0, %s222
          %s224 = smul.u32 8, %s216
          %s225 = sshll.u32 %s212, 4
          %s226 = int_to_ptr.vmem [resolvable:$true] %s225
          %s227 = sshll.u32 %s224, 4
          %231 = dma.hbm_to_vmem [thread:$0]  (%p221), %s223, %s227, %s226, %s209, 128, 128, 8
        $region36: #{tpu_custom_call.1} parent=31 // pred_fallthru
          _
      $region32: #{tpu_custom_call.1} parent=5 // pred_fallthru
        _
      %p232 = scmp.le.s32.totalorder 1, %s18
      %p233 = scmp.lt.s32.totalorder %s18, 3
      %p234 = pnand %p232, %p233
      %p235 = pneg %p234
      // Predicated region
      $region37: #{tpu_custom_call.1} parent=5 // pred_check
        _
      $region38: #{tpu_custom_call.1} parent=5 // pred_check_branch
        %237 = sbr.rel (%p234) target = $region40
      $region39: #{tpu_custom_call.1} parent=5 // pred_region
        %s238 = ssub.s32 %s18, 1
        %s239 = sand.u32 %s31, 1
        %s240 = scalar_lea.sflag [#allocation4], %s239
        %s241 = sand.u32 %s31, 1
        %s242 = smul.addr %s241, 32
        %s243 = scalar_lea.vmem [#allocation3], %s242
        // Predicated region
        $region41: #{tpu_custom_call.1} parent=39 // pred_check
          %p244 = pneg %p44
        $region42: #{tpu_custom_call.1} parent=39 // pred_check_branch
          %246 = sbr.rel (%p244) target = $region44
        $region43: #{tpu_custom_call.1} parent=39 // pred_region
          %247 = dma.done %s240, 512
        $region44: #{tpu_custom_call.1} parent=39 // pred_fallthru
          _
        // Predicated region
        $region45: #{tpu_custom_call.1} parent=39 // pred_check
          %p248 = pneg %p65
        $region46: #{tpu_custom_call.1} parent=39 // pred_check_branch
          %250 = sbr.rel (%p248) target = $region48
        $region47: #{tpu_custom_call.1} parent=39 // pred_region
          %251 = dma.done [#allocation7], 256
        $region48: #{tpu_custom_call.1} parent=39 // pred_fallthru
          _
        // Predicated region
        $region49: #{tpu_custom_call.1} parent=39 // pred_check
          %p252 = pneg %p107
        $region50: #{tpu_custom_call.1} parent=39 // pred_check_branch
          %254 = sbr.rel (%p252) target = $region52
        $region51: #{tpu_custom_call.1} parent=39 // pred_region
          %255 = dma.done [#allocation7], 256
        $region52: #{tpu_custom_call.1} parent=39 // pred_fallthru
          _
        %s256 = sand.u32 %s31, 1
        %s257 = scalar_lea.sflag [#allocation4], %s256
        %s258 = sand.u32 %s31, 1
        %s259 = smul.addr %s258, 32
        %s260 = scalar_lea.vmem [#allocation3], %s259
        %p261 = pneg %p44
        %p262 = pneg %p41
        %p263 = pneg %p65
        %p264 = pneg %p62
        %p265 = pneg %p86
        %p266 = pneg %p83
        %p267 = pneg %p107
        %p268 = pneg %p104
        %p269 = pneg %p128
        %p270 = pneg %p125
        %p271 = pneg %p154
        %p272 = pneg %p151
        %s273 = sand.u32 %s141, 1
        %s274 = scalar_lea.sflag [#allocation5], %s273
        %s275 = sand.u32 %s141, 1
        %s276 = smul.addr %s275, 32
        %s277 = scalar_lea.vmem [#allocation9], %s276
        %s278 = smul.u32 4, %s23
        %s279 = ssub.s32 6, %s278
        %p280 = scmp.lt.s32.totalorder %s279, 4
        %s281 = scalar_select %p280, %s279, 4
        %s282 = smul.u32 128, %s281
        %s283 = smul.u32 4, %s23
        %s284 = ssub.s32 6, %s283
        %p285 = scmp.lt.s32.totalorder %s284, 4
        %s286 = scalar_select %p285, %s284, 4
        %s287 = smul.u32 128, %s286
        %v289 = vld [vmem:[%s243] sm:$0xff]
        %v290 = vld [vmem:[%s243 + $0x8] sm:$0xff]
        %v291 = vld [vmem:[%s243 + $0x10] sm:$0xff]
        %v292 = vld [vmem:[%s243 + $0x18] sm:$0xff]
        %v293 = vpack.c.bf16 %v290, %v289
        %v294 = vpack.c.bf16 %v292, %v291
        %v295 = vld [vmem:[#allocation6] sm:$0xf]
        %v296 = vld [vmem:[#allocation6 + $0x4] sm:$0xf]
        %v297 = vld [vmem:[#allocation6 + $0x8] sm:$0xf]
        %v298 = vld [vmem:[#allocation6 + $0xc] sm:$0xf]
        %v299 = vld [vmem:[%s2] sm:$0x1]
        %v301 = vlaneseq
        %v302 = vshrl.u32 %v301, 7
        %v303 = vsub.s32 0, %v302
        %v304 = vrot.slane %v299, %v303
        %v310 = vunpack.c.l.b16 %v295
        %v311 = vunpack.c.l.b16 %v296
        %v312 = vunpack.c.l.b16 %v297
        %v313 = vunpack.c.l.b16 %v298
        %v314 = vpack.c.b16 %v311, %v310
        %v315 = vpack.c.b16 %v313, %v312
        %vm318 = vcmask 261120
        %v320 = vsel %vm318, %v293, 0
        %v323 = vsel %vm318, %v294, 0
        %325 = vmatprep.subr.bf16.mxu0 0
        %326 = vmatpush1.bf16.msra.mxu0 %v314
        %327 = vmatprep.subr.bf16.mxu0 0
        %328 = vmatpush1.bf16.msra.mxu0 %v315
        %329 = vmatprep.subr.bf16.mxu0 0
        %330 = vmatpush1.bf16.msra.mxu0 0
        %331 = vmatprep.subr.bf16.mxu0 0
        %332 = vmatpush1.bf16.msra.mxu0 0
        %333 = vmatprep.subr.bf16.mxu0 0
        %334 = vmatpush1.bf16.msra.mxu0 0
        %335 = vmatprep.subr.bf16.mxu0 0
        %336 = vmatpush1.bf16.msra.mxu0 0
        %337 = vmatprep.subr.bf16.mxu0 0
        %338 = vmatpush1.bf16.msra.mxu0 0
        %339 = vmatprep.subr.bf16.mxu0 0
        %340 = vmatpush1.bf16.msra.mxu0 0
        %341 = vmatprep.subr.bf16.mxu0 0
        %342 = vmatpush1.bf16.msra.mxu0 0
        %343 = vmatprep.subr.bf16.mxu0 0
        %344 = vmatpush1.bf16.msra.mxu0 0
        %345 = vmatprep.subr.bf16.mxu0 0
        %346 = vmatpush1.bf16.msra.mxu0 0
        %347 = vmatprep.subr.bf16.mxu0 0
        %348 = vmatpush1.bf16.msra.mxu0 0
        %349 = vmatprep.subr.bf16.mxu0 0
        %350 = vmatpush1.bf16.msra.mxu0 0
        %351 = vmatprep.subr.bf16.mxu0 0
        %352 = vmatpush1.bf16.msra.mxu0 0
        %353 = vmatprep.subr.bf16.mxu0 0
        %354 = vmatpush1.bf16.msra.mxu0 0
        %355 = vmatprep.subr.bf16.mxu0 0
        %356 = vmatpush1.bf16.msra.mxu0 0
        %357 = vmatprep.mubr.bf16.mxu0 0
        %358 = vmatmul.mubr.bf16.gmra.mrb[0].mxu0 %v320
        %v359 = vpop.f32.mrb[0].mxu0
        %v360 = vadd.f32 %v304, %v359
        %v361 = vpop.f32.mrb[0].mxu0
        %v362 = vpop.f32.mrb[0].mxu0
        %v363 = vadd.f32 %v304, %v362
        %v364 = vpop.f32.mrb[0].mxu0
        %365 = vmatprep.mubr.bf16.mxu0 0
        %366 = vmatmul.mubr.bf16.gmra.mrb[0].mxu0 %v323
        %v367 = vpop.f32.mrb[0].mxu0
        %v368 = vadd.f32 %v304, %v367
        %v369 = vpop.f32.mrb[0].mxu0
        %v370 = vpop.f32.mrb[0].mxu0
        %v371 = vadd.f32 %v304, %v370
        %v372 = vpop.f32.mrb[0].mxu0
        %373 = vdwg.mxu0
        %v374 = vpack.c.bf16 %v363, %v360
        %v375 = vpack.c.bf16 %v371, %v368
        %v376 = vlaneseq
        %v377 = vshrl.u32 %v376, 7
        %v378 = vlaneseq
        %v379 = vand.u32 %v378, 127
        %vm380 = vcmp.le.s32.totalorder %v379, %v377
        %v383 = vunpack.c.l.b16 %v374
        %v384 = vunpack.c.h.b16 %v374
        %v385 = vunpack.c.l.b16 %v375
        %v386 = vunpack.c.h.b16 %v375
        %v387 = vpack.c.b16 %v383, %v383
        %v388 = vpack.c.b16 %v384, %v384
        %v389 = vpack.c.b16 %v385, %v385
        %v390 = vpack.c.b16 %v386, %v386
        %391 = vrot.lane.b32.xlu0 %v387, 96
        %v392 = vpop.permute.xlu0 %391
        %vm393 = vcmask 64512
        %v395 = vsel %vm393, %v387, 0
        %v398 = vsel %vm393, %v392, 0
        %400 = vmatprep.subr.bf16.mxu0 0
        %401 = vmatpush1.bf16.xpose.msra.mxu0 %v398
        %402 = vmatprep.subr.bf16.mxu0 0
        %403 = vmatpush1.bf16.xpose.msra.mxu0 0
        %404 = vmatprep.subr.bf16.mxu0 0
        %405 = vmatpush1.bf16.xpose.msra.mxu0 0
        %406 = vmatprep.subr.bf16.mxu0 0
        %407 = vmatpush1.bf16.xpose.msra.mxu0 0
        %408 = vmatprep.subr.bf16.mxu0 0
        %409 = vmatpush1.bf16.xpose.msra.mxu0 0
        %410 = vmatprep.subr.bf16.mxu0 0
        %411 = vmatpush1.bf16.xpose.msra.mxu0 0
        %412 = vmatprep.subr.bf16.mxu0 0
        %413 = vmatpush1.bf16.xpose.msra.mxu0 0
        %414 = vmatprep.subr.bf16.mxu0 0
        %415 = vmatpush1.bf16.xpose.msra.mxu0 0
        %416 = vmatprep.subr.bf16.mxu0 0
        %417 = vmatpush1.bf16.xpose.msra.mxu0 0
        %418 = vmatprep.subr.bf16.mxu0 0
        %419 = vmatpush1.bf16.xpose.msra.mxu0 0
        %420 = vmatprep.subr.bf16.mxu0 0
        %421 = vmatpush1.bf16.xpose.msra.mxu0 0
        %422 = vmatprep.subr.bf16.mxu0 0
        %423 = vmatpush1.bf16.xpose.msra.mxu0 0
        %424 = vmatprep.subr.bf16.mxu0 0
        %425 = vmatpush1.bf16.xpose.msra.mxu0 0
        %426 = vmatprep.subr.bf16.mxu0 0
        %427 = vmatpush1.bf16.xpose.msra.mxu0 0
        %428 = vmatprep.subr.bf16.mxu0 0
        %429 = vmatpush1.bf16.xpose.msra.mxu0 0
        %430 = vmatprep.subr.bf16.mxu0 0
        %431 = vmatpush1.bf16.xpose.msra.mxu0 0
        %432 = vmatprep.mubr.bf16.mxu0 0
        %433 = vmatmul.mubr.bf16.gmra.mrb[0].mxu0 %v395
        %v434 = vpop.f32.mrb[0].mxu0
        %v435 = vadd.f32 0.0, %v434
        %v436 = vpop.f32.mrb[0].mxu0
        %v437 = vpop.f32.mrb[0].mxu0
        %v438 = vpop.f32.mrb[0].mxu0
        %439 = vdwg.mxu0
        %440 = vrot.lane.b32.xlu0 %v388, 96
        %v441 = vpop.permute.xlu0 %440
        %v443 = vsel %vm393, %v388, 0
        %v446 = vsel %vm393, %v441, 0
        %448 = vmatprep.subr.bf16.mxu0 0
        %449 = vmatpush1.bf16.xpose.msra.mxu0 %v446
        %450 = vmatprep.subr.bf16.mxu0 0
        %451 = vmatpush1.bf16.xpose.msra.mxu0 0
        %452 = vmatprep.subr.bf16.mxu0 0
        %453 = vmatpush1.bf16.xpose.msra.mxu0 0
        %454 = vmatprep.subr.bf16.mxu0 0
        %455 = vmatpush1.bf16.xpose.msra.mxu0 0
        %456 = vmatprep.subr.bf16.mxu0 0
        %457 = vmatpush1.bf16.xpose.msra.mxu0 0
        %458 = vmatprep.subr.bf16.mxu0 0
        %459 = vmatpush1.bf16.xpose.msra.mxu0 0
        %460 = vmatprep.subr.bf16.mxu0 0
        %461 = vmatpush1.bf16.xpose.msra.mxu0 0
        %462 = vmatprep.subr.bf16.mxu0 0
        %463 = vmatpush1.bf16.xpose.msra.mxu0 0
        %464 = vmatprep.subr.bf16.mxu0 0
        %465 = vmatpush1.bf16.xpose.msra.mxu0 0
        %466 = vmatprep.subr.bf16.mxu0 0
        %467 = vmatpush1.bf16.xpose.msra.mxu0 0
        %468 = vmatprep.subr.bf16.mxu0 0
        %469 = vmatpush1.bf16.xpose.msra.mxu0 0
        %470 = vmatprep.subr.bf16.mxu0 0
        %471 = vmatpush1.bf16.xpose.msra.mxu0 0
        %472 = vmatprep.subr.bf16.mxu0 0
        %473 = vmatpush1.bf16.xpose.msra.mxu0 0
        %474 = vmatprep.subr.bf16.mxu0 0
        %475 = vmatpush1.bf16.xpose.msra.mxu0 0
        %476 = vmatprep.subr.bf16.mxu0 0
        %477 = vmatpush1.bf16.xpose.msra.mxu0 0
        %478 = vmatprep.subr.bf16.mxu0 0
        %479 = vmatpush1.bf16.xpose.msra.mxu0 0
        %480 = vmatprep.mubr.bf16.mxu0 0
        %481 = vmatmul.mubr.bf16.gmra.mrb[0].mxu0 %v443
        %v482 = vpop.f32.mrb[0].mxu0
        %v483 = vadd.f32 0.0, %v482
        %v484 = vpop.f32.mrb[0].mxu0
        %v485 = vpop.f32.mrb[0].mxu0
        %v486 = vpop.f32.mrb[0].mxu0
        %487 = vdwg.mxu0
        %488 = vrot.lane.b32.xlu0 %v389, 96
        %v489 = vpop.permute.xlu0 %488
        %v491 = vsel %vm393, %v389, 0
        %v494 = vsel %vm393, %v489, 0
        %496 = vmatprep.subr.bf16.mxu0 0
        %497 = vmatpush1.bf16.xpose.msra.mxu0 %v494
        %498 = vmatprep.subr.bf16.mxu0 0
        %499 = vmatpush1.bf16.xpose.msra.mxu0 0
        %500 = vmatprep.subr.bf16.mxu0 0
        %501 = vmatpush1.bf16.xpose.msra.mxu0 0
        %502 = vmatprep.subr.bf16.mxu0 0
        %503 = vmatpush1.bf16.xpose.msra.mxu0 0
        %504 = vmatprep.subr.bf16.mxu0 0
        %505 = vmatpush1.bf16.xpose.msra.mxu0 0
        %506 = vmatprep.subr.bf16.mxu0 0
        %507 = vmatpush1.bf16.xpose.msra.mxu0 0
        %508 = vmatprep.subr.bf16.mxu0 0
        %509 = vmatpush1.bf16.xpose.msra.mxu0 0
        %510 = vmatprep.subr.bf16.mxu0 0
        %511 = vmatpush1.bf16.xpose.msra.mxu0 0
        %512 = vmatprep.subr.bf16.mxu0 0
        %513 = vmatpush1.bf16.xpose.msra.mxu0 0
        %514 = vmatprep.subr.bf16.mxu0 0
        %515 = vmatpush1.bf16.xpose.msra.mxu0 0
        %516 = vmatprep.subr.bf16.mxu0 0
        %517 = vmatpush1.bf16.xpose.msra.mxu0 0
        %518 = vmatprep.subr.bf16.mxu0 0
        %519 = vmatpush1.bf16.xpose.msra.mxu0 0
        %520 = vmatprep.subr.bf16.mxu0 0
        %521 = vmatpush1.bf16.xpose.msra.mxu0 0
        %522 = vmatprep.subr.bf16.mxu0 0
        %523 = vmatpush1.bf16.xpose.msra.mxu0 0
        %524 = vmatprep.subr.bf16.mxu0 0
        %525 = vmatpush1.bf16.xpose.msra.mxu0 0
        %526 = vmatprep.subr.bf16.mxu0 0
        %527 = vmatpush1.bf16.xpose.msra.mxu0 0
        %528 = vmatprep.mubr.bf16.mxu0 0
        %529 = vmatmul.mubr.bf16.gmra.mrb[0].mxu0 %v491
        %v530 = vpop.f32.mrb[0].mxu0
        %v531 = vadd.f32 0.0, %v530
        %v532 = vpop.f32.mrb[0].mxu0
        %v533 = vpop.f32.mrb[0].mxu0
        %v534 = vpop.f32.mrb[0].mxu0
        %535 = vdwg.mxu0
        %536 = vrot.lane.b32.xlu0 %v390, 96
        %v537 = vpop.permute.xlu0 %536
        %v539 = vsel %vm393, %v390, 0
        %v542 = vsel %vm393, %v537, 0
        %544 = vmatprep.subr.bf16.mxu0 0
        %545 = vmatpush1.bf16.xpose.msra.mxu0 %v542
        %546 = vmatprep.subr.bf16.mxu0 0
        %547 = vmatpush1.bf16.xpose.msra.mxu0 0
        %548 = vmatprep.subr.bf16.mxu0 0
        %549 = vmatpush1.bf16.xpose.msra.mxu0 0
        %550 = vmatprep.subr.bf16.mxu0 0
        %551 = vmatpush1.bf16.xpose.msra.mxu0 0
        %552 = vmatprep.subr.bf16.mxu0 0
        %553 = vmatpush1.bf16.xpose.msra.mxu0 0
        %554 = vmatprep.subr.bf16.mxu0 0
        %555 = vmatpush1.bf16.xpose.msra.mxu0 0
        %556 = vmatprep.subr.bf16.mxu0 0
        %557 = vmatpush1.bf16.xpose.msra.mxu0 0
        %558 = vmatprep.subr.bf16.mxu0 0
        %559 = vmatpush1.bf16.xpose.msra.mxu0 0
        %560 = vmatprep.subr.bf16.mxu0 0
        %561 = vmatpush1.bf16.xpose.msra.mxu0 0
        %562 = vmatprep.subr.bf16.mxu0 0
        %563 = vmatpush1.bf16.xpose.msra.mxu0 0
        %564 = vmatprep.subr.bf16.mxu0 0
        %565 = vmatpush1.bf16.xpose.msra.mxu0 0
        %566 = vmatprep.subr.bf16.mxu0 0
        %567 = vmatpush1.bf16.xpose.msra.mxu0 0
        %568 = vmatprep.subr.bf16.mxu0 0
        %569 = vmatpush1.bf16.xpose.msra.mxu0 0
        %570 = vmatprep.subr.bf16.mxu0 0
        %571 = vmatpush1.bf16.xpose.msra.mxu0 0
        %572 = vmatprep.subr.bf16.mxu0 0
        %573 = vmatpush1.bf16.xpose.msra.mxu0 0
        %574 = vmatprep.subr.bf16.mxu0 0
        %575 = vmatpush1.bf16.xpose.msra.mxu0 0
        %576 = vmatprep.mubr.bf16.mxu0 0
        %577 = vmatmul.mubr.bf16.gmra.mrb[0].mxu0 %v539
        %v578 = vpop.f32.mrb[0].mxu0
        %v579 = vadd.f32 0.0, %v578
        %v580 = vpop.f32.mrb[0].mxu0
        %v581 = vpop.f32.mrb[0].mxu0
        %v582 = vpop.f32.mrb[0].mxu0
        %583 = vdwg.mxu0
        %v584 = vsel %vm380, 1, 0
        %vm585 = vcmp.eq.s32.totalorder %v584, 1
        %v586 = vsel %vm585, %v435, -1e+30
        %v587 = vsel %vm585, %v483, -1e+30
        %v588 = vsel %vm585, %v531, -1e+30
        %v589 = vsel %vm585, %v579, -1e+30
        %v590 = vsel %vm393, %v586, -inf
        %591 = vmax.xlane.f32.xlu0 %v590
        %v592 = vpop.xlane.xlu0 %591
        %v593 = vsel %vm393, %v587, -inf
        %594 = vmax.xlane.f32.xlu0 %v593
        %v595 = vpop.xlane.xlu0 %594
        %v596 = vsel %vm393, %v588, -inf
        %597 = vmax.xlane.f32.xlu0 %v596
        %v598 = vpop.xlane.xlu0 %597
        %v599 = vsel %vm393, %v589, -inf
        %600 = vmax.xlane.f32.xlu0 %v599
        %v601 = vpop.xlane.xlu0 %600
        %v602 = vsub.f32 %v586, %v592
        %v603 = vsub.f32 %v587, %v595
        %v604 = vsub.f32 %v588, %v598
        %v605 = vsub.f32 %v589, %v601
        %v606 = vmul.f32 %v602, 1.442695
        %v607 = vpow.pop %v606
        %v608 = vmul.f32 %v603, 1.442695
        %v609 = vpow.pop %v608
        %v610 = vmul.f32 %v604, 1.442695
        %v611 = vpow.pop %v610
        %v612 = vmul.f32 %v605, 1.442695
        %v613 = vpow.pop %v612
        %v614 = vsel %vm393, %v607, 0.0
        %615 = vadd.xlane.f32.xlu0 %v614
        %v616 = vpop.xlane.xlu0 %615
        %v617 = vsel %vm393, %v609, 0.0
        %618 = vadd.xlane.f32.xlu0 %v617
        %v619 = vpop.xlane.xlu0 %618
        %v620 = vsel %vm393, %v611, 0.0
        %621 = vadd.xlane.f32.xlu0 %v620
        %v622 = vpop.xlane.xlu0 %621
        %v623 = vsel %vm393, %v613, 0.0
        %624 = vadd.xlane.f32.xlu0 %v623
        %v625 = vpop.xlane.xlu0 %624
        %v626 = vrcp.pop %v616
        %v627 = vrcp.pop %v619
        %v628 = vrcp.pop %v622
        %v629 = vrcp.pop %v625
        %v630 = vmul.f32 %v607, %v626
        %v631 = vmul.f32 %v609, %v627
        %v632 = vmul.f32 %v611, %v628
        %v633 = vmul.f32 %v613, %v629
        %v634 = vpack.c.bf16 %v630, %v630
        %v635 = vpack.c.bf16 %v631, %v631
        %v636 = vpack.c.bf16 %v632, %v632
        %v637 = vpack.c.bf16 %v633, %v633
        %638 = vrot.lane.b32.xlu0 %v387, 64
        %v639 = vpop.permute.xlu0 %638
        %v641 = vsel %vm393, %v634, 0
        %vm643 = vcmask 1043456
        %v645 = vsel %vm643, %v639, 0
        %647 = vmatprep.subr.bf16.mxu0 0
        %648 = vmatpush1.bf16.msra.mxu0 %v645
        %649 = vmatprep.subr.bf16.mxu0 0
        %650 = vmatpush1.bf16.msra.mxu0 0
        %651 = vmatprep.subr.bf16.mxu0 0
        %652 = vmatpush1.bf16.msra.mxu0 0
        %653 = vmatprep.subr.bf16.mxu0 0
        %654 = vmatpush1.bf16.msra.mxu0 0
        %655 = vmatprep.subr.bf16.mxu0 0
        %656 = vmatpush1.bf16.msra.mxu0 0
        %657 = vmatprep.subr.bf16.mxu0 0
        %658 = vmatpush1.bf16.msra.mxu0 0
        %659 = vmatprep.subr.bf16.mxu0 0
        %660 = vmatpush1.bf16.msra.mxu0 0
        %661 = vmatprep.subr.bf16.mxu0 0
        %662 = vmatpush1.bf16.msra.mxu0 0
        %663 = vmatprep.subr.bf16.mxu0 0
        %664 = vmatpush1.bf16.msra.mxu0 0
        %665 = vmatprep.subr.bf16.mxu0 0
        %666 = vmatpush1.bf16.msra.mxu0 0
        %667 = vmatprep.subr.bf16.mxu0 0
        %668 = vmatpush1.bf16.msra.mxu0 0
        %669 = vmatprep.subr.bf16.mxu0 0
        %670 = vmatpush1.bf16.msra.mxu0 0
        %671 = vmatprep.subr.bf16.mxu0 0
        %672 = vmatpush1.bf16.msra.mxu0 0
        %673 = vmatprep.subr.bf16.mxu0 0
        %674 = vmatpush1.bf16.msra.mxu0 0
        %675 = vmatprep.subr.bf16.mxu0 0
        %676 = vmatpush1.bf16.msra.mxu0 0
        %677 = vmatprep.subr.bf16.mxu0 0
        %678 = vmatpush1.bf16.msra.mxu0 0
        %679 = vmatprep.mubr.bf16.mxu0 0
        %680 = vmatmul.mubr.bf16.gmra.mrb[0].mxu0 %v641
        %v681 = vpop.f32.mrb[0].mxu0
        %v682 = vadd.f32 0.0, %v681
        %v683 = vpop.f32.mrb[0].mxu0
        %v684 = vpop.f32.mrb[0].mxu0
        %v685 = vpop.f32.mrb[0].mxu0
        %686 = vdwg.mxu0
        %687 = vrot.lane.b32.xlu0 %v388, 64
        %v688 = vpop.permute.xlu0 %687
        %v690 = vsel %vm393, %v635, 0
        %v693 = vsel %vm643, %v688, 0
        %695 = vmatprep.subr.bf16.mxu0 0
        %696 = vmatpush1.bf16.msra.mxu0 %v693
        %697 = vmatprep.subr.bf16.mxu0 0
        %698 = vmatpush1.bf16.msra.mxu0 0
        %699 = vmatprep.subr.bf16.mxu0 0
        %700 = vmatpush1.bf16.msra.mxu0 0
        %701 = vmatprep.subr.bf16.mxu0 0
        %702 = vmatpush1.bf16.msra.mxu0 0
        %703 = vmatprep.subr.bf16.mxu0 0
        %704 = vmatpush1.bf16.msra.mxu0 0
        %705 = vmatprep.subr.bf16.mxu0 0
        %706 = vmatpush1.bf16.msra.mxu0 0
        %707 = vmatprep.subr.bf16.mxu0 0
        %708 = vmatpush1.bf16.msra.mxu0 0
        %709 = vmatprep.subr.bf16.mxu0 0
        %710 = vmatpush1.bf16.msra.mxu0 0
        %711 = vmatprep.subr.bf16.mxu0 0
        %712 = vmatpush1.bf16.msra.mxu0 0
        %713 = vmatprep.subr.bf16.mxu0 0
        %714 = vmatpush1.bf16.msra.mxu0 0
        %715 = vmatprep.subr.bf16.mxu0 0
        %716 = vmatpush1.bf16.msra.mxu0 0
        %717 = vmatprep.subr.bf16.mxu0 0
        %718 = vmatpush1.bf16.msra.mxu0 0
        %719 = vmatprep.subr.bf16.mxu0 0
        %720 = vmatpush1.bf16.msra.mxu0 0
        %721 = vmatprep.subr.bf16.mxu0 0
        %722 = vmatpush1.bf16.msra.mxu0 0
        %723 = vmatprep.subr.bf16.mxu0 0
        %724 = vmatpush1.bf16.msra.mxu0 0
        %725 = vmatprep.subr.bf16.mxu0 0
        %726 = vmatpush1.bf16.msra.mxu0 0
        %727 = vmatprep.mubr.bf16.mxu0 0
        %728 = vmatmul.mubr.bf16.gmra.mrb[0].mxu0 %v690
        %v729 = vpop.f32.mrb[0].mxu0
        %v730 = vadd.f32 0.0, %v729
        %v731 = vpop.f32.mrb[0].mxu0
        %v732 = vpop.f32.mrb[0].mxu0
        %v733 = vpop.f32.mrb[0].mxu0
        %734 = vdwg.mxu0
        %735 = vrot.lane.b32.xlu0 %v389, 64
        %v736 = vpop.permute.xlu0 %735
        %v738 = vsel %vm393, %v636, 0
        %v741 = vsel %vm643, %v736, 0
        %743 = vmatprep.subr.bf16.mxu0 0
        %744 = vmatpush1.bf16.msra.mxu0 %v741
        %745 = vmatprep.subr.bf16.mxu0 0
        %746 = vmatpush1.bf16.msra.mxu0 0
        %747 = vmatprep.subr.bf16.mxu0 0
        %748 = vmatpush1.bf16.msra.mxu0 0
        %749 = vmatprep.subr.bf16.mxu0 0
        %750 = vmatpush1.bf16.msra.mxu0 0
        %751 = vmatprep.subr.bf16.mxu0 0
        %752 = vmatpush1.bf16.msra.mxu0 0
        %753 = vmatprep.subr.bf16.mxu0 0
        %754 = vmatpush1.bf16.msra.mxu0 0
        %755 = vmatprep.subr.bf16.mxu0 0
        %756 = vmatpush1.bf16.msra.mxu0 0
        %757 = vmatprep.subr.bf16.mxu0 0
        %758 = vmatpush1.bf16.msra.mxu0 0
        %759 = vmatprep.subr.bf16.mxu0 0
        %760 = vmatpush1.bf16.msra.mxu0 0
        %761 = vmatprep.subr.bf16.mxu0 0
        %762 = vmatpush1.bf16.msra.mxu0 0
        %763 = vmatprep.subr.bf16.mxu0 0
        %764 = vmatpush1.bf16.msra.mxu0 0
        %765 = vmatprep.subr.bf16.mxu0 0
        %766 = vmatpush1.bf16.msra.mxu0 0
        %767 = vmatprep.subr.bf16.mxu0 0
        %768 = vmatpush1.bf16.msra.mxu0 0
        %769 = vmatprep.subr.bf16.mxu0 0
        %770 = vmatpush1.bf16.msra.mxu0 0
        %771 = vmatprep.subr.bf16.mxu0 0
        %772 = vmatpush1.bf16.msra.mxu0 0
        %773 = vmatprep.subr.bf16.mxu0 0
        %774 = vmatpush1.bf16.msra.mxu0 0
        %775 = vmatprep.mubr.bf16.mxu0 0
        %776 = vmatmul.mubr.bf16.gmra.mrb[0].mxu0 %v738
        %v777 = vpop.f32.mrb[0].mxu0
        %v778 = vadd.f32 0.0, %v777
        %v779 = vpop.f32.mrb[0].mxu0
        %v780 = vpop.f32.mrb[0].mxu0
        %v781 = vpop.f32.mrb[0].mxu0
        %782 = vdwg.mxu0
        %783 = vrot.lane.b32.xlu0 %v390, 64
        %v784 = vpop.permute.xlu0 %783
        %v786 = vsel %vm393, %v637, 0
        %v789 = vsel %vm643, %v784, 0
        %791 = vmatprep.subr.bf16.mxu0 0
        %792 = vmatpush1.bf16.msra.mxu0 %v789
        %793 = vmatprep.subr.bf16.mxu0 0
        %794 = vmatpush1.bf16.msra.mxu0 0
        %795 = vmatprep.subr.bf16.mxu0 0
        %796 = vmatpush1.bf16.msra.mxu0 0
        %797 = vmatprep.subr.bf16.mxu0 0
        %798 = vmatpush1.bf16.msra.mxu0 0
        %799 = vmatprep.subr.bf16.mxu0 0
        %800 = vmatpush1.bf16.msra.mxu0 0
        %801 = vmatprep.subr.bf16.mxu0 0
        %802 = vmatpush1.bf16.msra.mxu0 0
        %803 = vmatprep.subr.bf16.mxu0 0
        %804 = vmatpush1.bf16.msra.mxu0 0
        %805 = vmatprep.subr.bf16.mxu0 0
        %806 = vmatpush1.bf16.msra.mxu0 0
        %807 = vmatprep.subr.bf16.mxu0 0
        %808 = vmatpush1.bf16.msra.mxu0 0
        %809 = vmatprep.subr.bf16.mxu0 0
        %810 = vmatpush1.bf16.msra.mxu0 0
        %811 = vmatprep.subr.bf16.mxu0 0
        %812 = vmatpush1.bf16.msra.mxu0 0
        %813 = vmatprep.subr.bf16.mxu0 0
        %814 = vmatpush1.bf16.msra.mxu0 0
        %815 = vmatprep.subr.bf16.mxu0 0
        %816 = vmatpush1.bf16.msra.mxu0 0
        %817 = vmatprep.subr.bf16.mxu0 0
        %818 = vmatpush1.bf16.msra.mxu0 0
        %819 = vmatprep.subr.bf16.mxu0 0
        %820 = vmatpush1.bf16.msra.mxu0 0
        %821 = vmatprep.subr.bf16.mxu0 0
        %822 = vmatpush1.bf16.msra.mxu0 0
        %823 = vmatprep.mubr.bf16.mxu0 0
        %824 = vmatmul.mubr.bf16.gmra.mrb[0].mxu0 %v786
        %v825 = vpop.f32.mrb[0].mxu0
        %v826 = vadd.f32 0.0, %v825
        %v827 = vpop.f32.mrb[0].mxu0
        %v828 = vpop.f32.mrb[0].mxu0
        %v829 = vpop.f32.mrb[0].mxu0
        %830 = vdwg.mxu0
        %v831 = vpack.c.bf16 %v730, %v682
        %v832 = vpack.c.bf16 %v826, %v778
        %833 = vst.msk [vmem:[#allocation2] sm:$0xff] %vm393, %v831
        %834 = vst.msk [vmem:[#allocation2 + $0x8] sm:$0xff] %vm393, %v832
        %835 = vrot.lane.b32.xlu0 %v387, 120
        %v836 = vpop.permute.xlu0 %835
        %837 = vrot.lane.b32.xlu0 %v387, 88
        %v838 = vpop.permute.xlu0 %837
        %v840 = vsel %vm393, %v836, 0
        %v843 = vsel %vm393, %v838, 0
        %845 = vmatprep.subr.bf16.mxu0 0
        %846 = vmatpush1.bf16.xpose.msra.mxu0 %v843
        %847 = vmatprep.subr.bf16.mxu0 0
        %848 = vmatpush1.bf16.xpose.msra.mxu0 0
        %849 = vmatprep.subr.bf16.mxu0 0
        %850 = vmatpush1.bf16.xpose.msra.mxu0 0
        %851 = vmatprep.subr.bf16.mxu0 0
        %852 = vmatpush1.bf16.xpose.msra.mxu0 0
        %853 = vmatprep.subr.bf16.mxu0 0
        %854 = vmatpush1.bf16.xpose.msra.mxu0 0
        %855 = vmatprep.subr.bf16.mxu0 0
        %856 = vmatpush1.bf16.xpose.msra.mxu0 0
        %857 = vmatprep.subr.bf16.mxu0 0
        %858 = vmatpush1.bf16.xpose.msra.mxu0 0
        %859 = vmatprep.subr.bf16.mxu0 0
        %860 = vmatpush1.bf16.xpose.msra.mxu0 0
        %861 = vmatprep.subr.bf16.mxu0 0
        %862 = vmatpush1.bf16.xpose.msra.mxu0 0
        %863 = vmatprep.subr.bf16.mxu0 0
        %864 = vmatpush1.bf16.xpose.msra.mxu0 0
        %865 = vmatprep.subr.bf16.mxu0 0
        %866 = vmatpush1.bf16.xpose.msra.mxu0 0
        %867 = vmatprep.subr.bf16.mxu0 0
        %868 = vmatpush1.bf16.xpose.msra.mxu0 0
        %869 = vmatprep.subr.bf16.mxu0 0
        %870 = vmatpush1.bf16.xpose.msra.mxu0 0
        %871 = vmatprep.subr.bf16.mxu0 0
        %872 = vmatpush1.bf16.xpose.msra.mxu0 0
        %873 = vmatprep.subr.bf16.mxu0 0
        %874 = vmatpush1.bf16.xpose.msra.mxu0 0
        %875 = vmatprep.subr.bf16.mxu0 0
        %876 = vmatpush1.bf16.xpose.msra.mxu0 0
        %877 = vmatprep.mubr.bf16.mxu0 0
        %878 = vmatmul.mubr.bf16.gmra.mrb[0].mxu0 %v840
        %v879 = vpop.f32.mrb[0].mxu0
        %v880 = vadd.f32 0.0, %v879
        %v881 = vpop.f32.mrb[0].mxu0
        %v882 = vpop.f32.mrb[0].mxu0
        %v883 = vpop.f32.mrb[0].mxu0
        %884 = vdwg.mxu0
        %885 = vrot.lane.b32.xlu0 %v388, 120
        %v886 = vpop.permute.xlu0 %885
        %887 = vrot.lane.b32.xlu0 %v388, 88
        %v888 = vpop.permute.xlu0 %887
        %v890 = vsel %vm393, %v886, 0
        %v893 = vsel %vm393, %v888, 0
        %895 = vmatprep.subr.bf16.mxu0 0
        %896 = vmatpush1.bf16.xpose.msra.mxu0 %v893
        %897 = vmatprep.subr.bf16.mxu0 0
        %898 = vmatpush1.bf16.xpose.msra.mxu0 0
        %899 = vmatprep.subr.bf16.mxu0 0
        %900 = vmatpush1.bf16.xpose.msra.mxu0 0
        %901 = vmatprep.subr.bf16.mxu0 0
        %902 = vmatpush1.bf16.xpose.msra.mxu0 0
        %903 = vmatprep.subr.bf16.mxu0 0
        %904 = vmatpush1.bf16.xpose.msra.mxu0 0
        %905 = vmatprep.subr.bf16.mxu0 0
        %906 = vmatpush1.bf16.xpose.msra.mxu0 0
        %907 = vmatprep.subr.bf16.mxu0 0
        %908 = vmatpush1.bf16.xpose.msra.mxu0 0
        %909 = vmatprep.subr.bf16.mxu0 0
        %910 = vmatpush1.bf16.xpose.msra.mxu0 0
        %911 = vmatprep.subr.bf16.mxu0 0
        %912 = vmatpush1.bf16.xpose.msra.mxu0 0
        %913 = vmatprep.subr.bf16.mxu0 0
        %914 = vmatpush1.bf16.xpose.msra.mxu0 0
        %915 = vmatprep.subr.bf16.mxu0 0
        %916 = vmatpush1.bf16.xpose.msra.mxu0 0
        %917 = vmatprep.subr.bf16.mxu0 0
        %918 = vmatpush1.bf16.xpose.msra.mxu0 0
        %919 = vmatprep.subr.bf16.mxu0 0
        %920 = vmatpush1.bf16.xpose.msra.mxu0 0
        %921 = vmatprep.subr.bf16.mxu0 0
        %922 = vmatpush1.bf16.xpose.msra.mxu0 0
        %923 = vmatprep.subr.bf16.mxu0 0
        %924 = vmatpush1.bf16.xpose.msra.mxu0 0
        %925 = vmatprep.subr.bf16.mxu0 0
        %926 = vmatpush1.bf16.xpose.msra.mxu0 0
        %927 = vmatprep.mubr.bf16.mxu0 0
        %928 = vmatmul.mubr.bf16.gmra.mrb[0].mxu0 %v890
        %v929 = vpop.f32.mrb[0].mxu0
        %v930 = vadd.f32 0.0, %v929
        %v931 = vpop.f32.mrb[0].mxu0
        %v932 = vpop.f32.mrb[0].mxu0
        %v933 = vpop.f32.mrb[0].mxu0
        %934 = vdwg.mxu0
        %935 = vrot.lane.b32.xlu0 %v389, 120
        %v936 = vpop.permute.xlu0 %935
        %937 = vrot.lane.b32.xlu0 %v389, 88
        %v938 = vpop.permute.xlu0 %937
        %v940 = vsel %vm393, %v936, 0
        %v943 = vsel %vm393, %v938, 0
        %945 = vmatprep.subr.bf16.mxu0 0
        %946 = vmatpush1.bf16.xpose.msra.mxu0 %v943
        %947 = vmatprep.subr.bf16.mxu0 0
        %948 = vmatpush1.bf16.xpose.msra.mxu0 0
        %949 = vmatprep.subr.bf16.mxu0 0
        %950 = vmatpush1.bf16.xpose.msra.mxu0 0
        %951 = vmatprep.subr.bf16.mxu0 0
        %952 = vmatpush1.bf16.xpose.msra.mxu0 0
        %953 = vmatprep.subr.bf16.mxu0 0
        %954 = vmatpush1.bf16.xpose.msra.mxu0 0
        %955 = vmatprep.subr.bf16.mxu0 0
        %956 = vmatpush1.bf16.xpose.msra.mxu0 0
        %957 = vmatprep.subr.bf16.mxu0 0
        %958 = vmatpush1.bf16.xpose.msra.mxu0 0
        %959 = vmatprep.subr.bf16.mxu0 0
        %960 = vmatpush1.bf16.xpose.msra.mxu0 0
        %961 = vmatprep.subr.bf16.mxu0 0
        %962 = vmatpush1.bf16.xpose.msra.mxu0 0
        %963 = vmatprep.subr.bf16.mxu0 0
        %964 = vmatpush1.bf16.xpose.msra.mxu0 0
        %965 = vmatprep.subr.bf16.mxu0 0
        %966 = vmatpush1.bf16.xpose.msra.mxu0 0
        %967 = vmatprep.subr.bf16.mxu0 0
        %968 = vmatpush1.bf16.xpose.msra.mxu0 0
        %969 = vmatprep.subr.bf16.mxu0 0
        %970 = vmatpush1.bf16.xpose.msra.mxu0 0
        %971 = vmatprep.subr.bf16.mxu0 0
        %972 = vmatpush1.bf16.xpose.msra.mxu0 0
        %973 = vmatprep.subr.bf16.mxu0 0
        %974 = vmatpush1.bf16.xpose.msra.mxu0 0
        %975 = vmatprep.subr.bf16.mxu0 0
        %976 = vmatpush1.bf16.xpose.msra.mxu0 0
        %977 = vmatprep.mubr.bf16.mxu0 0
        %978 = vmatmul.mubr.bf16.gmra.mrb[0].mxu0 %v940
        %v979 = vpop.f32.mrb[0].mxu0
        %v980 = vadd.f32 0.0, %v979
        %v981 = vpop.f32.mrb[0].mxu0
        %v982 = vpop.f32.mrb[0].mxu0
        %v983 = vpop.f32.mrb[0].mxu0
        %984 = vdwg.mxu0
        %985 = vrot.lane.b32.xlu0 %v390, 120
        %v986 = vpop.permute.xlu0 %985
        %987 = vrot.lane.b32.xlu0 %v390, 88
        %v988 = vpop.permute.xlu0 %987
        %v990 = vsel %vm393, %v986, 0
        %v993 = vsel %vm393, %v988, 0
        %995 = vmatprep.subr.bf16.mxu0 0
        %996 = vmatpush1.bf16.xpose.msra.mxu0 %v993
        %997 = vmatprep.subr.bf16.mxu0 0
        %998 = vmatpush1.bf16.xpose.msra.mxu0 0
        %999 = vmatprep.subr.bf16.mxu0 0
        %1000 = vmatpush1.bf16.xpose.msra.mxu0 0
        %1001 = vmatprep.subr.bf16.mxu0 0
        %1002 = vmatpush1.bf16.xpose.msra.mxu0 0
        %1003 = vmatprep.subr.bf16.mxu0 0
        %1004 = vmatpush1.bf16.xpose.msra.mxu0 0
        %1005 = vmatprep.subr.bf16.mxu0 0
        %1006 = vmatpush1.bf16.xpose.msra.mxu0 0
        %1007 = vmatprep.subr.bf16.mxu0 0
        %1008 = vmatpush1.bf16.xpose.msra.mxu0 0
        %1009 = vmatprep.subr.bf16.mxu0 0
        %1010 = vmatpush1.bf16.xpose.msra.mxu0 0
        %1011 = vmatprep.subr.bf16.mxu0 0
        %1012 = vmatpush1.bf16.xpose.msra.mxu0 0
        %1013 = vmatprep.subr.bf16.mxu0 0
        %1014 = vmatpush1.bf16.xpose.msra.mxu0 0
        %1015 = vmatprep.subr.bf16.mxu0 0
        %1016 = vmatpush1.bf16.xpose.msra.mxu0 0
        %1017 = vmatprep.subr.bf16.mxu0 0
        %1018 = vmatpush1.bf16.xpose.msra.mxu0 0
        %1019 = vmatprep.subr.bf16.mxu0 0
        %1020 = vmatpush1.bf16.xpose.msra.mxu0 0
        %1021 = vmatprep.subr.bf16.mxu0 0
        %1022 = vmatpush1.bf16.xpose.msra.mxu0 0
        %1023 = vmatprep.subr.bf16.mxu0 0
        %1024 = vmatpush1.bf16.xpose.msra.mxu0 0
        %1025 = vmatprep.subr.bf16.mxu0 0
        %1026 = vmatpush1.bf16.xpose.msra.mxu0 0
        %1027 = vmatprep.mubr.bf16.mxu0 0
        %1028 = vmatmul.mubr.bf16.gmra.mrb[0].mxu0 %v990
        %v1029 = vpop.f32.mrb[0].mxu0
        %v1030 = vadd.f32 0.0, %v1029
        %v1031 = vpop.f32.mrb[0].mxu0
        %v1032 = vpop.f32.mrb[0].mxu0
        %v1033 = vpop.f32.mrb[0].mxu0
        %1034 = vdwg.mxu0
        %v1035 = vsel %vm585, %v880, -1e+30
        %v1036 = vsel %vm585, %v930, -1e+30
        %v1037 = vsel %vm585, %v980, -1e+30
        %v1038 = vsel %vm585, %v1030, -1e+30
        %v1039 = vsel %vm393, %v1035, -inf
        %1040 = vmax.xlane.f32.xlu0 %v1039
        %v1041 = vpop.xlane.xlu0 %1040
        %v1042 = vsel %vm393, %v1036, -inf
        %1043 = vmax.xlane.f32.xlu0 %v1042
        %v1044 = vpop.xlane.xlu0 %1043
        %v1045 = vsel %vm393, %v1037, -inf
        %1046 = vmax.xlane.f32.xlu0 %v1045
        %v1047 = vpop.xlane.xlu0 %1046
        %v1048 = vsel %vm393, %v1038, -inf
        %1049 = vmax.xlane.f32.xlu0 %v1048
        %v1050 = vpop.xlane.xlu0 %1049
        %v1051 = vsub.f32 %v1035, %v1041
        %v1052 = vsub.f32 %v1036, %v1044
        %v1053 = vsub.f32 %v1037, %v1047
        %v1054 = vsub.f32 %v1038, %v1050
        %v1055 = vmul.f32 %v1051, 1.442695
        %v1056 = vpow.pop %v1055
        %v1057 = vmul.f32 %v1052, 1.442695
        %v1058 = vpow.pop %v1057
        %v1059 = vmul.f32 %v1053, 1.442695
        %v1060 = vpow.pop %v1059
        %v1061 = vmul.f32 %v1054, 1.442695
        %v1062 = vpow.pop %v1061
        %v1063 = vsel %vm393, %v1056, 0.0
        %1064 = vadd.xlane.f32.xlu0 %v1063
        %v1065 = vpop.xlane.xlu0 %1064
        %v1066 = vsel %vm393, %v1058, 0.0
        %1067 = vadd.xlane.f32.xlu0 %v1066
        %v1068 = vpop.xlane.xlu0 %1067
        %v1069 = vsel %vm393, %v1060, 0.0
        %1070 = vadd.xlane.f32.xlu0 %v1069
        %v1071 = vpop.xlane.xlu0 %1070
        %v1072 = vsel %vm393, %v1062, 0.0
        %1073 = vadd.xlane.f32.xlu0 %v1072
        %v1074 = vpop.xlane.xlu0 %1073
        %v1075 = vrcp.pop %v1065
        %v1076 = vrcp.pop %v1068
        %v1077 = vrcp.pop %v1071
        %v1078 = vrcp.pop %v1074
        %v1079 = vmul.f32 %v1056, %v1075
        %v1080 = vmul.f32 %v1058, %v1076
        %v1081 = vmul.f32 %v1060, %v1077
        %v1082 = vmul.f32 %v1062, %v1078
        %v1083 = vpack.c.bf16 %v1079, %v1079
        %v1084 = vpack.c.bf16 %v1080, %v1080
        %v1085 = vpack.c.bf16 %v1081, %v1081
        %v1086 = vpack.c.bf16 %v1082, %v1082
        %1087 = vrot.lane.b32.xlu0 %v387, 56
        %v1088 = vpop.permute.xlu0 %1087
        %v1090 = vsel %vm393, %v1083, 0
        %v1093 = vsel %vm643, %v1088, 0
        %1095 = vmatprep.subr.bf16.mxu0 0
        %1096 = vmatpush1.bf16.msra.mxu0 %v1093
        %1097 = vmatprep.subr.bf16.mxu0 0
        %1098 = vmatpush1.bf16.msra.mxu0 0
        %1099 = vmatprep.subr.bf16.mxu0 0
        %1100 = vmatpush1.bf16.msra.mxu0 0
        %1101 = vmatprep.subr.bf16.mxu0 0
        %1102 = vmatpush1.bf16.msra.mxu0 0
        %1103 = vmatprep.subr.bf16.mxu0 0
        %1104 = vmatpush1.bf16.msra.mxu0 0
        %1105 = vmatprep.subr.bf16.mxu0 0
        %1106 = vmatpush1.bf16.msra.mxu0 0
        %1107 = vmatprep.subr.bf16.mxu0 0
        %1108 = vmatpush1.bf16.msra.mxu0 0
        %1109 = vmatprep.subr.bf16.mxu0 0
        %1110 = vmatpush1.bf16.msra.mxu0 0
        %1111 = vmatprep.subr.bf16.mxu0 0
        %1112 = vmatpush1.bf16.msra.mxu0 0
        %1113 = vmatprep.subr.bf16.mxu0 0
        %1114 = vmatpush1.bf16.msra.mxu0 0
        %1115 = vmatprep.subr.bf16.mxu0 0
        %1116 = vmatpush1.bf16.msra.mxu0 0
        %1117 = vmatprep.subr.bf16.mxu0 0
        %1118 = vmatpush1.bf16.msra.mxu0 0
        %1119 = vmatprep.subr.bf16.mxu0 0
        %1120 = vmatpush1.bf16.msra.mxu0 0
        %1121 = vmatprep.subr.bf16.mxu0 0
        %1122 = vmatpush1.bf16.msra.mxu0 0
        %1123 = vmatprep.subr.bf16.mxu0 0
        %1124 = vmatpush1.bf16.msra.mxu0 0
        %1125 = vmatprep.subr.bf16.mxu0 0
        %1126 = vmatpush1.bf16.msra.mxu0 0
        %1127 = vmatprep.mubr.bf16.mxu0 0
        %1128 = vmatmul.mubr.bf16.gmra.mrb[0].mxu0 %v1090
        %v1129 = vpop.f32.mrb[0].mxu0
        %v1130 = vadd.f32 0.0, %v1129
        %v1131 = vpop.f32.mrb[0].mxu0
        %v1132 = vpop.f32.mrb[0].mxu0
        %v1133 = vpop.f32.mrb[0].mxu0
        %1134 = vdwg.mxu0
        %1135 = vrot.lane.b32.xlu0 %v388, 56
        %v1136 = vpop.permute.xlu0 %1135
        %v1138 = vsel %vm393, %v1084, 0
        %v1141 = vsel %vm643, %v1136, 0
        %1143 = vmatprep.subr.bf16.mxu0 0
        %1144 = vmatpush1.bf16.msra.mxu0 %v1141
        %1145 = vmatprep.subr.bf16.mxu0 0
        %1146 = vmatpush1.bf16.msra.mxu0 0
        %1147 = vmatprep.subr.bf16.mxu0 0
        %1148 = vmatpush1.bf16.msra.mxu0 0
        %1149 = vmatprep.subr.bf16.mxu0 0
        %1150 = vmatpush1.bf16.msra.mxu0 0
        %1151 = vmatprep.subr.bf16.mxu0 0
        %1152 = vmatpush1.bf16.msra.mxu0 0
        %1153 = vmatprep.subr.bf16.mxu0 0
        %1154 = vmatpush1.bf16.msra.mxu0 0
        %1155 = vmatprep.subr.bf16.mxu0 0
        %1156 = vmatpush1.bf16.msra.mxu0 0
        %1157 = vmatprep.subr.bf16.mxu0 0
        %1158 = vmatpush1.bf16.msra.mxu0 0
        %1159 = vmatprep.subr.bf16.mxu0 0
        %1160 = vmatpush1.bf16.msra.mxu0 0
        %1161 = vmatprep.subr.bf16.mxu0 0
        %1162 = vmatpush1.bf16.msra.mxu0 0
        %1163 = vmatprep.subr.bf16.mxu0 0
        %1164 = vmatpush1.bf16.msra.mxu0 0
        %1165 = vmatprep.subr.bf16.mxu0 0
        %1166 = vmatpush1.bf16.msra.mxu0 0
        %1167 = vmatprep.subr.bf16.mxu0 0
        %1168 = vmatpush1.bf16.msra.mxu0 0
        %1169 = vmatprep.subr.bf16.mxu0 0
        %1170 = vmatpush1.bf16.msra.mxu0 0
        %1171 = vmatprep.subr.bf16.mxu0 0
        %1172 = vmatpush1.bf16.msra.mxu0 0
        %1173 = vmatprep.subr.bf16.mxu0 0
        %1174 = vmatpush1.bf16.msra.mxu0 0
        %1175 = vmatprep.mubr.bf16.mxu0 0
        %1176 = vmatmul.mubr.bf16.gmra.mrb[0].mxu0 %v1138
        %v1177 = vpop.f32.mrb[0].mxu0
        %v1178 = vadd.f32 0.0, %v1177
        %v1179 = vpop.f32.mrb[0].mxu0
        %v1180 = vpop.f32.mrb[0].mxu0
        %v1181 = vpop.f32.mrb[0].mxu0
        %1182 = vdwg.mxu0
        %1183 = vrot.lane.b32.xlu0 %v389, 56
        %v1184 = vpop.permute.xlu0 %1183
        %v1186 = vsel %vm393, %v1085, 0
        %v1189 = vsel %vm643, %v1184, 0
        %1191 = vmatprep.subr.bf16.mxu0 0
        %1192 = vmatpush1.bf16.msra.mxu0 %v1189
        %1193 = vmatprep.subr.bf16.mxu0 0
        %1194 = vmatpush1.bf16.msra.mxu0 0
        %1195 = vmatprep.subr.bf16.mxu0 0
        %1196 = vmatpush1.bf16.msra.mxu0 0
        %1197 = vmatprep.subr.bf16.mxu0 0
        %1198 = vmatpush1.bf16.msra.mxu0 0
        %1199 = vmatprep.subr.bf16.mxu0 0
        %1200 = vmatpush1.bf16.msra.mxu0 0
        %1201 = vmatprep.subr.bf16.mxu0 0
        %1202 = vmatpush1.bf16.msra.mxu0 0
        %1203 = vmatprep.subr.bf16.mxu0 0
        %1204 = vmatpush1.bf16.msra.mxu0 0
        %1205 = vmatprep.subr.bf16.mxu0 0
        %1206 = vmatpush1.bf16.msra.mxu0 0
        %1207 = vmatprep.subr.bf16.mxu0 0
        %1208 = vmatpush1.bf16.msra.mxu0 0
        %1209 = vmatprep.subr.bf16.mxu0 0
        %1210 = vmatpush1.bf16.msra.mxu0 0
        %1211 = vmatprep.subr.bf16.mxu0 0
        %1212 = vmatpush1.bf16.msra.mxu0 0
        %1213 = vmatprep.subr.bf16.mxu0 0
        %1214 = vmatpush1.bf16.msra.mxu0 0
        %1215 = vmatprep.subr.bf16.mxu0 0
        %1216 = vmatpush1.bf16.msra.mxu0 0
        %1217 = vmatprep.subr.bf16.mxu0 0
        %1218 = vmatpush1.bf16.msra.mxu0 0
        %1219 = vmatprep.subr.bf16.mxu0 0
        %1220 = vmatpush1.bf16.msra.mxu0 0
        %1221 = vmatprep.subr.bf16.mxu0 0
        %1222 = vmatpush1.bf16.msra.mxu0 0
        %1223 = vmatprep.mubr.bf16.mxu0 0
        %1224 = vmatmul.mubr.bf16.gmra.mrb[0].mxu0 %v1186
        %v1225 = vpop.f32.mrb[0].mxu0
        %v1226 = vadd.f32 0.0, %v1225
        %v1227 = vpop.f32.mrb[0].mxu0
        %v1228 = vpop.f32.mrb[0].mxu0
        %v1229 = vpop.f32.mrb[0].mxu0
        %1230 = vdwg.mxu0
        %1231 = vrot.lane.b32.xlu0 %v390, 56
        %v1232 = vpop.permute.xlu0 %1231
        %v1234 = vsel %vm393, %v1086, 0
        %v1237 = vsel %vm643, %v1232, 0
        %1239 = vmatprep.subr.bf16.mxu0 0
        %1240 = vmatpush1.bf16.msra.mxu0 %v1237
        %1241 = vmatprep.subr.bf16.mxu0 0
        %1242 = vmatpush1.bf16.msra.mxu0 0
        %1243 = vmatprep.subr.bf16.mxu0 0
        %1244 = vmatpush1.bf16.msra.mxu0 0
        %1245 = vmatprep.subr.bf16.mxu0 0
        %1246 = vmatpush1.bf16.msra.mxu0 0
        %1247 = vmatprep.subr.bf16.mxu0 0
        %1248 = vmatpush1.bf16.msra.mxu0 0
        %1249 = vmatprep.subr.bf16.mxu0 0
        %1250 = vmatpush1.bf16.msra.mxu0 0
        %1251 = vmatprep.subr.bf16.mxu0 0
        %1252 = vmatpush1.bf16.msra.mxu0 0
        %1253 = vmatprep.subr.bf16.mxu0 0
        %1254 = vmatpush1.bf16.msra.mxu0 0
        %1255 = vmatprep.subr.bf16.mxu0 0
        %1256 = vmatpush1.bf16.msra.mxu0 0
        %1257 = vmatprep.subr.bf16.mxu0 0
        %1258 = vmatpush1.bf16.msra.mxu0 0
        %1259 = vmatprep.subr.bf16.mxu0 0
        %1260 = vmatpush1.bf16.msra.mxu0 0
        %1261 = vmatprep.subr.bf16.mxu0 0
        %1262 = vmatpush1.bf16.msra.mxu0 0
        %1263 = vmatprep.subr.bf16.mxu0 0
        %1264 = vmatpush1.bf16.msra.mxu0 0
        %1265 = vmatprep.subr.bf16.mxu0 0
        %1266 = vmatpush1.bf16.msra.mxu0 0
        %1267 = vmatprep.subr.bf16.mxu0 0
        %1268 = vmatpush1.bf16.msra.mxu0 0
        %1269 = vmatprep.subr.bf16.mxu0 0
        %1270 = vmatpush1.bf16.msra.mxu0 0
        %1271 = vmatprep.mubr.bf16.mxu0 0
        %1272 = vmatmul.mubr.bf16.gmra.mrb[0].mxu0 %v1234
        %v1273 = vpop.f32.mrb[0].mxu0
        %v1274 = vadd.f32 0.0, %v1273
        %v1275 = vpop.f32.mrb[0].mxu0
        %v1276 = vpop.f32.mrb[0].mxu0
        %v1277 = vpop.f32.mrb[0].mxu0
        %1278 = vdwg.mxu0
        %v1279 = vpack.c.bf16 %v1178, %v1130
        %v1280 = vpack.c.bf16 %v1274, %v1226
        %1283 = vrot.lane.b32.xlu0 %v1279, 8
        %v1284 = vpop.permute.xlu0 %1283
        %1285 = vrot.lane.b32.xlu0 %v1280, 8
        %v1286 = vpop.permute.xlu0 %1285
        %vm1289 = vcmask 130112
        %1290 = vst.msk [vmem:[#allocation2] sm:$0xff] %vm1289, %v1284
        %1291 = vst.msk [vmem:[#allocation2 + $0x8] sm:$0xff] %vm1289, %v1286
        %1292 = vrot.lane.b32.xlu0 %v387, 112
        %v1293 = vpop.permute.xlu0 %1292
        %1294 = vrot.lane.b32.xlu0 %v387, 80
        %v1295 = vpop.permute.xlu0 %1294
        %v1297 = vsel %vm393, %v1293, 0
        %v1300 = vsel %vm393, %v1295, 0
        %1302 = vmatprep.subr.bf16.mxu0 0
        %1303 = vmatpush1.bf16.xpose.msra.mxu0 %v1300
        %1304 = vmatprep.subr.bf16.mxu0 0
        %1305 = vmatpush1.bf16.xpose.msra.mxu0 0
        %1306 = vmatprep.subr.bf16.mxu0 0
        %1307 = vmatpush1.bf16.xpose.msra.mxu0 0
        %1308 = vmatprep.subr.bf16.mxu0 0
        %1309 = vmatpush1.bf16.xpose.msra.mxu0 0
        %1310 = vmatprep.subr.bf16.mxu0 0
        %1311 = vmatpush1.bf16.xpose.msra.mxu0 0
        %1312 = vmatprep.subr.bf16.mxu0 0
        %1313 = vmatpush1.bf16.xpose.msra.mxu0 0
        %1314 = vmatprep.subr.bf16.mxu0 0
        %1315 = vmatpush1.bf16.xpose.msra.mxu0 0
        %1316 = vmatprep.subr.bf16.mxu0 0
        %1317 = vmatpush1.bf16.xpose.msra.mxu0 0
        %1318 = vmatprep.subr.bf16.mxu0 0
        %1319 = vmatpush1.bf16.xpose.msra.mxu0 0
        %1320 = vmatprep.subr.bf16.mxu0 0
        %1321 = vmatpush1.bf16.xpose.msra.mxu0 0
        %1322 = vmatprep.subr.bf16.mxu0 0
        %1323 = vmatpush1.bf16.xpose.msra.mxu0 0
        %1324 = vmatprep.subr.bf16.mxu0 0
        %1325 = vmatpush1.bf16.xpose.msra.mxu0 0
        %1326 = vmatprep.subr.bf16.mxu0 0
        %1327 = vmatpush1.bf16.xpose.msra.mxu0 0
        %1328 = vmatprep.subr.bf16.mxu0 0
        %1329 = vmatpush1.bf16.xpose.msra.mxu0 0
        %1330 = vmatprep.subr.bf16.mxu0 0
        %1331 = vmatpush1.bf16.xpose.msra.mxu0 0
        %1332 = vmatprep.subr.bf16.mxu0 0
        %1333 = vmatpush1.bf16.xpose.msra.mxu0 0
        %1334 = vmatprep.mubr.bf16.mxu0 0
        %1335 = vmatmul.mubr.bf16.gmra.mrb[0].mxu0 %v1297
        %v1336 = vpop.f32.mrb[0].mxu0
        %v1337 = vadd.f32 0.0, %v1336
        %v1338 = vpop.f32.mrb[0].mxu0
        %v1339 = vpop.f32.mrb[0].mxu0
        %v1340 = vpop.f32.mrb[0].mxu0
        %1341 = vdwg.mxu0
        %1342 = vrot.lane.b32.xlu0 %v388, 112
        %v1343 = vpop.permute.xlu0 %1342
        %1344 = vrot.lane.b32.xlu0 %v388, 80
        %v1345 = vpop.permute.xlu0 %1344
        %v1347 = vsel %vm393, %v1343, 0
        %v1350 = vsel %vm393, %v1345, 0
        %1352 = vmatprep.subr.bf16.mxu0 0
        %1353 = vmatpush1.bf16.xpose.msra.mxu0 %v1350
        %1354 = vmatprep.subr.bf16.mxu0 0
        %1355 = vmatpush1.bf16.xpose.msra.mxu0 0
        %1356 = vmatprep.subr.bf16.mxu0 0
        %1357 = vmatpush1.bf16.xpose.msra.mxu0 0
        %1358 = vmatprep.subr.bf16.mxu0 0
        %1359 = vmatpush1.bf16.xpose.msra.mxu0 0
        %1360 = vmatprep.subr.bf16.mxu0 0
        %1361 = vmatpush1.bf16.xpose.msra.mxu0 0
        %1362 = vmatprep.subr.bf16.mxu0 0
        %1363 = vmatpush1.bf16.xpose.msra.mxu0 0
        %1364 = vmatprep.subr.bf16.mxu0 0
        %1365 = vmatpush1.bf16.xpose.msra.mxu0 0
        %1366 = vmatprep.subr.bf16.mxu0 0
        %1367 = vmatpush1.bf16.xpose.msra.mxu0 0
        %1368 = vmatprep.subr.bf16.mxu0 0
        %1369 = vmatpush1.bf16.xpose.msra.mxu0 0
        %1370 = vmatprep.subr.bf16.mxu0 0
        %1371 = vmatpush1.bf16.xpose.msra.mxu0 0
        %1372 = vmatprep.subr.bf16.mxu0 0
        %1373 = vmatpush1.bf16.xpose.msra.mxu0 0
        %1374 = vmatprep.subr.bf16.mxu0 0
        %1375 = vmatpush1.bf16.xpose.msra.mxu0 0
        %1376 = vmatprep.subr.bf16.mxu0 0
        %1377 = vmatpush1.bf16.xpose.msra.mxu0 0
        %1378 = vmatprep.subr.bf16.mxu0 0
        %1379 = vmatpush1.bf16.xpose.msra.mxu0 0
        %1380 = vmatprep.subr.bf16.mxu0 0
        %1381 = vmatpush1.bf16.xpose.msra.mxu0 0
        %1382 = vmatprep.subr.bf16.mxu0 0
        %1383 = vmatpush1.bf16.xpose.msra.mxu0 0
        %1384 = vmatprep.mubr.bf16.mxu0 0
        %1385 = vmatmul.mubr.bf16.gmra.mrb[0].mxu0 %v1347
        %v1386 = vpop.f32.mrb[0].mxu0
        %v1387 = vadd.f32 0.0, %v1386
        %v1388 = vpop.f32.mrb[0].mxu0
        %v1389 = vpop.f32.mrb[0].mxu0
        %v1390 = vpop.f32.mrb[0].mxu0
        %1391 = vdwg.mxu0
        %1392 = vrot.lane.b32.xlu0 %v389, 112
        %v1393 = vpop.permute.xlu0 %1392
        %1394 = vrot.lane.b32.xlu0 %v389, 80
        %v1395 = vpop.permute.xlu0 %1394
        %v1397 = vsel %vm393, %v1393, 0
        %v1400 = vsel %vm393, %v1395, 0
        %1402 = vmatprep.subr.bf16.mxu0 0
        %1403 = vmatpush1.bf16.xpose.msra.mxu0 %v1400
        %1404 = vmatprep.subr.bf16.mxu0 0
        %1405 = vmatpush1.bf16.xpose.msra.mxu0 0
        %1406 = vmatprep.subr.bf16.mxu0 0
        %1407 = vmatpush1.bf16.xpose.msra.mxu0 0
        %1408 = vmatprep.subr.bf16.mxu0 0
        %1409 = vmatpush1.bf16.xpose.msra.mxu0 0
        %1410 = vmatprep.subr.bf16.mxu0 0
        %1411 = vmatpush1.bf16.xpose.msra.mxu0 0
        %1412 = vmatprep.subr.bf16.mxu0 0
        %1413 = vmatpush1.bf16.xpose.msra.mxu0 0
        %1414 = vmatprep.subr.bf16.mxu0 0
        %1415 = vmatpush1.bf16.xpose.msra.mxu0 0
        %1416 = vmatprep.subr.bf16.mxu0 0
        %1417 = vmatpush1.bf16.xpose.msra.mxu0 0
        %1418 = vmatprep.subr.bf16.mxu0 0
        %1419 = vmatpush1.bf16.xpose.msra.mxu0 0
        %1420 = vmatprep.subr.bf16.mxu0 0
        %1421 = vmatpush1.bf16.xpose.msra.mxu0 0
        %1422 = vmatprep.subr.bf16.mxu0 0
        %1423 = vmatpush1.bf16.xpose.msra.mxu0 0
        %1424 = vmatprep.subr.bf16.mxu0 0
        %1425 = vmatpush1.bf16.xpose.msra.mxu0 0
        %1426 = vmatprep.subr.bf16.mxu0 0
        %1427 = vmatpush1.bf16.xpose.msra.mxu0 0
        %1428 = vmatprep.subr.bf16.mxu0 0
        %1429 = vmatpush1.bf16.xpose.msra.mxu0 0
        %1430 = vmatprep.subr.bf16.mxu0 0
        %1431 = vmatpush1.bf16.xpose.msra.mxu0 0
        %1432 = vmatprep.subr.bf16.mxu0 0
        %1433 = vmatpush1.bf16.xpose.msra.mxu0 0
        %1434 = vmatprep.mubr.bf16.mxu0 0
        %1435 = vmatmul.mubr.bf16.gmra.mrb[0].mxu0 %v1397
        %v1436 = vpop.f32.mrb[0].mxu0
        %v1437 = vadd.f32 0.0, %v1436
        %v1438 = vpop.f32.mrb[0].mxu0
        %v1439 = vpop.f32.mrb[0].mxu0
        %v1440 = vpop.f32.mrb[0].mxu0
        %1441 = vdwg.mxu0
        %1442 = vrot.lane.b32.xlu0 %v390, 112
        %v1443 = vpop.permute.xlu0 %1442
        %1444 = vrot.lane.b32.xlu0 %v390, 80
        %v1445 = vpop.permute.xlu0 %1444
        %v1447 = vsel %vm393, %v1443, 0
        %v1450 = vsel %vm393, %v1445, 0
        %1452 = vmatprep.subr.bf16.mxu0 0
        %1453 = vmatpush1.bf16.xpose.msra.mxu0 %v1450
        %1454 = vmatprep.subr.bf16.mxu0 0
        %1455 = vmatpush1.bf16.xpose.msra.mxu0 0
        %1456 = vmatprep.subr.bf16.mxu0 0
        %1457 = vmatpush1.bf16.xpose.msra.mxu0 0
        %1458 = vmatprep.subr.bf16.mxu0 0
        %1459 = vmatpush1.bf16.xpose.msra.mxu0 0
        %1460 = vmatprep.subr.bf16.mxu0 0
        %1461 = vmatpush1.bf16.xpose.msra.mxu0 0
        %1462 = vmatprep.subr.bf16.mxu0 0
        %1463 = vmatpush1.bf16.xpose.msra.mxu0 0
        %1464 = vmatprep.subr.bf16.mxu0 0
        %1465 = vmatpush1.bf16.xpose.msra.mxu0 0
        %1466 = vmatprep.subr.bf16.mxu0 0
        %1467 = vmatpush1.bf16.xpose.msra.mxu0 0
        %1468 = vmatprep.subr.bf16.mxu0 0
        %1469 = vmatpush1.bf16.xpose.msra.mxu0 0
        %1470 = vmatprep.subr.bf16.mxu0 0
        %1471 = vmatpush1.bf16.xpose.msra.mxu0 0
        %1472 = vmatprep.subr.bf16.mxu0 0
        %1473 = vmatpush1.bf16.xpose.msra.mxu0 0
        %1474 = vmatprep.subr.bf16.mxu0 0
        %1475 = vmatpush1.bf16.xpose.msra.mxu0 0
        %1476 = vmatprep.subr.bf16.mxu0 0
        %1477 = vmatpush1.bf16.xpose.msra.mxu0 0
        %1478 = vmatprep.subr.bf16.mxu0 0
        %1479 = vmatpush1.bf16.xpose.msra.mxu0 0
        %1480 = vmatprep.subr.bf16.mxu0 0
        %1481 = vmatpush1.bf16.xpose.msra.mxu0 0
        %1482 = vmatprep.subr.bf16.mxu0 0
        %1483 = vmatpush1.bf16.xpose.msra.mxu0 0
        %1484 = vmatprep.mubr.bf16.mxu0 0
        %1485 = vmatmul.mubr.bf16.gmra.mrb[0].mxu0 %v1447
        %v1486 = vpop.f32.mrb[0].mxu0
        %v1487 = vadd.f32 0.0, %v1486
        %v1488 = vpop.f32.mrb[0].mxu0
        %v1489 = vpop.f32.mrb[0].mxu0
        %v1490 = vpop.f32.mrb[0].mxu0
        %1491 = vdwg.mxu0
        %v1492 = vsel %vm585, %v1337, -1e+30
        %v1493 = vsel %vm585, %v1387, -1e+30
        %v1494 = vsel %vm585, %v1437, -1e+30
        %v1495 = vsel %vm585, %v1487, -1e+30
        %v1496 = vsel %vm393, %v1492, -inf
        %1497 = vmax.xlane.f32.xlu0 %v1496
        %v1498 = vpop.xlane.xlu0 %1497
        %v1499 = vsel %vm393, %v1493, -inf
        %1500 = vmax.xlane.f32.xlu0 %v1499
        %v1501 = vpop.xlane.xlu0 %1500
        %v1502 = vsel %vm393, %v1494, -inf
        %1503 = vmax.xlane.f32.xlu0 %v1502
        %v1504 = vpop.xlane.xlu0 %1503
        %v1505 = vsel %vm393, %v1495, -inf
        %1506 = vmax.xlane.f32.xlu0 %v1505
        %v1507 = vpop.xlane.xlu0 %1506
        %v1508 = vsub.f32 %v1492, %v1498
        %v1509 = vsub.f32 %v1493, %v1501
        %v1510 = vsub.f32 %v1494, %v1504
        %v1511 = vsub.f32 %v1495, %v1507
        %v1512 = vmul.f32 %v1508, 1.442695
        %v1513 = vpow.pop %v1512
        %v1514 = vmul.f32 %v1509, 1.442695
        %v1515 = vpow.pop %v1514
        %v1516 = vmul.f32 %v1510, 1.442695
        %v1517 = vpow.pop %v1516
        %v1518 = vmul.f32 %v1511, 1.442695
        %v1519 = vpow.pop %v1518
        %v1520 = vsel %vm393, %v1513, 0.0
        %1521 = vadd.xlane.f32.xlu0 %v1520
        %v1522 = vpop.xlane.xlu0 %1521
        %v1523 = vsel %vm393, %v1515, 0.0
        %1524 = vadd.xlane.f32.xlu0 %v1523
        %v1525 = vpop.xlane.xlu0 %1524
        %v1526 = vsel %vm393, %v1517, 0.0
        %1527 = vadd.xlane.f32.xlu0 %v1526
        %v1528 = vpop.xlane.xlu0 %1527
        %v1529 = vsel %vm393, %v1519, 0.0
        %1530 = vadd.xlane.f32.xlu0 %v1529
        %v1531 = vpop.xlane.xlu0 %1530
        %v1532 = vrcp.pop %v1522
        %v1533 = vrcp.pop %v1525
        %v1534 = vrcp.pop %v1528
        %v1535 = vrcp.pop %v1531
        %v1536 = vmul.f32 %v1513, %v1532
        %v1537 = vmul.f32 %v1515, %v1533
        %v1538 = vmul.f32 %v1517, %v1534
        %v1539 = vmul.f32 %v1519, %v1535
        %v1540 = vpack.c.bf16 %v1536, %v1536
        %v1541 = vpack.c.bf16 %v1537, %v1537
        %v1542 = vpack.c.bf16 %v1538, %v1538
        %v1543 = vpack.c.bf16 %v1539, %v1539
        %1544 = vrot.lane.b32.xlu0 %v387, 48
        %v1545 = vpop.permute.xlu0 %1544
        %v1547 = vsel %vm393, %v1540, 0
        %v1550 = vsel %vm643, %v1545, 0
        %1552 = vmatprep.subr.bf16.mxu0 0
        %1553 = vmatpush1.bf16.msra.mxu0 %v1550
        %1554 = vmatprep.subr.bf16.mxu0 0
        %1555 = vmatpush1.bf16.msra.mxu0 0
        %1556 = vmatprep.subr.bf16.mxu0 0
        %1557 = vmatpush1.bf16.msra.mxu0 0
        %1558 = vmatprep.subr.bf16.mxu0 0
        %1559 = vmatpush1.bf16.msra.mxu0 0
        %1560 = vmatprep.subr.bf16.mxu0 0
        %1561 = vmatpush1.bf16.msra.mxu0 0
        %1562 = vmatprep.subr.bf16.mxu0 0
        %1563 = vmatpush1.bf16.msra.mxu0 0
        %1564 = vmatprep.subr.bf16.mxu0 0
        %1565 = vmatpush1.bf16.msra.mxu0 0
        %1566 = vmatprep.subr.bf16.mxu0 0
        %1567 = vmatpush1.bf16.msra.mxu0 0
        %1568 = vmatprep.subr.bf16.mxu0 0
        %1569 = vmatpush1.bf16.msra.mxu0 0
        %1570 = vmatprep.subr.bf16.mxu0 0
        %1571 = vmatpush1.bf16.msra.mxu0 0
        %1572 = vmatprep.subr.bf16.mxu0 0
        %1573 = vmatpush1.bf16.msra.mxu0 0
        %1574 = vmatprep.subr.bf16.mxu0 0
        %1575 = vmatpush1.bf16.msra.mxu0 0
        %1576 = vmatprep.subr.bf16.mxu0 0
        %1577 = vmatpush1.bf16.msra.mxu0 0
        %1578 = vmatprep.subr.bf16.mxu0 0
        %1579 = vmatpush1.bf16.msra.mxu0 0
        %1580 = vmatprep.subr.bf16.mxu0 0
        %1581 = vmatpush1.bf16.msra.mxu0 0
        %1582 = vmatprep.subr.bf16.mxu0 0
        %1583 = vmatpush1.bf16.msra.mxu0 0
        %1584 = vmatprep.mubr.bf16.mxu0 0
        %1585 = vmatmul.mubr.bf16.gmra.mrb[0].mxu0 %v1547
        %v1586 = vpop.f32.mrb[0].mxu0
        %v1587 = vadd.f32 0.0, %v1586
        %v1588 = vpop.f32.mrb[0].mxu0
        %v1589 = vpop.f32.mrb[0].mxu0
        %v1590 = vpop.f32.mrb[0].mxu0
        %1591 = vdwg.mxu0
        %1592 = vrot.lane.b32.xlu0 %v388, 48
        %v1593 = vpop.permute.xlu0 %1592
        %v1595 = vsel %vm393, %v1541, 0
        %v1598 = vsel %vm643, %v1593, 0
        %1600 = vmatprep.subr.bf16.mxu0 0
        %1601 = vmatpush1.bf16.msra.mxu0 %v1598
        %1602 = vmatprep.subr.bf16.mxu0 0
        %1603 = vmatpush1.bf16.msra.mxu0 0
        %1604 = vmatprep.subr.bf16.mxu0 0
        %1605 = vmatpush1.bf16.msra.mxu0 0
        %1606 = vmatprep.subr.bf16.mxu0 0
        %1607 = vmatpush1.bf16.msra.mxu0 0
        %1608 = vmatprep.subr.bf16.mxu0 0
        %1609 = vmatpush1.bf16.msra.mxu0 0
        %1610 = vmatprep.subr.bf16.mxu0 0
        %1611 = vmatpush1.bf16.msra.mxu0 0
        %1612 = vmatprep.subr.bf16.mxu0 0
        %1613 = vmatpush1.bf16.msra.mxu0 0
        %1614 = vmatprep.subr.bf16.mxu0 0
        %1615 = vmatpush1.bf16.msra.mxu0 0
        %1616 = vmatprep.subr.bf16.mxu0 0
        %1617 = vmatpush1.bf16.msra.mxu0 0
        %1618 = vmatprep.subr.bf16.mxu0 0
        %1619 = vmatpush1.bf16.msra.mxu0 0
        %1620 = vmatprep.subr.bf16.mxu0 0
        %1621 = vmatpush1.bf16.msra.mxu0 0
        %1622 = vmatprep.subr.bf16.mxu0 0
        %1623 = vmatpush1.bf16.msra.mxu0 0
        %1624 = vmatprep.subr.bf16.mxu0 0
        %1625 = vmatpush1.bf16.msra.mxu0 0
        %1626 = vmatprep.subr.bf16.mxu0 0
        %1627 = vmatpush1.bf16.msra.mxu0 0
        %1628 = vmatprep.subr.bf16.mxu0 0
        %1629 = vmatpush1.bf16.msra.mxu0 0
        %1630 = vmatprep.subr.bf16.mxu0 0
        %1631 = vmatpush1.bf16.msra.mxu0 0
        %1632 = vmatprep.mubr.bf16.mxu0 0
        %1633 = vmatmul.mubr.bf16.gmra.mrb[0].mxu0 %v1595
        %v1634 = vpop.f32.mrb[0].mxu0
        %v1635 = vadd.f32 0.0, %v1634
        %v1636 = vpop.f32.mrb[0].mxu0
        %v1637 = vpop.f32.mrb[0].mxu0
        %v1638 = vpop.f32.mrb[0].mxu0
        %1639 = vdwg.mxu0
        %1640 = vrot.lane.b32.xlu0 %v389, 48
        %v1641 = vpop.permute.xlu0 %1640
        %v1643 = vsel %vm393, %v1542, 0
        %v1646 = vsel %vm643, %v1641, 0
        %1648 = vmatprep.subr.bf16.mxu0 0
        %1649 = vmatpush1.bf16.msra.mxu0 %v1646
        %1650 = vmatprep.subr.bf16.mxu0 0
        %1651 = vmatpush1.bf16.msra.mxu0 0
        %1652 = vmatprep.subr.bf16.mxu0 0
        %1653 = vmatpush1.bf16.msra.mxu0 0
        %1654 = vmatprep.subr.bf16.mxu0 0
        %1655 = vmatpush1.bf16.msra.mxu0 0
        %1656 = vmatprep.subr.bf16.mxu0 0
        %1657 = vmatpush1.bf16.msra.mxu0 0
        %1658 = vmatprep.subr.bf16.mxu0 0
        %1659 = vmatpush1.bf16.msra.mxu0 0
        %1660 = vmatprep.subr.bf16.mxu0 0
        %1661 = vmatpush1.bf16.msra.mxu0 0
        %1662 = vmatprep.subr.bf16.mxu0 0
        %1663 = vmatpush1.bf16.msra.mxu0 0
        %1664 = vmatprep.subr.bf16.mxu0 0
        %1665 = vmatpush1.bf16.msra.mxu0 0
        %1666 = vmatprep.subr.bf16.mxu0 0
        %1667 = vmatpush1.bf16.msra.mxu0 0
        %1668 = vmatprep.subr.bf16.mxu0 0
        %1669 = vmatpush1.bf16.msra.mxu0 0
        %1670 = vmatprep.subr.bf16.mxu0 0
        %1671 = vmatpush1.bf16.msra.mxu0 0
        %1672 = vmatprep.subr.bf16.mxu0 0
        %1673 = vmatpush1.bf16.msra.mxu0 0
        %1674 = vmatprep.subr.bf16.mxu0 0
        %1675 = vmatpush1.bf16.msra.mxu0 0
        %1676 = vmatprep.subr.bf16.mxu0 0
        %1677 = vmatpush1.bf16.msra.mxu0 0
        %1678 = vmatprep.subr.bf16.mxu0 0
        %1679 = vmatpush1.bf16.msra.mxu0 0
        %1680 = vmatprep.mubr.bf16.mxu0 0
        %1681 = vmatmul.mubr.bf16.gmra.mrb[0].mxu0 %v1643
        %v1682 = vpop.f32.mrb[0].mxu0
        %v1683 = vadd.f32 0.0, %v1682
        %v1684 = vpop.f32.mrb[0].mxu0
        %v1685 = vpop.f32.mrb[0].mxu0
        %v1686 = vpop.f32.mrb[0].mxu0
        %1687 = vdwg.mxu0
        %1688 = vrot.lane.b32.xlu0 %v390, 48
        %v1689 = vpop.permute.xlu0 %1688
        %v1691 = vsel %vm393, %v1543, 0
        %v1694 = vsel %vm643, %v1689, 0
        %1696 = vmatprep.subr.bf16.mxu0 0
        %1697 = vmatpush1.bf16.msra.mxu0 %v1694
        %1698 = vmatprep.subr.bf16.mxu0 0
        %1699 = vmatpush1.bf16.msra.mxu0 0
        %1700 = vmatprep.subr.bf16.mxu0 0
        %1701 = vmatpush1.bf16.msra.mxu0 0
        %1702 = vmatprep.subr.bf16.mxu0 0
        %1703 = vmatpush1.bf16.msra.mxu0 0
        %1704 = vmatprep.subr.bf16.mxu0 0
        %1705 = vmatpush1.bf16.msra.mxu0 0
        %1706 = vmatprep.subr.bf16.mxu0 0
        %1707 = vmatpush1.bf16.msra.mxu0 0
        %1708 = vmatprep.subr.bf16.mxu0 0
        %1709 = vmatpush1.bf16.msra.mxu0 0
        %1710 = vmatprep.subr.bf16.mxu0 0
        %1711 = vmatpush1.bf16.msra.mxu0 0
        %1712 = vmatprep.subr.bf16.mxu0 0
        %1713 = vmatpush1.bf16.msra.mxu0 0
        %1714 = vmatprep.subr.bf16.mxu0 0
        %1715 = vmatpush1.bf16.msra.mxu0 0
        %1716 = vmatprep.subr.bf16.mxu0 0
        %1717 = vmatpush1.bf16.msra.mxu0 0
        %1718 = vmatprep.subr.bf16.mxu0 0
        %1719 = vmatpush1.bf16.msra.mxu0 0
        %1720 = vmatprep.subr.bf16.mxu0 0
        %1721 = vmatpush1.bf16.msra.mxu0 0
        %1722 = vmatprep.subr.bf16.mxu0 0
        %1723 = vmatpush1.bf16.msra.mxu0 0
        %1724 = vmatprep.subr.bf16.mxu0 0
        %1725 = vmatpush1.bf16.msra.mxu0 0
        %1726 = vmatprep.subr.bf16.mxu0 0
        %1727 = vmatpush1.bf16.msra.mxu0 0
        %1728 = vmatprep.mubr.bf16.mxu0 0
        %1729 = vmatmul.mubr.bf16.gmra.mrb[0].mxu0 %v1691
        %v1730 = vpop.f32.mrb[0].mxu0
        %v1731 = vadd.f32 0.0, %v1730
        %v1732 = vpop.f32.mrb[0].mxu0
        %v1733 = vpop.f32.mrb[0].mxu0
        %v1734 = vpop.f32.mrb[0].mxu0
        %1735 = vdwg.mxu0
        %v1736 = vpack.c.bf16 %v1635, %v1587
        %v1737 = vpack.c.bf16 %v1731, %v1683
        %1740 = vrot.lane.b32.xlu0 %v1736, 16
        %v1741 = vpop.permute.xlu0 %1740
        %1742 = vrot.lane.b32.xlu0 %v1737, 16
        %v1743 = vpop.permute.xlu0 %1742
        %vm1746 = vcmask 195712
        %1747 = vst.msk [vmem:[#allocation2] sm:$0xff] %vm1746, %v1741
        %1748 = vst.msk [vmem:[#allocation2 + $0x8] sm:$0xff] %vm1746, %v1743
        %1749 = vrot.lane.b32.xlu0 %v387, 104
        %v1750 = vpop.permute.xlu0 %1749
        %1751 = vrot.lane.b32.xlu0 %v387, 72
        %v1752 = vpop.permute.xlu0 %1751
        %v1754 = vsel %vm393, %v1750, 0
        %v1757 = vsel %vm393, %v1752, 0
        %1759 = vmatprep.subr.bf16.mxu0 0
        %1760 = vmatpush1.bf16.xpose.msra.mxu0 %v1757
        %1761 = vmatprep.subr.bf16.mxu0 0
        %1762 = vmatpush1.bf16.xpose.msra.mxu0 0
        %1763 = vmatprep.subr.bf16.mxu0 0
        %1764 = vmatpush1.bf16.xpose.msra.mxu0 0
        %1765 = vmatprep.subr.bf16.mxu0 0
        %1766 = vmatpush1.bf16.xpose.msra.mxu0 0
        %1767 = vmatprep.subr.bf16.mxu0 0
        %1768 = vmatpush1.bf16.xpose.msra.mxu0 0
        %1769 = vmatprep.subr.bf16.mxu0 0
        %1770 = vmatpush1.bf16.xpose.msra.mxu0 0
        %1771 = vmatprep.subr.bf16.mxu0 0
        %1772 = vmatpush1.bf16.xpose.msra.mxu0 0
        %1773 = vmatprep.subr.bf16.mxu0 0
        %1774 = vmatpush1.bf16.xpose.msra.mxu0 0
        %1775 = vmatprep.subr.bf16.mxu0 0
        %1776 = vmatpush1.bf16.xpose.msra.mxu0 0
        %1777 = vmatprep.subr.bf16.mxu0 0
        %1778 = vmatpush1.bf16.xpose.msra.mxu0 0
        %1779 = vmatprep.subr.bf16.mxu0 0
        %1780 = vmatpush1.bf16.xpose.msra.mxu0 0
        %1781 = vmatprep.subr.bf16.mxu0 0
        %1782 = vmatpush1.bf16.xpose.msra.mxu0 0
        %1783 = vmatprep.subr.bf16.mxu0 0
        %1784 = vmatpush1.bf16.xpose.msra.mxu0 0
        %1785 = vmatprep.subr.bf16.mxu0 0
        %1786 = vmatpush1.bf16.xpose.msra.mxu0 0
        %1787 = vmatprep.subr.bf16.mxu0 0
        %1788 = vmatpush1.bf16.xpose.msra.mxu0 0
        %1789 = vmatprep.subr.bf16.mxu0 0
        %1790 = vmatpush1.bf16.xpose.msra.mxu0 0
        %1791 = vmatprep.mubr.bf16.mxu0 0
        %1792 = vmatmul.mubr.bf16.gmra.mrb[0].mxu0 %v1754
        %v1793 = vpop.f32.mrb[0].mxu0
        %v1794 = vadd.f32 0.0, %v1793
        %v1795 = vpop.f32.mrb[0].mxu0
        %v1796 = vpop.f32.mrb[0].mxu0
        %v1797 = vpop.f32.mrb[0].mxu0
        %1798 = vdwg.mxu0
        %1799 = vrot.lane.b32.xlu0 %v388, 104
        %v1800 = vpop.permute.xlu0 %1799
        %1801 = vrot.lane.b32.xlu0 %v388, 72
        %v1802 = vpop.permute.xlu0 %1801
        %v1804 = vsel %vm393, %v1800, 0
        %v1807 = vsel %vm393, %v1802, 0
        %1809 = vmatprep.subr.bf16.mxu0 0
        %1810 = vmatpush1.bf16.xpose.msra.mxu0 %v1807
        %1811 = vmatprep.subr.bf16.mxu0 0
        %1812 = vmatpush1.bf16.xpose.msra.mxu0 0
        %1813 = vmatprep.subr.bf16.mxu0 0
        %1814 = vmatpush1.bf16.xpose.msra.mxu0 0
        %1815 = vmatprep.subr.bf16.mxu0 0
        %1816 = vmatpush1.bf16.xpose.msra.mxu0 0
        %1817 = vmatprep.subr.bf16.mxu0 0
        %1818 = vmatpush1.bf16.xpose.msra.mxu0 0
        %1819 = vmatprep.subr.bf16.mxu0 0
        %1820 = vmatpush1.bf16.xpose.msra.mxu0 0
        %1821 = vmatprep.subr.bf16.mxu0 0
        %1822 = vmatpush1.bf16.xpose.msra.mxu0 0
        %1823 = vmatprep.subr.bf16.mxu0 0
        %1824 = vmatpush1.bf16.xpose.msra.mxu0 0
        %1825 = vmatprep.subr.bf16.mxu0 0
        %1826 = vmatpush1.bf16.xpose.msra.mxu0 0
        %1827 = vmatprep.subr.bf16.mxu0 0
        %1828 = vmatpush1.bf16.xpose.msra.mxu0 0
        %1829 = vmatprep.subr.bf16.mxu0 0
        %1830 = vmatpush1.bf16.xpose.msra.mxu0 0
        %1831 = vmatprep.subr.bf16.mxu0 0
        %1832 = vmatpush1.bf16.xpose.msra.mxu0 0
        %1833 = vmatprep.subr.bf16.mxu0 0
        %1834 = vmatpush1.bf16.xpose.msra.mxu0 0
        %1835 = vmatprep.subr.bf16.mxu0 0
        %1836 = vmatpush1.bf16.xpose.msra.mxu0 0
        %1837 = vmatprep.subr.bf16.mxu0 0
        %1838 = vmatpush1.bf16.xpose.msra.mxu0 0
        %1839 = vmatprep.subr.bf16.mxu0 0
        %1840 = vmatpush1.bf16.xpose.msra.mxu0 0
        %1841 = vmatprep.mubr.bf16.mxu0 0
        %1842 = vmatmul.mubr.bf16.gmra.mrb[0].mxu0 %v1804
        %v1843 = vpop.f32.mrb[0].mxu0
        %v1844 = vadd.f32 0.0, %v1843
        %v1845 = vpop.f32.mrb[0].mxu0
        %v1846 = vpop.f32.mrb[0].mxu0
        %v1847 = vpop.f32.mrb[0].mxu0
        %1848 = vdwg.mxu0
        %1849 = vrot.lane.b32.xlu0 %v389, 104
        %v1850 = vpop.permute.xlu0 %1849
        %1851 = vrot.lane.b32.xlu0 %v389, 72
        %v1852 = vpop.permute.xlu0 %1851
        %v1854 = vsel %vm393, %v1850, 0
        %v1857 = vsel %vm393, %v1852, 0
        %1859 = vmatprep.subr.bf16.mxu0 0
        %1860 = vmatpush1.bf16.xpose.msra.mxu0 %v1857
        %1861 = vmatprep.subr.bf16.mxu0 0
        %1862 = vmatpush1.bf16.xpose.msra.mxu0 0
        %1863 = vmatprep.subr.bf16.mxu0 0
        %1864 = vmatpush1.bf16.xpose.msra.mxu0 0
        %1865 = vmatprep.subr.bf16.mxu0 0
        %1866 = vmatpush1.bf16.xpose.msra.mxu0 0
        %1867 = vmatprep.subr.bf16.mxu0 0
        %1868 = vmatpush1.bf16.xpose.msra.mxu0 0
        %1869 = vmatprep.subr.bf16.mxu0 0
        %1870 = vmatpush1.bf16.xpose.msra.mxu0 0
        %1871 = vmatprep.subr.bf16.mxu0 0
        %1872 = vmatpush1.bf16.xpose.msra.mxu0 0
        %1873 = vmatprep.subr.bf16.mxu0 0
        %1874 = vmatpush1.bf16.xpose.msra.mxu0 0
        %1875 = vmatprep.subr.bf16.mxu0 0
        %1876 = vmatpush1.bf16.xpose.msra.mxu0 0
        %1877 = vmatprep.subr.bf16.mxu0 0
        %1878 = vmatpush1.bf16.xpose.msra.mxu0 0
        %1879 = vmatprep.subr.bf16.mxu0 0
        %1880 = vmatpush1.bf16.xpose.msra.mxu0 0
        %1881 = vmatprep.subr.bf16.mxu0 0
        %1882 = vmatpush1.bf16.xpose.msra.mxu0 0
        %1883 = vmatprep.subr.bf16.mxu0 0
        %1884 = vmatpush1.bf16.xpose.msra.mxu0 0
        %1885 = vmatprep.subr.bf16.mxu0 0
        %1886 = vmatpush1.bf16.xpose.msra.mxu0 0
        %1887 = vmatprep.subr.bf16.mxu0 0
        %1888 = vmatpush1.bf16.xpose.msra.mxu0 0
        %1889 = vmatprep.subr.bf16.mxu0 0
        %1890 = vmatpush1.bf16.xpose.msra.mxu0 0
        %1891 = vmatprep.mubr.bf16.mxu0 0
        %1892 = vmatmul.mubr.bf16.gmra.mrb[0].mxu0 %v1854
        %v1893 = vpop.f32.mrb[0].mxu0
        %v1894 = vadd.f32 0.0, %v1893
        %v1895 = vpop.f32.mrb[0].mxu0
        %v1896 = vpop.f32.mrb[0].mxu0
        %v1897 = vpop.f32.mrb[0].mxu0
        %1898 = vdwg.mxu0
        %1899 = vrot.lane.b32.xlu0 %v390, 104
        %v1900 = vpop.permute.xlu0 %1899
        %1901 = vrot.lane.b32.xlu0 %v390, 72
        %v1902 = vpop.permute.xlu0 %1901
        %v1904 = vsel %vm393, %v1900, 0
        %v1907 = vsel %vm393, %v1902, 0
        %1909 = vmatprep.subr.bf16.mxu0 0
        %1910 = vmatpush1.bf16.xpose.msra.mxu0 %v1907
        %1911 = vmatprep.subr.bf16.mxu0 0
        %1912 = vmatpush1.bf16.xpose.msra.mxu0 0
        %1913 = vmatprep.subr.bf16.mxu0 0
        %1914 = vmatpush1.bf16.xpose.msra.mxu0 0
        %1915 = vmatprep.subr.bf16.mxu0 0
        %1916 = vmatpush1.bf16.xpose.msra.mxu0 0
        %1917 = vmatprep.subr.bf16.mxu0 0
        %1918 = vmatpush1.bf16.xpose.msra.mxu0 0
        %1919 = vmatprep.subr.bf16.mxu0 0
        %1920 = vmatpush1.bf16.xpose.msra.mxu0 0
        %1921 = vmatprep.subr.bf16.mxu0 0
        %1922 = vmatpush1.bf16.xpose.msra.mxu0 0
        %1923 = vmatprep.subr.bf16.mxu0 0
        %1924 = vmatpush1.bf16.xpose.msra.mxu0 0
        %1925 = vmatprep.subr.bf16.mxu0 0
        %1926 = vmatpush1.bf16.xpose.msra.mxu0 0
        %1927 = vmatprep.subr.bf16.mxu0 0
        %1928 = vmatpush1.bf16.xpose.msra.mxu0 0
        %1929 = vmatprep.subr.bf16.mxu0 0
        %1930 = vmatpush1.bf16.xpose.msra.mxu0 0
        %1931 = vmatprep.subr.bf16.mxu0 0
        %1932 = vmatpush1.bf16.xpose.msra.mxu0 0
        %1933 = vmatprep.subr.bf16.mxu0 0
        %1934 = vmatpush1.bf16.xpose.msra.mxu0 0
        %1935 = vmatprep.subr.bf16.mxu0 0
        %1936 = vmatpush1.bf16.xpose.msra.mxu0 0
        %1937 = vmatprep.subr.bf16.mxu0 0
        %1938 = vmatpush1.bf16.xpose.msra.mxu0 0
        %1939 = vmatprep.subr.bf16.mxu0 0
        %1940 = vmatpush1.bf16.xpose.msra.mxu0 0
        %1941 = vmatprep.mubr.bf16.mxu0 0
        %1942 = vmatmul.mubr.bf16.gmra.mrb[0].mxu0 %v1904
        %v1943 = vpop.f32.mrb[0].mxu0
        %v1944 = vadd.f32 0.0, %v1943
        %v1945 = vpop.f32.mrb[0].mxu0
        %v1946 = vpop.f32.mrb[0].mxu0
        %v1947 = vpop.f32.mrb[0].mxu0
        %1948 = vdwg.mxu0
        %v1949 = vsel %vm585, %v1794, -1e+30
        %v1950 = vsel %vm585, %v1844, -1e+30
        %v1951 = vsel %vm585, %v1894, -1e+30
        %v1952 = vsel %vm585, %v1944, -1e+30
        %v1953 = vsel %vm393, %v1949, -inf
        %1954 = vmax.xlane.f32.xlu0 %v1953
        %v1955 = vpop.xlane.xlu0 %1954
        %v1956 = vsel %vm393, %v1950, -inf
        %1957 = vmax.xlane.f32.xlu0 %v1956
        %v1958 = vpop.xlane.xlu0 %1957
        %v1959 = vsel %vm393, %v1951, -inf
        %1960 = vmax.xlane.f32.xlu0 %v1959
        %v1961 = vpop.xlane.xlu0 %1960
        %v1962 = vsel %vm393, %v1952, -inf
        %1963 = vmax.xlane.f32.xlu0 %v1962
        %v1964 = vpop.xlane.xlu0 %1963
        %v1965 = vsub.f32 %v1949, %v1955
        %v1966 = vsub.f32 %v1950, %v1958
        %v1967 = vsub.f32 %v1951, %v1961
        %v1968 = vsub.f32 %v1952, %v1964
        %v1969 = vmul.f32 %v1965, 1.442695
        %v1970 = vpow.pop %v1969
        %v1971 = vmul.f32 %v1966, 1.442695
        %v1972 = vpow.pop %v1971
        %v1973 = vmul.f32 %v1967, 1.442695
        %v1974 = vpow.pop %v1973
        %v1975 = vmul.f32 %v1968, 1.442695
        %v1976 = vpow.pop %v1975
        %v1977 = vsel %vm393, %v1970, 0.0
        %1978 = vadd.xlane.f32.xlu0 %v1977
        %v1979 = vpop.xlane.xlu0 %1978
        %v1980 = vsel %vm393, %v1972, 0.0
        %1981 = vadd.xlane.f32.xlu0 %v1980
        %v1982 = vpop.xlane.xlu0 %1981
        %v1983 = vsel %vm393, %v1974, 0.0
        %1984 = vadd.xlane.f32.xlu0 %v1983
        %v1985 = vpop.xlane.xlu0 %1984
        %v1986 = vsel %vm393, %v1976, 0.0
        %1987 = vadd.xlane.f32.xlu0 %v1986
        %v1988 = vpop.xlane.xlu0 %1987
        %v1989 = vrcp.pop %v1979
        %v1990 = vrcp.pop %v1982
        %v1991 = vrcp.pop %v1985
        %v1992 = vrcp.pop %v1988
        %v1993 = vmul.f32 %v1970, %v1989
        %v1994 = vmul.f32 %v1972, %v1990
        %v1995 = vmul.f32 %v1974, %v1991
        %v1996 = vmul.f32 %v1976, %v1992
        %v1997 = vpack.c.bf16 %v1993, %v1993
        %v1998 = vpack.c.bf16 %v1994, %v1994
        %v1999 = vpack.c.bf16 %v1995, %v1995
        %v2000 = vpack.c.bf16 %v1996, %v1996
        %2001 = vrot.lane.b32.xlu0 %v387, 40
        %v2002 = vpop.permute.xlu0 %2001
        %v2004 = vsel %vm393, %v1997, 0
        %v2007 = vsel %vm643, %v2002, 0
        %2009 = vmatprep.subr.bf16.mxu0 0
        %2010 = vmatpush1.bf16.msra.mxu0 %v2007
        %2011 = vmatprep.subr.bf16.mxu0 0
        %2012 = vmatpush1.bf16.msra.mxu0 0
        %2013 = vmatprep.subr.bf16.mxu0 0
        %2014 = vmatpush1.bf16.msra.mxu0 0
        %2015 = vmatprep.subr.bf16.mxu0 0
        %2016 = vmatpush1.bf16.msra.mxu0 0
        %2017 = vmatprep.subr.bf16.mxu0 0
        %2018 = vmatpush1.bf16.msra.mxu0 0
        %2019 = vmatprep.subr.bf16.mxu0 0
        %2020 = vmatpush1.bf16.msra.mxu0 0
        %2021 = vmatprep.subr.bf16.mxu0 0
        %2022 = vmatpush1.bf16.msra.mxu0 0
        %2023 = vmatprep.subr.bf16.mxu0 0
        %2024 = vmatpush1.bf16.msra.mxu0 0
        %2025 = vmatprep.subr.bf16.mxu0 0
        %2026 = vmatpush1.bf16.msra.mxu0 0
        %2027 = vmatprep.subr.bf16.mxu0 0
        %2028 = vmatpush1.bf16.msra.mxu0 0
        %2029 = vmatprep.subr.bf16.mxu0 0
        %2030 = vmatpush1.bf16.msra.mxu0 0
        %2031 = vmatprep.subr.bf16.mxu0 0
        %2032 = vmatpush1.bf16.msra.mxu0 0
        %2033 = vmatprep.subr.bf16.mxu0 0
        %2034 = vmatpush1.bf16.msra.mxu0 0
        %2035 = vmatprep.subr.bf16.mxu0 0
        %2036 = vmatpush1.bf16.msra.mxu0 0
        %2037 = vmatprep.subr.bf16.mxu0 0
        %2038 = vmatpush1.bf16.msra.mxu0 0
        %2039 = vmatprep.subr.bf16.mxu0 0
        %2040 = vmatpush1.bf16.msra.mxu0 0
        %2041 = vmatprep.mubr.bf16.mxu0 0
        %2042 = vmatmul.mubr.bf16.gmra.mrb[0].mxu0 %v2004
        %v2043 = vpop.f32.mrb[0].mxu0
        %v2044 = vadd.f32 0.0, %v2043
        %v2045 = vpop.f32.mrb[0].mxu0
        %v2046 = vpop.f32.mrb[0].mxu0
        %v2047 = vpop.f32.mrb[0].mxu0
        %2048 = vdwg.mxu0
        %2049 = vrot.lane.b32.xlu0 %v388, 40
        %v2050 = vpop.permute.xlu0 %2049
        %v2052 = vsel %vm393, %v1998, 0
        %v2055 = vsel %vm643, %v2050, 0
        %2057 = vmatprep.subr.bf16.mxu0 0
        %2058 = vmatpush1.bf16.msra.mxu0 %v2055
        %2059 = vmatprep.subr.bf16.mxu0 0
        %2060 = vmatpush1.bf16.msra.mxu0 0
        %2061 = vmatprep.subr.bf16.mxu0 0
        %2062 = vmatpush1.bf16.msra.mxu0 0
        %2063 = vmatprep.subr.bf16.mxu0 0
        %2064 = vmatpush1.bf16.msra.mxu0 0
        %2065 = vmatprep.subr.bf16.mxu0 0
        %2066 = vmatpush1.bf16.msra.mxu0 0
        %2067 = vmatprep.subr.bf16.mxu0 0
        %2068 = vmatpush1.bf16.msra.mxu0 0
        %2069 = vmatprep.subr.bf16.mxu0 0
        %2070 = vmatpush1.bf16.msra.mxu0 0
        %2071 = vmatprep.subr.bf16.mxu0 0
        %2072 = vmatpush1.bf16.msra.mxu0 0
        %2073 = vmatprep.subr.bf16.mxu0 0
        %2074 = vmatpush1.bf16.msra.mxu0 0
        %2075 = vmatprep.subr.bf16.mxu0 0
        %2076 = vmatpush1.bf16.msra.mxu0 0
        %2077 = vmatprep.subr.bf16.mxu0 0
        %2078 = vmatpush1.bf16.msra.mxu0 0
        %2079 = vmatprep.subr.bf16.mxu0 0
        %2080 = vmatpush1.bf16.msra.mxu0 0
        %2081 = vmatprep.subr.bf16.mxu0 0
        %2082 = vmatpush1.bf16.msra.mxu0 0
        %2083 = vmatprep.subr.bf16.mxu0 0
        %2084 = vmatpush1.bf16.msra.mxu0 0
        %2085 = vmatprep.subr.bf16.mxu0 0
        %2086 = vmatpush1.bf16.msra.mxu0 0
        %2087 = vmatprep.subr.bf16.mxu0 0
        %2088 = vmatpush1.bf16.msra.mxu0 0
        %2089 = vmatprep.mubr.bf16.mxu0 0
        %2090 = vmatmul.mubr.bf16.gmra.mrb[0].mxu0 %v2052
        %v2091 = vpop.f32.mrb[0].mxu0
        %v2092 = vadd.f32 0.0, %v2091
        %v2093 = vpop.f32.mrb[0].mxu0
        %v2094 = vpop.f32.mrb[0].mxu0
        %v2095 = vpop.f32.mrb[0].mxu0
        %2096 = vdwg.mxu0
        %2097 = vrot.lane.b32.xlu0 %v389, 40
        %v2098 = vpop.permute.xlu0 %2097
        %v2100 = vsel %vm393, %v1999, 0
        %v2103 = vsel %vm643, %v2098, 0
        %2105 = vmatprep.subr.bf16.mxu0 0
        %2106 = vmatpush1.bf16.msra.mxu0 %v2103
        %2107 = vmatprep.subr.bf16.mxu0 0
        %2108 = vmatpush1.bf16.msra.mxu0 0
        %2109 = vmatprep.subr.bf16.mxu0 0
        %2110 = vmatpush1.bf16.msra.mxu0 0
        %2111 = vmatprep.subr.bf16.mxu0 0
        %2112 = vmatpush1.bf16.msra.mxu0 0
        %2113 = vmatprep.subr.bf16.mxu0 0
        %2114 = vmatpush1.bf16.msra.mxu0 0
        %2115 = vmatprep.subr.bf16.mxu0 0
        %2116 = vmatpush1.bf16.msra.mxu0 0
        %2117 = vmatprep.subr.bf16.mxu0 0
        %2118 = vmatpush1.bf16.msra.mxu0 0
        %2119 = vmatprep.subr.bf16.mxu0 0
        %2120 = vmatpush1.bf16.msra.mxu0 0
        %2121 = vmatprep.subr.bf16.mxu0 0
        %2122 = vmatpush1.bf16.msra.mxu0 0
        %2123 = vmatprep.subr.bf16.mxu0 0
        %2124 = vmatpush1.bf16.msra.mxu0 0
        %2125 = vmatprep.subr.bf16.mxu0 0
        %2126 = vmatpush1.bf16.msra.mxu0 0
        %2127 = vmatprep.subr.bf16.mxu0 0
        %2128 = vmatpush1.bf16.msra.mxu0 0
        %2129 = vmatprep.subr.bf16.mxu0 0
        %2130 = vmatpush1.bf16.msra.mxu0 0
        %2131 = vmatprep.subr.bf16.mxu0 0
        %2132 = vmatpush1.bf16.msra.mxu0 0
        %2133 = vmatprep.subr.bf16.mxu0 0
        %2134 = vmatpush1.bf16.msra.mxu0 0
        %2135 = vmatprep.subr.bf16.mxu0 0
        %2136 = vmatpush1.bf16.msra.mxu0 0
        %2137 = vmatprep.mubr.bf16.mxu0 0
        %2138 = vmatmul.mubr.bf16.gmra.mrb[0].mxu0 %v2100
        %v2139 = vpop.f32.mrb[0].mxu0
        %v2140 = vadd.f32 0.0, %v2139
        %v2141 = vpop.f32.mrb[0].mxu0
        %v2142 = vpop.f32.mrb[0].mxu0
        %v2143 = vpop.f32.mrb[0].mxu0
        %2144 = vdwg.mxu0
        %2145 = vrot.lane.b32.xlu0 %v390, 40
        %v2146 = vpop.permute.xlu0 %2145
        %v2148 = vsel %vm393, %v2000, 0
        %v2151 = vsel %vm643, %v2146, 0
        %2153 = vmatprep.subr.bf16.mxu0 0
        %2154 = vmatpush1.bf16.msra.mxu0 %v2151
        %2155 = vmatprep.subr.bf16.mxu0 0
        %2156 = vmatpush1.bf16.msra.mxu0 0
        %2157 = vmatprep.subr.bf16.mxu0 0
        %2158 = vmatpush1.bf16.msra.mxu0 0
        %2159 = vmatprep.subr.bf16.mxu0 0
        %2160 = vmatpush1.bf16.msra.mxu0 0
        %2161 = vmatprep.subr.bf16.mxu0 0
        %2162 = vmatpush1.bf16.msra.mxu0 0
        %2163 = vmatprep.subr.bf16.mxu0 0
        %2164 = vmatpush1.bf16.msra.mxu0 0
        %2165 = vmatprep.subr.bf16.mxu0 0
        %2166 = vmatpush1.bf16.msra.mxu0 0
        %2167 = vmatprep.subr.bf16.mxu0 0
        %2168 = vmatpush1.bf16.msra.mxu0 0
        %2169 = vmatprep.subr.bf16.mxu0 0
        %2170 = vmatpush1.bf16.msra.mxu0 0
        %2171 = vmatprep.subr.bf16.mxu0 0
        %2172 = vmatpush1.bf16.msra.mxu0 0
        %2173 = vmatprep.subr.bf16.mxu0 0
        %2174 = vmatpush1.bf16.msra.mxu0 0
        %2175 = vmatprep.subr.bf16.mxu0 0
        %2176 = vmatpush1.bf16.msra.mxu0 0
        %2177 = vmatprep.subr.bf16.mxu0 0
        %2178 = vmatpush1.bf16.msra.mxu0 0
        %2179 = vmatprep.subr.bf16.mxu0 0
        %2180 = vmatpush1.bf16.msra.mxu0 0
        %2181 = vmatprep.subr.bf16.mxu0 0
        %2182 = vmatpush1.bf16.msra.mxu0 0
        %2183 = vmatprep.subr.bf16.mxu0 0
        %2184 = vmatpush1.bf16.msra.mxu0 0
        %2185 = vmatprep.mubr.bf16.mxu0 0
        %2186 = vmatmul.mubr.bf16.gmra.mrb[0].mxu0 %v2148
        %v2187 = vpop.f32.mrb[0].mxu0
        %v2188 = vadd.f32 0.0, %v2187
        %v2189 = vpop.f32.mrb[0].mxu0
        %v2190 = vpop.f32.mrb[0].mxu0
        %v2191 = vpop.f32.mrb[0].mxu0
        %2192 = vdwg.mxu0
        %v2193 = vpack.c.bf16 %v2092, %v2044
        %v2194 = vpack.c.bf16 %v2188, %v2140
        %2197 = vrot.lane.b32.xlu0 %v2193, 24
        %v2198 = vpop.permute.xlu0 %2197
        %2199 = vrot.lane.b32.xlu0 %v2194, 24
        %v2200 = vpop.permute.xlu0 %2199
        %vm2203 = vcmask 261312
        %2204 = vst.msk [vmem:[#allocation2] sm:$0xff] %vm2203, %v2198
        %2205 = vst.msk [vmem:[#allocation2 + $0x8] sm:$0xff] %vm2203, %v2200
        %v2206 = vld [vmem:[#allocation2] sm:$0xff]
        %v2207 = vld [vmem:[#allocation2 + $0x8] sm:$0xff]
        %v2208 = vld [vmem:[#allocation8] sm:$0xf]
        %v2209 = vld [vmem:[#allocation8 + $0x4] sm:$0xf]
        %v2210 = vld [vmem:[#allocation8 + $0x8] sm:$0xf]
        %v2211 = vld [vmem:[#allocation8 + $0xc] sm:$0xf]
        %v2212 = vld [vmem:[%s4] sm:$0x1]
        %v2214 = vlaneseq
        %v2215 = vshrl.u32 %v2214, 7
        %v2216 = vsub.s32 0, %v2215
        %v2217 = vrot.slane %v2212, %v2216
        %v2223 = vunpack.c.l.b16 %v2208
        %v2224 = vunpack.c.l.b16 %v2209
        %v2225 = vunpack.c.l.b16 %v2210
        %v2226 = vunpack.c.l.b16 %v2211
        %v2227 = vpack.c.b16 %v2224, %v2223
        %v2228 = vpack.c.b16 %v2226, %v2225
        %v2232 = vsel %vm318, %v2206, 0
        %v2235 = vsel %vm318, %v2207, 0
        %2237 = vmatprep.subr.bf16.mxu0 0
        %2238 = vmatpush1.bf16.msra.mxu0 %v2227
        %2239 = vmatprep.subr.bf16.mxu0 0
        %2240 = vmatpush1.bf16.msra.mxu0 %v2228
        %2241 = vmatprep.subr.bf16.mxu0 0
        %2242 = vmatpush1.bf16.msra.mxu0 0
        %2243 = vmatprep.subr.bf16.mxu0 0
        %2244 = vmatpush1.bf16.msra.mxu0 0
        %2245 = vmatprep.subr.bf16.mxu0 0
        %2246 = vmatpush1.bf16.msra.mxu0 0
        %2247 = vmatprep.subr.bf16.mxu0 0
        %2248 = vmatpush1.bf16.msra.mxu0 0
        %2249 = vmatprep.subr.bf16.mxu0 0
        %2250 = vmatpush1.bf16.msra.mxu0 0
        %2251 = vmatprep.subr.bf16.mxu0 0
        %2252 = vmatpush1.bf16.msra.mxu0 0
        %2253 = vmatprep.subr.bf16.mxu0 0
        %2254 = vmatpush1.bf16.msra.mxu0 0
        %2255 = vmatprep.subr.bf16.mxu0 0
        %2256 = vmatpush1.bf16.msra.mxu0 0
        %2257 = vmatprep.subr.bf16.mxu0 0
        %2258 = vmatpush1.bf16.msra.mxu0 0
        %2259 = vmatprep.subr.bf16.mxu0 0
        %2260 = vmatpush1.bf16.msra.mxu0 0
        %2261 = vmatprep.subr.bf16.mxu0 0
        %2262 = vmatpush1.bf16.msra.mxu0 0
        %2263 = vmatprep.subr.bf16.mxu0 0
        %2264 = vmatpush1.bf16.msra.mxu0 0
        %2265 = vmatprep.subr.bf16.mxu0 0
        %2266 = vmatpush1.bf16.msra.mxu0 0
        %2267 = vmatprep.subr.bf16.mxu0 0
        %2268 = vmatpush1.bf16.msra.mxu0 0
        %2269 = vmatprep.mubr.bf16.mxu0 0
        %2270 = vmatmul.mubr.bf16.gmra.mrb[0].mxu0 %v2232
        %v2271 = vpop.f32.mrb[0].mxu0
        %v2272 = vadd.f32 %v2217, %v2271
        %v2273 = vpop.f32.mrb[0].mxu0
        %v2274 = vpop.f32.mrb[0].mxu0
        %v2275 = vadd.f32 %v2217, %v2274
        %v2276 = vpop.f32.mrb[0].mxu0
        %2277 = vmatprep.mubr.bf16.mxu0 0
        %2278 = vmatmul.mubr.bf16.gmra.mrb[0].mxu0 %v2235
        %v2279 = vpop.f32.mrb[0].mxu0
        %v2280 = vadd.f32 %v2217, %v2279
        %v2281 = vpop.f32.mrb[0].mxu0
        %v2282 = vpop.f32.mrb[0].mxu0
        %v2283 = vadd.f32 %v2217, %v2282
        %v2284 = vpop.f32.mrb[0].mxu0
        %2285 = vdwg.mxu0
        %2286 = vst.msk [vmem:[%s277] sm:$0xff] %vm318, %v2272
        %2287 = vst.msk [vmem:[%s277 + $0x8] sm:$0xff] %vm318, %v2275
        %2288 = vst.msk [vmem:[%s277 + $0x10] sm:$0xff] %vm318, %v2280
        %2289 = vst.msk [vmem:[%s277 + $0x18] sm:$0xff] %vm318, %v2283
        %s2290 = sand.u32 %s141, 1
        %s2291 = scalar_lea.sflag [#allocation5], %s2290
        %s2292 = sand.u32 %s141, 1
        %s2293 = smul.addr %s2292, 32
        %s2294 = scalar_lea.vmem [#allocation9], %s2293
        // Predicated region
        $region53: #{tpu_custom_call.1} parent=39 // pred_check
          %p2295 = pneg %p151
        $region54: #{tpu_custom_call.1} parent=39 // pred_check_branch
          %2297 = sbr.rel (%p2295) target = $region56
        $region55: #{tpu_custom_call.1} parent=39 // pred_region
          %s2298 = smul.u32 4, %s23
          %s2299 = ssub.s32 6, %s2298
          %p2300 = scmp.lt.s32.totalorder %s2299, 4
          %s2301 = scalar_select %p2300, %s2299, 4
          %s2302 = smul.u32 128, %s2301
          %s2304 = ssub.s32 512, %s2302
          %2305 = vsyncadd %s2291, %s2304
          %p2306 = scmp.ne.s32.totalorder 0, %s2302
          %s2307 = smul.addr %s2298, 128
          %s2308 = scalar_lea.hbm %s5, %s2307
          %s2309 = smul.u32 8, %s2301
          %s2310 = sshll.u32 %s2294, 4
          %s2311 = int_to_ptr.vmem [resolvable:$true] %s2310
          %s2312 = sshll.u32 %s2309, 4
          %2316 = dma.vmem_to_hbm [thread:$0]  (%p2306), %s2311, %s2312, %s2308, %s2291, 128, 128, 8
        $region56: #{tpu_custom_call.1} parent=39 // pred_fallthru
          _
      $region40: #{tpu_custom_call.1} parent=5 // pred_fallthru
        _
      %p2317 = scmp.le.s32.totalorder 2, %s18
      // Predicated region
      $region57: #{tpu_custom_call.1} parent=5 // pred_check
        %p2318 = pneg %p2317
      $region58: #{tpu_custom_call.1} parent=5 // pred_check_branch
        %2320 = sbr.rel (%p2318) target = $region60
      $region59: #{tpu_custom_call.1} parent=5 // pred_region
        %s2321 = ssub.s32 %s18, 2
        // Predicated region
        $region61: #{tpu_custom_call.1} parent=59 // pred_check
          %p2322 = pneg %p157
        $region62: #{tpu_custom_call.1} parent=59 // pred_check_branch
          %2324 = sbr.rel (%p2322) target = $region64
        $region63: #{tpu_custom_call.1} parent=59 // pred_region
          %s2325 = sand.u32 %s142, 1
          %s2326 = scalar_lea.sflag [#allocation5], %s2325
          %s2327 = sand.u32 %s142, 1
          %s2328 = smul.addr %s2327, 32
          %s2329 = scalar_lea.vmem [#allocation9], %s2328
          %2330 = dma.done %s2326, 512
        $region64: #{tpu_custom_call.1} parent=59 // pred_fallthru
          _
      $region60: #{tpu_custom_call.1} parent=5 // pred_fallthru
        _
    $region6: #{tpu_custom_call.1} parent=1 // loop_footer
      %s22 = sadd.s32 1, %s18
    $region7: #{tpu_custom_call.1} parent=1 // loop_footer_branch
      %17 = sbr.rel target = $region3
    $region8: #{tpu_custom_call.1} parent=1 // loop_exit
      _
    %2331 = vsyncpa [#allocation4], 1
    %s2332 = scalar_lea.sflag [#allocation4], 1
    %2333 = vsyncpa %s2332, 1
    %2334 = vsyncpa [#allocation7], 1
    %2335 = vsyncpa [#allocation5], 1
    %s2336 = scalar_lea.sflag [#allocation5], 1
    %2337 = vsyncpa %s2336, 1

// kernel: tpu_custom_call.1
$region0: #{tpu_custom_call.1}
  #allocation0 [shape = 'u32[]', space=smem, size = 0x4, offset = 0x4, fixed_abs, tag = 'smem constant byte address 0x4 - core index']
  #allocation1 [shape = 'u32[144,128]{1,0:T(1,128)}', space=vmem, size = 0x12000, scoped, tag = 'internal scratch']
  #allocation2 [shape = 'bf16[32,32]{1,0:T(16,128)(2,1)}', space=vmem, size = 0x2000, scoped, tag = 'scratch operand']
  %s0 = inlined_call_operand.hbm [shape: f32[6,8,32], index: 0, kind: input, shape index: {}]
  %s1 = inlined_call_operand.hbm [shape: bf16[32,96], index: 1, kind: input, shape index: {}]
  %s2 = inlined_call_operand.vmem [shape: f32[1,96], index: 2, kind: input, shape index: {}]
  %s3 = inlined_call_operand.hbm [shape: bf16[32,32], index: 3, kind: input, shape index: {}]
  %s4 = inlined_call_operand.vmem [shape: f32[1,32], index: 4, kind: input, shape index: {}]
  %s5 = inlined_call_operand.hbm [shape: f32[6,8,32], index: 5, kind: output, shape index: {}]
  %s6 = sld [smem:[#allocation0]]
  $region65: #{tpu_custom_call.1} parent=0
    _
  %s8 = ssub.s32 1, %s6
  %s9 = scalar_select 0, %s8, %s6
  $region1: #{tpu_custom_call.1} parent=0
    #allocation3 [shape = 'u8[32768]{0}', space=vmem, size = 0x8000, scoped, tag = 'input window, operand 0']
    #allocation4 [shape = 's32[2]{0}', space=sflag, size = 0x8, scoped, tag = 'scoped memory for tpu_custom_call.1']
    #allocation5 [shape = 's32[2]{0}', space=sflag, size = 0x8, scoped, tag = 'scoped memory for tpu_custom_call.1']
    #allocation6 [shape = 'u8[8192]{0}', space=vmem, size = 0x2000, scoped, tag = 'input window, operand 1, single buffered']
    #allocation7 [shape = 's32[1]{0}', space=sflag, size = 0x4, scoped, tag = 'scoped memory for tpu_custom_call.1']
    #allocation8 [shape = 'u8[8192]{0}', space=vmem, size = 0x2000, scoped, tag = 'input window, operand 3, single buffered']
    #allocation9 [shape = 'u8[32768]{0}', space=vmem, size = 0x8000, scoped, tag = 'output window, operand 0']
    %10 = vsyncpa [#allocation4], 0
    %s11 = scalar_lea.sflag [#allocation4], 1
    %12 = vsyncpa %s11, 0
    %13 = vsyncpa [#allocation7], 0
    %14 = vsyncpa [#allocation5], 0
    %s15 = scalar_lea.sflag [#allocation5], 1
    %16 = vsyncpa %s15, 0
    loop: start=0, step=1, limit=4
    $region2: #{tpu_custom_call.1} parent=1 // loop_pre_header
      _
    $region3: #{tpu_custom_call.1} parent=1 // loop_header
      %s18 = sphi 0, %s22
      %p19 = scmp.ge.s32.totalorder %s18, 4
      %s28 = sphi 0, %s30
      %s31 = sphi 0, %s28
      %s32 = sphi 0, %s31
      %s48 = sphi 0, %s32
      %s52 = sphi 0, %s52
      %s54 = sphi 0, %s52
      %s55 = sphi 0, %s54
      %s69 = sphi 0, %s55
      %s73 = sphi 0, %s73
      %s75 = sphi 0, %s73
      %s76 = sphi 0, %s75
      %s90 = sphi 0, %s76
      %s94 = sphi 0, %s94
      %s96 = sphi 0, %s94
      %s97 = sphi 0, %s96
      %s111 = sphi 0, %s97
      %s115 = sphi 0, %s115
      %s117 = sphi 0, %s115
      %s118 = sphi 0, %s117
      %s132 = sphi 0, %s118
      %s138 = sphi 0, %s140
      %s141 = sphi 0, %s138
      %s142 = sphi 0, %s141
      %s158 = sphi 0, %s142
    $region4: #{tpu_custom_call.1} parent=1 // loop_header_branch
      %21 = sbr.rel (%p19) target = $region8
    $region5: #{tpu_custom_call.1} parent=1 // loop_body
      %s23 = ssub.s32 %s18, 1
      %s24 = ssub.s32 %s18, 2
      %s25 = sadd.s32 %s18, 1
      %s26 = ssub.s32 %s18, %s25
      %p27 = scmp.eq.s32.totalorder %s26, 0
      %s29 = sadd.s32 %s28, 1
      %s30 = scalar_select %p27, %s28, %s29
      %p33 = pneg %p27
      %p34 = scmp.eq.s32.totalorder %s18, 1
      %p35 = por %p33, %p34
      %p36 = scmp.ne.s32.totalorder %s28, %s31
      %p37 = scmp.eq.s32.totalorder %s18, 0
      %p38 = por %p36, %p37
      %p39 = scmp.ne.s32.totalorder %s28, %s31
      %p40 = scmp.eq.s32.totalorder %s23, 1
      %p41 = por %p39, %p40
      %p42 = scmp.ne.s32.totalorder %s31, %s32
      %p43 = scmp.eq.s32.totalorder %s23, 0
      %p44 = por %p42, %p43
      %p45 = scmp.ne.s32.totalorder %s31, %s32
      %p46 = scmp.eq.s32.totalorder %s24, 1
      %p47 = por %p45, %p46
      %p49 = scmp.ne.s32.totalorder %s32, %s48
      %p50 = scmp.eq.s32.totalorder %s24, 0
      %p51 = por %p49, %p50
      %s53 = sadd.s32 %s52, 1
      %p56 = scmp.eq.s32.totalorder %s18, 1
      %p57 = scmp.ne.s32.totalorder %s52, %s54
      %p58 = scmp.eq.s32.totalorder %s18, 0
      %p59 = por %p57, %p58
      %p60 = scmp.ne.s32.totalorder %s52, %s54
      %p61 = scmp.eq.s32.totalorder %s23, 1
      %p62 = por %p60, %p61
      %p63 = scmp.ne.s32.totalorder %s54, %s55
      %p64 = scmp.eq.s32.totalorder %s23, 0
      %p65 = por %p63, %p64
      %p66 = scmp.ne.s32.totalorder %s54, %s55
      %p67 = scmp.eq.s32.totalorder %s24, 1
      %p68 = por %p66, %p67
      %p70 = scmp.ne.s32.totalorder %s55, %s69
      %p71 = scmp.eq.s32.totalorder %s24, 0
      %p72 = por %p70, %p71
      %s74 = sadd.s32 %s73, 1
      %p77 = scmp.eq.s32.totalorder %s18, 1
      %p78 = scmp.ne.s32.totalorder %s73, %s75
      %p79 = scmp.eq.s32.totalorder %s18, 0
      %p80 = por %p78, %p79
      %p81 = scmp.ne.s32.totalorder %s73, %s75
      %p82 = scmp.eq.s32.totalorder %s23, 1
      %p83 = por %p81, %p82
      %p84 = scmp.ne.s32.totalorder %s75, %s76
      %p85 = scmp.eq.s32.totalorder %s23, 0
      %p86 = por %p84, %p85
      %p87 = scmp.ne.s32.totalorder %s75, %s76
      %p88 = scmp.eq.s32.totalorder %s24, 1
      %p89 = por %p87, %p88
      %p91 = scmp.ne.s32.totalorder %s76, %s90
      %p92 = scmp.eq.s32.totalorder %s24, 0
      %p93 = por %p91, %p92
      %s95 = sadd.s32 %s94, 1
      %p98 = scmp.eq.s32.totalorder %s18, 1
      %p99 = scmp.ne.s32.totalorder %s94, %s96
      %p100 = scmp.eq.s32.totalorder %s18, 0
      %p101 = por %p99, %p100
      %p102 = scmp.ne.s32.totalorder %s94, %s96
      %p103 = scmp.eq.s32.totalorder %s23, 1
      %p104 = por %p102, %p103
      %p105 = scmp.ne.s32.totalorder %s96, %s97
      %p106 = scmp.eq.s32.totalorder %s23, 0
      %p107 = por %p105, %p106
      %p108 = scmp.ne.s32.totalorder %s96, %s97
      %p109 = scmp.eq.s32.totalorder %s24, 1
      %p110 = por %p108, %p109
      %p112 = scmp.ne.s32.totalorder %s97, %s111
      %p113 = scmp.eq.s32.totalorder %s24, 0
      %p114 = por %p112, %p113
      %s116 = sadd.s32 %s115, 1
      %p119 = scmp.eq.s32.totalorder %s18, 1
      %p120 = scmp.ne.s32.totalorder %s115, %s117
      %p121 = scmp.eq.s32.totalorder %s18, 0
      %p122 = por %p120, %p121
      %p123 = scmp.ne.s32.totalorder %s115, %s117
      %p124 = scmp.eq.s32.totalorder %s23, 1
      %p125 = por %p123, %p124
      %p126 = scmp.ne.s32.totalorder %s117, %s118
      %p127 = scmp.eq.s32.totalorder %s23, 0
      %p128 = por %p126, %p127
      %p129 = scmp.ne.s32.totalorder %s117, %s118
      %p130 = scmp.eq.s32.totalorder %s24, 1
      %p131 = por %p129, %p130
      %p133 = scmp.ne.s32.totalorder %s118, %s132
      %p134 = scmp.eq.s32.totalorder %s24, 0
      %p135 = por %p133, %p134
      %s136 = ssub.s32 %s18, %s25
      %p137 = scmp.eq.s32.totalorder %s136, 0
      %s139 = sadd.s32 %s138, 1
      %s140 = scalar_select %p137, %s138, %s139
      %p143 = pneg %p137
      %p144 = scmp.eq.s32.totalorder %s18, 1
      %p145 = por %p143, %p144
      %p146 = scmp.ne.s32.totalorder %s138, %s141
      %p147 = scmp.eq.s32.totalorder %s18, 0
      %p148 = por %p146, %p147
      %p149 = scmp.ne.s32.totalorder %s138, %s141
      %p150 = scmp.eq.s32.totalorder %s23, 1
      %p151 = por %p149, %p150
      %p152 = scmp.ne.s32.totalorder %s141, %s142
      %p153 = scmp.eq.s32.totalorder %s23, 0
      %p154 = por %p152, %p153
      %p155 = scmp.ne.s32.totalorder %s141, %s142
      %p156 = scmp.eq.s32.totalorder %s24, 1
      %p157 = por %p155, %p156
      %p159 = scmp.ne.s32.totalorder %s142, %s158
      %p160 = scmp.eq.s32.totalorder %s24, 0
      %p161 = por %p159, %p160
      %p162 = scmp.le.s32.totalorder 1, %s18
      %p163 = scmp.lt.s32.totalorder %s18, 3
      %p164 = pnand %p162, %p163
      %p165 = pneg %p164
      // Predicated region
      $region9: #{tpu_custom_call.1} parent=5 // pred_check
        _
      $region10: #{tpu_custom_call.1} parent=5 // pred_check_branch
        %167 = sbr.rel (%p164) target = $region12
      $region11: #{tpu_custom_call.1} parent=5 // pred_region
        %s168 = ssub.s32 %s18, 1
        // Predicated region
        $region13: #{tpu_custom_call.1} parent=11 // pred_check
          %p169 = pneg %p65
        $region14: #{tpu_custom_call.1} parent=11 // pred_check_branch
          %171 = sbr.rel (%p169) target = $region16
        $region15: #{tpu_custom_call.1} parent=11 // pred_region
          %s173 = ssub.s32 256, 256
          %174 = vsyncadd [#allocation7], %s173
          %s175 = sshll.u32 [#allocation6], 4
          %s176 = int_to_ptr.vmem [resolvable:$true] %s175
          %181 = dma.hbm_to_vmem [thread:$0]  %s1, 256, %s176, [#allocation7], 64, 64, 4
        $region16: #{tpu_custom_call.1} parent=11 // pred_fallthru
          _
        // Predicated region
        $region17: #{tpu_custom_call.1} parent=11 // pred_check
          %p182 = pneg %p86
        $region18: #{tpu_custom_call.1} parent=11 // pred_check_branch
          %184 = sbr.rel (%p182) target = $region20
        $region19: #{tpu_custom_call.1} parent=11 // pred_region
          _
        $region20: #{tpu_custom_call.1} parent=11 // pred_fallthru
          _
        // Predicated region
        $region21: #{tpu_custom_call.1} parent=11 // pred_check
          %p185 = pneg %p107
        $region22: #{tpu_custom_call.1} parent=11 // pred_check_branch
          %187 = sbr.rel (%p185) target = $region24
        $region23: #{tpu_custom_call.1} parent=11 // pred_region
          %s189 = ssub.s32 256, 256
          %190 = vsyncadd [#allocation7], %s189
          %s191 = sshll.u32 [#allocation8], 4
          %s192 = int_to_ptr.vmem [resolvable:$true] %s191
          %197 = dma.hbm_to_vmem [thread:$0]  %s3, 256, %s192, [#allocation7], 64, 64, 4
        $region24: #{tpu_custom_call.1} parent=11 // pred_fallthru
          _
        // Predicated region
        $region25: #{tpu_custom_call.1} parent=11 // pred_check
          %p198 = pneg %p128
        $region26: #{tpu_custom_call.1} parent=11 // pred_check_branch
          %200 = sbr.rel (%p198) target = $region28
        $region27: #{tpu_custom_call.1} parent=11 // pred_region
          _
        $region28: #{tpu_custom_call.1} parent=11 // pred_fallthru
          _
      $region12: #{tpu_custom_call.1} parent=5 // pred_fallthru
        _
      %p201 = scmp.lt.s32.totalorder %s18, 2
      // Predicated region
      $region29: #{tpu_custom_call.1} parent=5 // pred_check
        %p202 = pneg %p201
      $region30: #{tpu_custom_call.1} parent=5 // pred_check_branch
        %204 = sbr.rel (%p202) target = $region32
      $region31: #{tpu_custom_call.1} parent=5 // pred_region
        // Predicated region
        $region33: #{tpu_custom_call.1} parent=31 // pred_check
          %p205 = pneg %p38
        $region34: #{tpu_custom_call.1} parent=31 // pred_check_branch
          %207 = sbr.rel (%p205) target = $region36
        $region35: #{tpu_custom_call.1} parent=31 // pred_region
          %s208 = sand.u32 %s28, 1
          %s209 = scalar_lea.sflag [#allocation4], %s208
          %s210 = sand.u32 %s28, 1
          %s211 = smul.addr %s210, 32
          %s212 = scalar_lea.vmem [#allocation3], %s211
          %s213 = smul.u32 4, %s18
          %s214 = ssub.s32 6, %s213
          %p215 = scmp.lt.s32.totalorder %s214, 4
          %s216 = scalar_select %p215, %s214, 4
          %s217 = smul.u32 128, %s216
          %s219 = ssub.s32 512, %s217
          %220 = vsyncadd %s209, %s219
          %p221 = scmp.ne.s32.totalorder 0, %s217
          %s222 = smul.addr %s213, 128
          %s223 = scalar_lea.hbm %s0, %s222
          %s224 = smul.u32 8, %s216
          %s225 = sshll.u32 %s212, 4
          %s226 = int_to_ptr.vmem [resolvable:$true] %s225
          %s227 = sshll.u32 %s224, 4
          %231 = dma.hbm_to_vmem [thread:$0]  (%p221), %s223, %s227, %s226, %s209, 128, 128, 8
        $region36: #{tpu_custom_call.1} parent=31 // pred_fallthru
          _
      $region32: #{tpu_custom_call.1} parent=5 // pred_fallthru
        _
      %p232 = scmp.le.s32.totalorder 1, %s18
      %p233 = scmp.lt.s32.totalorder %s18, 3
      %p234 = pnand %p232, %p233
      %p235 = pneg %p234
      // Predicated region
      $region37: #{tpu_custom_call.1} parent=5 // pred_check
        _
      $region38: #{tpu_custom_call.1} parent=5 // pred_check_branch
        %237 = sbr.rel (%p234) target = $region40
      $region39: #{tpu_custom_call.1} parent=5 // pred_region
        %s238 = ssub.s32 %s18, 1
        %s239 = sand.u32 %s31, 1
        %s240 = scalar_lea.sflag [#allocation4], %s239
        %s241 = sand.u32 %s31, 1
        %s242 = smul.addr %s241, 32
        %s243 = scalar_lea.vmem [#allocation3], %s242
        // Predicated region
        $region41: #{tpu_custom_call.1} parent=39 // pred_check
          %p244 = pneg %p44
        $region42: #{tpu_custom_call.1} parent=39 // pred_check_branch
          %246 = sbr.rel (%p244) target = $region44
        $region43: #{tpu_custom_call.1} parent=39 // pred_region
          %247 = dma.done %s240, 512
        $region44: #{tpu_custom_call.1} parent=39 // pred_fallthru
          _
        // Predicated region
        $region45: #{tpu_custom_call.1} parent=39 // pred_check
          %p248 = pneg %p65
        $region46: #{tpu_custom_call.1} parent=39 // pred_check_branch
          %250 = sbr.rel (%p248) target = $region48
        $region47: #{tpu_custom_call.1} parent=39 // pred_region
          %251 = dma.done [#allocation7], 256
        $region48: #{tpu_custom_call.1} parent=39 // pred_fallthru
          _
        // Predicated region
        $region49: #{tpu_custom_call.1} parent=39 // pred_check
          %p252 = pneg %p107
        $region50: #{tpu_custom_call.1} parent=39 // pred_check_branch
          %254 = sbr.rel (%p252) target = $region52
        $region51: #{tpu_custom_call.1} parent=39 // pred_region
          %255 = dma.done [#allocation7], 256
        $region52: #{tpu_custom_call.1} parent=39 // pred_fallthru
          _
        %s256 = sand.u32 %s31, 1
        %s257 = scalar_lea.sflag [#allocation4], %s256
        %s258 = sand.u32 %s31, 1
        %s259 = smul.addr %s258, 32
        %s260 = scalar_lea.vmem [#allocation3], %s259
        %p261 = pneg %p44
        %p262 = pneg %p41
        %p263 = pneg %p65
        %p264 = pneg %p62
        %p265 = pneg %p86
        %p266 = pneg %p83
        %p267 = pneg %p107
        %p268 = pneg %p104
        %p269 = pneg %p128
        %p270 = pneg %p125
        %p271 = pneg %p154
        %p272 = pneg %p151
        %s273 = sand.u32 %s141, 1
        %s274 = scalar_lea.sflag [#allocation5], %s273
        %s275 = sand.u32 %s141, 1
        %s276 = smul.addr %s275, 32
        %s277 = scalar_lea.vmem [#allocation9], %s276
        %s278 = smul.u32 4, %s23
        %s279 = ssub.s32 6, %s278
        %p280 = scmp.lt.s32.totalorder %s279, 4
        %s281 = scalar_select %p280, %s279, 4
        %s282 = smul.u32 128, %s281
        %s283 = smul.u32 4, %s23
        %s284 = ssub.s32 6, %s283
        %p285 = scmp.lt.s32.totalorder %s284, 4
        %s286 = scalar_select %p285, %s284, 4
        %s287 = smul.u32 128, %s286
        %v289 = vld [vmem:[%s243] sm:$0xff]
        %v290 = vld [vmem:[%s243 + $0x8] sm:$0xff]
        %v291 = vld [vmem:[%s243 + $0x10] sm:$0xff]
        %v292 = vld [vmem:[%s243 + $0x18] sm:$0xff]
        %v293 = vpack.c.bf16 %v290, %v289
        %v294 = vpack.c.bf16 %v292, %v291
        %v295 = vld [vmem:[#allocation6] sm:$0xf]
        %v296 = vld [vmem:[#allocation6 + $0x4] sm:$0xf]
        %v297 = vld [vmem:[#allocation6 + $0x8] sm:$0xf]
        %v298 = vld [vmem:[#allocation6 + $0xc] sm:$0xf]
        %v299 = vld [vmem:[%s2] sm:$0x1]
        %v301 = vlaneseq
        %v302 = vshrl.u32 %v301, 7
        %v303 = vsub.s32 0, %v302
        %v304 = vrot.slane %v299, %v303
        %v310 = vunpack.c.l.b16 %v295
        %v311 = vunpack.c.l.b16 %v296
        %v312 = vunpack.c.l.b16 %v297
        %v313 = vunpack.c.l.b16 %v298
        %v314 = vpack.c.b16 %v311, %v310
        %v315 = vpack.c.b16 %v313, %v312
        %vm318 = vcmask 261120
        %v320 = vsel %vm318, %v293, 0
        %v323 = vsel %vm318, %v294, 0
        %325 = vmatprep.subr.bf16.mxu0 0
        %326 = vmatpush1.bf16.msra.mxu0 %v314
        %327 = vmatprep.subr.bf16.mxu0 0
        %328 = vmatpush1.bf16.msra.mxu0 %v315
        %329 = vmatprep.subr.bf16.mxu0 0
        %330 = vmatpush1.bf16.msra.mxu0 0
        %331 = vmatprep.subr.bf16.mxu0 0
        %332 = vmatpush1.bf16.msra.mxu0 0
        %333 = vmatprep.subr.bf16.mxu0 0
        %334 = vmatpush1.bf16.msra.mxu0 0
        %335 = vmatprep.subr.bf16.mxu0 0
        %336 = vmatpush1.bf16.msra.mxu0 0
        %337 = vmatprep.subr.bf16.mxu0 0
        %338 = vmatpush1.bf16.msra.mxu0 0
        %339 = vmatprep.subr.bf16.mxu0 0
        %340 = vmatpush1.bf16.msra.mxu0 0
        %341 = vmatprep.subr.bf16.mxu0 0
        %342 = vmatpush1.bf16.msra.mxu0 0
        %343 = vmatprep.subr.bf16.mxu0 0
        %344 = vmatpush1.bf16.msra.mxu0 0
        %345 = vmatprep.subr.bf16.mxu0 0
        %346 = vmatpush1.bf16.msra.mxu0 0
        %347 = vmatprep.subr.bf16.mxu0 0
        %348 = vmatpush1.bf16.msra.mxu0 0
        %349 = vmatprep.subr.bf16.mxu0 0
        %350 = vmatpush1.bf16.msra.mxu0 0
        %351 = vmatprep.subr.bf16.mxu0 0
        %352 = vmatpush1.bf16.msra.mxu0 0
        %353 = vmatprep.subr.bf16.mxu0 0
        %354 = vmatpush1.bf16.msra.mxu0 0
        %355 = vmatprep.subr.bf16.mxu0 0
        %356 = vmatpush1.bf16.msra.mxu0 0
        %357 = vmatprep.mubr.bf16.mxu0 0
        %358 = vmatmul.mubr.bf16.gmra.mrb[0].mxu0 %v320
        %v359 = vpop.f32.mrb[0].mxu0
        %v360 = vadd.f32 %v304, %v359
        %v361 = vpop.f32.mrb[0].mxu0
        %v362 = vpop.f32.mrb[0].mxu0
        %v363 = vadd.f32 %v304, %v362
        %v364 = vpop.f32.mrb[0].mxu0
        %365 = vmatprep.mubr.bf16.mxu0 0
        %366 = vmatmul.mubr.bf16.gmra.mrb[0].mxu0 %v323
        %v367 = vpop.f32.mrb[0].mxu0
        %v368 = vadd.f32 %v304, %v367
        %v369 = vpop.f32.mrb[0].mxu0
        %v370 = vpop.f32.mrb[0].mxu0
        %v371 = vadd.f32 %v304, %v370
        %v372 = vpop.f32.mrb[0].mxu0
        %373 = vdwg.mxu0
        %v374 = vpack.c.bf16 %v363, %v360
        %v375 = vpack.c.bf16 %v371, %v368
        %v376 = vlaneseq
        %v377 = vshrl.u32 %v376, 7
        %v378 = vlaneseq
        %v379 = vand.u32 %v378, 127
        %vm380 = vcmp.le.s32.totalorder %v379, %v377
        %v383 = vunpack.c.l.b16 %v374
        %v384 = vunpack.c.h.b16 %v374
        %v385 = vunpack.c.l.b16 %v375
        %v386 = vunpack.c.h.b16 %v375
        %v387 = vpack.c.b16 %v383, %v383
        %v388 = vpack.c.b16 %v384, %v384
        %v389 = vpack.c.b16 %v385, %v385
        %v390 = vpack.c.b16 %v386, %v386
        %391 = vrot.lane.b32.xlu0 %v387, 96
        %v392 = vpop.permute.xlu0 %391
        %vm393 = vcmask 64512
        %v395 = vsel %vm393, %v387, 0
        %v398 = vsel %vm393, %v392, 0
        %400 = vmatprep.subr.bf16.mxu0 0
        %401 = vmatpush1.bf16.xpose.msra.mxu0 %v398
        %402 = vmatprep.subr.bf16.mxu0 0
        %403 = vmatpush1.bf16.xpose.msra.mxu0 0
        %404 = vmatprep.subr.bf16.mxu0 0
        %405 = vmatpush1.bf16.xpose.msra.mxu0 0
        %406 = vmatprep.subr.bf16.mxu0 0
        %407 = vmatpush1.bf16.xpose.msra.mxu0 0
        %408 = vmatprep.subr.bf16.mxu0 0
        %409 = vmatpush1.bf16.xpose.msra.mxu0 0
        %410 = vmatprep.subr.bf16.mxu0 0
        %411 = vmatpush1.bf16.xpose.msra.mxu0 0
        %412 = vmatprep.subr.bf16.mxu0 0
        %413 = vmatpush1.bf16.xpose.msra.mxu0 0
        %414 = vmatprep.subr.bf16.mxu0 0
        %415 = vmatpush1.bf16.xpose.msra.mxu0 0
        %416 = vmatprep.subr.bf16.mxu0 0
        %417 = vmatpush1.bf16.xpose.msra.mxu0 0
        %418 = vmatprep.subr.bf16.mxu0 0
        %419 = vmatpush1.bf16.xpose.msra.mxu0 0
        %420 = vmatprep.subr.bf16.mxu0 0
        %421 = vmatpush1.bf16.xpose.msra.mxu0 0
        %422 = vmatprep.subr.bf16.mxu0 0
        %423 = vmatpush1.bf16.xpose.msra.mxu0 0
        %424 = vmatprep.subr.bf16.mxu0 0
        %425 = vmatpush1.bf16.xpose.msra.mxu0 0
        %426 = vmatprep.subr.bf16.mxu0 0
        %427 = vmatpush1.bf16.xpose.msra.mxu0 0
        %428 = vmatprep.subr.bf16.mxu0 0
        %429 = vmatpush1.bf16.xpose.msra.mxu0 0
        %430 = vmatprep.subr.bf16.mxu0 0
        %431 = vmatpush1.bf16.xpose.msra.mxu0 0
        %432 = vmatprep.mubr.bf16.mxu0 0
        %433 = vmatmul.mubr.bf16.gmra.mrb[0].mxu0 %v395
        %v434 = vpop.f32.mrb[0].mxu0
        %v435 = vadd.f32 0.0, %v434
        %v436 = vpop.f32.mrb[0].mxu0
        %v437 = vpop.f32.mrb[0].mxu0
        %v438 = vpop.f32.mrb[0].mxu0
        %439 = vdwg.mxu0
        %440 = vrot.lane.b32.xlu0 %v388, 96
        %v441 = vpop.permute.xlu0 %440
        %v443 = vsel %vm393, %v388, 0
        %v446 = vsel %vm393, %v441, 0
        %448 = vmatprep.subr.bf16.mxu0 0
        %449 = vmatpush1.bf16.xpose.msra.mxu0 %v446
        %450 = vmatprep.subr.bf16.mxu0 0
        %451 = vmatpush1.bf16.xpose.msra.mxu0 0
        %452 = vmatprep.subr.bf16.mxu0 0
        %453 = vmatpush1.bf16.xpose.msra.mxu0 0
        %454 = vmatprep.subr.bf16.mxu0 0
        %455 = vmatpush1.bf16.xpose.msra.mxu0 0
        %456 = vmatprep.subr.bf16.mxu0 0
        %457 = vmatpush1.bf16.xpose.msra.mxu0 0
        %458 = vmatprep.subr.bf16.mxu0 0
        %459 = vmatpush1.bf16.xpose.msra.mxu0 0
        %460 = vmatprep.subr.bf16.mxu0 0
        %461 = vmatpush1.bf16.xpose.msra.mxu0 0
        %462 = vmatprep.subr.bf16.mxu0 0
        %463 = vmatpush1.bf16.xpose.msra.mxu0 0
        %464 = vmatprep.subr.bf16.mxu0 0
        %465 = vmatpush1.bf16.xpose.msra.mxu0 0
        %466 = vmatprep.subr.bf16.mxu0 0
        %467 = vmatpush1.bf16.xpose.msra.mxu0 0
        %468 = vmatprep.subr.bf16.mxu0 0
        %469 = vmatpush1.bf16.xpose.msra.mxu0 0
        %470 = vmatprep.subr.bf16.mxu0 0
        %471 = vmatpush1.bf16.xpose.msra.mxu0 0
        %472 = vmatprep.subr.bf16.mxu0 0
        %473 = vmatpush1.bf16.xpose.msra.mxu0 0
        %474 = vmatprep.subr.bf16.mxu0 0
        %475 = vmatpush1.bf16.xpose.msra.mxu0 0
        %476 = vmatprep.subr.bf16.mxu0 0
        %477 = vmatpush1.bf16.xpose.msra.mxu0 0
        %478 = vmatprep.subr.bf16.mxu0 0
        %479 = vmatpush1.bf16.xpose.msra.mxu0 0
        %480 = vmatprep.mubr.bf16.mxu0 0
        %481 = vmatmul.mubr.bf16.gmra.mrb[0].mxu0 %v443
        %v482 = vpop.f32.mrb[0].mxu0
        %v483 = vadd.f32 0.0, %v482
        %v484 = vpop.f32.mrb[0].mxu0
        %v485 = vpop.f32.mrb[0].mxu0
        %v486 = vpop.f32.mrb[0].mxu0
        %487 = vdwg.mxu0
        %488 = vrot.lane.b32.xlu0 %v389, 96
        %v489 = vpop.permute.xlu0 %488
        %v491 = vsel %vm393, %v389, 0
        %v494 = vsel %vm393, %v489, 0
        %496 = vmatprep.subr.bf16.mxu0 0
        %497 = vmatpush1.bf16.xpose.msra.mxu0 %v494
        %498 = vmatprep.subr.bf16.mxu0 0
        %499 = vmatpush1.bf16.xpose.msra.mxu0 0
        %500 = vmatprep.subr.bf16.mxu0 0
        %501 = vmatpush1.bf16.xpose.msra.mxu0 0
        %502 = vmatprep.subr.bf16.mxu0 0
        %503 = vmatpush1.bf16.xpose.msra.mxu0 0
        %504 = vmatprep.subr.bf16.mxu0 0
        %505 = vmatpush1.bf16.xpose.msra.mxu0 0
        %506 = vmatprep.subr.bf16.mxu0 0
        %507 = vmatpush1.bf16.xpose.msra.mxu0 0
        %508 = vmatprep.subr.bf16.mxu0 0
        %509 = vmatpush1.bf16.xpose.msra.mxu0 0
        %510 = vmatprep.subr.bf16.mxu0 0
        %511 = vmatpush1.bf16.xpose.msra.mxu0 0
        %512 = vmatprep.subr.bf16.mxu0 0
        %513 = vmatpush1.bf16.xpose.msra.mxu0 0
        %514 = vmatprep.subr.bf16.mxu0 0
        %515 = vmatpush1.bf16.xpose.msra.mxu0 0
        %516 = vmatprep.subr.bf16.mxu0 0
        %517 = vmatpush1.bf16.xpose.msra.mxu0 0
        %518 = vmatprep.subr.bf16.mxu0 0
        %519 = vmatpush1.bf16.xpose.msra.mxu0 0
        %520 = vmatprep.subr.bf16.mxu0 0
        %521 = vmatpush1.bf16.xpose.msra.mxu0 0
        %522 = vmatprep.subr.bf16.mxu0 0
        %523 = vmatpush1.bf16.xpose.msra.mxu0 0
        %524 = vmatprep.subr.bf16.mxu0 0
        %525 = vmatpush1.bf16.xpose.msra.mxu0 0
        %526 = vmatprep.subr.bf16.mxu0 0
        %527 = vmatpush1.bf16.xpose.msra.mxu0 0
        %528 = vmatprep.mubr.bf16.mxu0 0
        %529 = vmatmul.mubr.bf16.gmra.mrb[0].mxu0 %v491
        %v530 = vpop.f32.mrb[0].mxu0
        %v531 = vadd.f32 0.0, %v530
        %v532 = vpop.f32.mrb[0].mxu0
        %v533 = vpop.f32.mrb[0].mxu0
        %v534 = vpop.f32.mrb[0].mxu0
        %535 = vdwg.mxu0
        %536 = vrot.lane.b32.xlu0 %v390, 96
        %v537 = vpop.permute.xlu0 %536
        %v539 = vsel %vm393, %v390, 0
        %v542 = vsel %vm393, %v537, 0
        %544 = vmatprep.subr.bf16.mxu0 0
        %545 = vmatpush1.bf16.xpose.msra.mxu0 %v542
        %546 = vmatprep.subr.bf16.mxu0 0
        %547 = vmatpush1.bf16.xpose.msra.mxu0 0
        %548 = vmatprep.subr.bf16.mxu0 0
        %549 = vmatpush1.bf16.xpose.msra.mxu0 0
        %550 = vmatprep.subr.bf16.mxu0 0
        %551 = vmatpush1.bf16.xpose.msra.mxu0 0
        %552 = vmatprep.subr.bf16.mxu0 0
        %553 = vmatpush1.bf16.xpose.msra.mxu0 0
        %554 = vmatprep.subr.bf16.mxu0 0
        %555 = vmatpush1.bf16.xpose.msra.mxu0 0
        %556 = vmatprep.subr.bf16.mxu0 0
        %557 = vmatpush1.bf16.xpose.msra.mxu0 0
        %558 = vmatprep.subr.bf16.mxu0 0
        %559 = vmatpush1.bf16.xpose.msra.mxu0 0
        %560 = vmatprep.subr.bf16.mxu0 0
        %561 = vmatpush1.bf16.xpose.msra.mxu0 0
        %562 = vmatprep.subr.bf16.mxu0 0
        %563 = vmatpush1.bf16.xpose.msra.mxu0 0
        %564 = vmatprep.subr.bf16.mxu0 0
        %565 = vmatpush1.bf16.xpose.msra.mxu0 0
        %566 = vmatprep.subr.bf16.mxu0 0
        %567 = vmatpush1.bf16.xpose.msra.mxu0 0
        %568 = vmatprep.subr.bf16.mxu0 0
        %569 = vmatpush1.bf16.xpose.msra.mxu0 0
        %570 = vmatprep.subr.bf16.mxu0 0
        %571 = vmatpush1.bf16.xpose.msra.mxu0 0
        %572 = vmatprep.subr.bf16.mxu0 0
        %573 = vmatpush1.bf16.xpose.msra.mxu0 0
        %574 = vmatprep.subr.bf16.mxu0 0
        %575 = vmatpush1.bf16.xpose.msra.mxu0 0
        %576 = vmatprep.mubr.bf16.mxu0 0
        %577 = vmatmul.mubr.bf16.gmra.mrb[0].mxu0 %v539
        %v578 = vpop.f32.mrb[0].mxu0
        %v579 = vadd.f32 0.0, %v578
        %v580 = vpop.f32.mrb[0].mxu0
        %v581 = vpop.f32.mrb[0].mxu0
        %v582 = vpop.f32.mrb[0].mxu0
        %583 = vdwg.mxu0
        %v584 = vsel %vm380, 1, 0
        %vm585 = vcmp.eq.s32.totalorder %v584, 1
        %v586 = vsel %vm585, %v435, -1e+30
        %v587 = vsel %vm585, %v483, -1e+30
        %v588 = vsel %vm585, %v531, -1e+30
        %v589 = vsel %vm585, %v579, -1e+30
        %v590 = vsel %vm393, %v586, -inf
        %591 = vmax.xlane.f32.xlu0 %v590
        %v592 = vpop.xlane.xlu0 %591
        %v593 = vsel %vm393, %v587, -inf
        %594 = vmax.xlane.f32.xlu0 %v593
        %v595 = vpop.xlane.xlu0 %594
        %v596 = vsel %vm393, %v588, -inf
        %597 = vmax.xlane.f32.xlu0 %v596
        %v598 = vpop.xlane.xlu0 %597
        %v599 = vsel %vm393, %v589, -inf
        %600 = vmax.xlane.f32.xlu0 %v599
        %v601 = vpop.xlane.xlu0 %600
        %v602 = vsub.f32 %v586, %v592
        %v603 = vsub.f32 %v587, %v595
        %v604 = vsub.f32 %v588, %v598
        %v605 = vsub.f32 %v589, %v601
        %v606 = vmul.f32 %v602, 1.442695
        %v607 = vpow.pop %v606
        %v608 = vmul.f32 %v603, 1.442695
        %v609 = vpow.pop %v608
        %v610 = vmul.f32 %v604, 1.442695
        %v611 = vpow.pop %v610
        %v612 = vmul.f32 %v605, 1.442695
        %v613 = vpow.pop %v612
        %v614 = vsel %vm393, %v607, 0.0
        %615 = vadd.xlane.f32.xlu0 %v614
        %v616 = vpop.xlane.xlu0 %615
        %v617 = vsel %vm393, %v609, 0.0
        %618 = vadd.xlane.f32.xlu0 %v617
        %v619 = vpop.xlane.xlu0 %618
        %v620 = vsel %vm393, %v611, 0.0
        %621 = vadd.xlane.f32.xlu0 %v620
        %v622 = vpop.xlane.xlu0 %621
        %v623 = vsel %vm393, %v613, 0.0
        %624 = vadd.xlane.f32.xlu0 %v623
        %v625 = vpop.xlane.xlu0 %624
        %v626 = vrcp.pop %v616
        %v627 = vrcp.pop %v619
        %v628 = vrcp.pop %v622
        %v629 = vrcp.pop %v625
        %v630 = vmul.f32 %v607, %v626
        %v631 = vmul.f32 %v609, %v627
        %v632 = vmul.f32 %v611, %v628
        %v633 = vmul.f32 %v613, %v629
        %v634 = vpack.c.bf16 %v630, %v630
        %v635 = vpack.c.bf16 %v631, %v631
        %v636 = vpack.c.bf16 %v632, %v632
        %v637 = vpack.c.bf16 %v633, %v633
        %638 = vrot.lane.b32.xlu0 %v387, 64
        %v639 = vpop.permute.xlu0 %638
        %v641 = vsel %vm393, %v634, 0
        %vm643 = vcmask 1043456
        %v645 = vsel %vm643, %v639, 0
        %647 = vmatprep.subr.bf16.mxu0 0
        %648 = vmatpush1.bf16.msra.mxu0 %v645
        %649 = vmatprep.subr.bf16.mxu0 0
        %650 = vmatpush1.bf16.msra.mxu0 0
        %651 = vmatprep.subr.bf16.mxu0 0
        %652 = vmatpush1.bf16.msra.mxu0 0
        %653 = vmatprep.subr.bf16.mxu0 0
        %654 = vmatpush1.bf16.msra.mxu0 0
        %655 = vmatprep.subr.bf16.mxu0 0
        %656 = vmatpush1.bf16.msra.mxu0 0
        %657 = vmatprep.subr.bf16.mxu0 0
        %658 = vmatpush1.bf16.msra.mxu0 0
        %659 = vmatprep.subr.bf16.mxu0 0
        %660 = vmatpush1.bf16.msra.mxu0 0
        %661 = vmatprep.subr.bf16.mxu0 0
        %662 = vmatpush1.bf16.msra.mxu0 0
        %663 = vmatprep.subr.bf16.mxu0 0
        %664 = vmatpush1.bf16.msra.mxu0 0
        %665 = vmatprep.subr.bf16.mxu0 0
        %666 = vmatpush1.bf16.msra.mxu0 0
        %667 = vmatprep.subr.bf16.mxu0 0
        %668 = vmatpush1.bf16.msra.mxu0 0
        %669 = vmatprep.subr.bf16.mxu0 0
        %670 = vmatpush1.bf16.msra.mxu0 0
        %671 = vmatprep.subr.bf16.mxu0 0
        %672 = vmatpush1.bf16.msra.mxu0 0
        %673 = vmatprep.subr.bf16.mxu0 0
        %674 = vmatpush1.bf16.msra.mxu0 0
        %675 = vmatprep.subr.bf16.mxu0 0
        %676 = vmatpush1.bf16.msra.mxu0 0
        %677 = vmatprep.subr.bf16.mxu0 0
        %678 = vmatpush1.bf16.msra.mxu0 0
        %679 = vmatprep.mubr.bf16.mxu0 0
        %680 = vmatmul.mubr.bf16.gmra.mrb[0].mxu0 %v641
        %v681 = vpop.f32.mrb[0].mxu0
        %v682 = vadd.f32 0.0, %v681
        %v683 = vpop.f32.mrb[0].mxu0
        %v684 = vpop.f32.mrb[0].mxu0
        %v685 = vpop.f32.mrb[0].mxu0
        %686 = vdwg.mxu0
        %687 = vrot.lane.b32.xlu0 %v388, 64
        %v688 = vpop.permute.xlu0 %687
        %v690 = vsel %vm393, %v635, 0
        %v693 = vsel %vm643, %v688, 0
        %695 = vmatprep.subr.bf16.mxu0 0
        %696 = vmatpush1.bf16.msra.mxu0 %v693
        %697 = vmatprep.subr.bf16.mxu0 0
        %698 = vmatpush1.bf16.msra.mxu0 0
        %699 = vmatprep.subr.bf16.mxu0 0
        %700 = vmatpush1.bf16.msra.mxu0 0
        %701 = vmatprep.subr.bf16.mxu0 0
        %702 = vmatpush1.bf16.msra.mxu0 0
        %703 = vmatprep.subr.bf16.mxu0 0
        %704 = vmatpush1.bf16.msra.mxu0 0
        %705 = vmatprep.subr.bf16.mxu0 0
        %706 = vmatpush1.bf16.msra.mxu0 0
        %707 = vmatprep.subr.bf16.mxu0 0
        %708 = vmatpush1.bf16.msra.mxu0 0
        %709 = vmatprep.subr.bf16.mxu0 0
        %710 = vmatpush1.bf16.msra.mxu0 0
        %711 = vmatprep.subr.bf16.mxu0 0
        %712 = vmatpush1.bf16.msra.mxu0 0
        %713 = vmatprep.subr.bf16.mxu0 0
        %714 = vmatpush1.bf16.msra.mxu0 0
        %715 = vmatprep.subr.bf16.mxu0 0
        %716 = vmatpush1.bf16.msra.mxu0 0
        %717 = vmatprep.subr.bf16.mxu0 0
        %718 = vmatpush1.bf16.msra.mxu0 0
        %719 = vmatprep.subr.bf16.mxu0 0
        %720 = vmatpush1.bf16.msra.mxu0 0
        %721 = vmatprep.subr.bf16.mxu0 0
        %722 = vmatpush1.bf16.msra.mxu0 0
        %723 = vmatprep.subr.bf16.mxu0 0
        %724 = vmatpush1.bf16.msra.mxu0 0
        %725 = vmatprep.subr.bf16.mxu0 0
        %726 = vmatpush1.bf16.msra.mxu0 0
        %727 = vmatprep.mubr.bf16.mxu0 0
        %728 = vmatmul.mubr.bf16.gmra.mrb[0].mxu0 %v690
        %v729 = vpop.f32.mrb[0].mxu0
        %v730 = vadd.f32 0.0, %v729
        %v731 = vpop.f32.mrb[0].mxu0
        %v732 = vpop.f32.mrb[0].mxu0
        %v733 = vpop.f32.mrb[0].mxu0
        %734 = vdwg.mxu0
        %735 = vrot.lane.b32.xlu0 %v389, 64
        %v736 = vpop.permute.xlu0 %735
        %v738 = vsel %vm393, %v636, 0
        %v741 = vsel %vm643, %v736, 0
        %743 = vmatprep.subr.bf16.mxu0 0
        %744 = vmatpush1.bf16.msra.mxu0 %v741
        %745 = vmatprep.subr.bf16.mxu0 0
        %746 = vmatpush1.bf16.msra.mxu0 0
        %747 = vmatprep.subr.bf16.mxu0 0
        %748 = vmatpush1.bf16.msra.mxu0 0
        %749 = vmatprep.subr.bf16.mxu0 0
        %750 = vmatpush1.bf16.msra.mxu0 0
        %751 = vmatprep.subr.bf16.mxu0 0
        %752 = vmatpush1.bf16.msra.mxu0 0
        %753 = vmatprep.subr.bf16.mxu0 0
        %754 = vmatpush1.bf16.msra.mxu0 0
        %755 = vmatprep.subr.bf16.mxu0 0
        %756 = vmatpush1.bf16.msra.mxu0 0
        %757 = vmatprep.subr.bf16.mxu0 0
        %758 = vmatpush1.bf16.msra.mxu0 0
        %759 = vmatprep.subr.bf16.mxu0 0
        %760 = vmatpush1.bf16.msra.mxu0 0
        %761 = vmatprep.subr.bf16.mxu0 0
        %762 = vmatpush1.bf16.msra.mxu0 0
        %763 = vmatprep.subr.bf16.mxu0 0
        %764 = vmatpush1.bf16.msra.mxu0 0
        %765 = vmatprep.subr.bf16.mxu0 0
        %766 = vmatpush1.bf16.msra.mxu0 0
        %767 = vmatprep.subr.bf16.mxu0 0
        %768 = vmatpush1.bf16.msra.mxu0 0
        %769 = vmatprep.subr.bf16.mxu0 0
        %770 = vmatpush1.bf16.msra.mxu0 0
        %771 = vmatprep.subr.bf16.mxu0 0
        %772 = vmatpush1.bf16.msra.mxu0 0
        %773 = vmatprep.subr.bf16.mxu0 0
        %774 = vmatpush1.bf16.msra.mxu0 0
        %775 = vmatprep.mubr.bf16.mxu0 0
        %776 = vmatmul.mubr.bf16.gmra.mrb[0].mxu0 %v738
        %v777 = vpop.f32.mrb[0].mxu0
        %v778 = vadd.f32 0.0, %v777
        %v779 = vpop.f32.mrb[0].mxu0
        %v780 = vpop.f32.mrb[0].mxu0
        %v781 = vpop.f32.mrb[0].mxu0
        %782 = vdwg.mxu0
        %783 = vrot.lane.b32.xlu0 %v390, 64
        %v784 = vpop.permute.xlu0 %783
        %v786 = vsel %vm393, %v637, 0
        %v789 = vsel %vm643, %v784, 0
        %791 = vmatprep.subr.bf16.mxu0 0
        %792 = vmatpush1.bf16.msra.mxu0 %v789
        %793 = vmatprep.subr.bf16.mxu0 0
        %794 = vmatpush1.bf16.msra.mxu0 0
        %795 = vmatprep.subr.bf16.mxu0 0
        %796 = vmatpush1.bf16.msra.mxu0 0
        %797 = vmatprep.subr.bf16.mxu0 0
        %798 = vmatpush1.bf16.msra.mxu0 0
        %799 = vmatprep.subr.bf16.mxu0 0
        %800 = vmatpush1.bf16.msra.mxu0 0
        %801 = vmatprep.subr.bf16.mxu0 0
        %802 = vmatpush1.bf16.msra.mxu0 0
        %803 = vmatprep.subr.bf16.mxu0 0
        %804 = vmatpush1.bf16.msra.mxu0 0
        %805 = vmatprep.subr.bf16.mxu0 0
        %806 = vmatpush1.bf16.msra.mxu0 0
        %807 = vmatprep.subr.bf16.mxu0 0
        %808 = vmatpush1.bf16.msra.mxu0 0
        %809 = vmatprep.subr.bf16.mxu0 0
        %810 = vmatpush1.bf16.msra.mxu0 0
        %811 = vmatprep.subr.bf16.mxu0 0
        %812 = vmatpush1.bf16.msra.mxu0 0
        %813 = vmatprep.subr.bf16.mxu0 0
        %814 = vmatpush1.bf16.msra.mxu0 0
        %815 = vmatprep.subr.bf16.mxu0 0
        %816 = vmatpush1.bf16.msra.mxu0 0
        %817 = vmatprep.subr.bf16.mxu0 0
        %818 = vmatpush1.bf16.msra.mxu0 0
        %819 = vmatprep.subr.bf16.mxu0 0
        %820 = vmatpush1.bf16.msra.mxu0 0
        %821 = vmatprep.subr.bf16.mxu0 0
        %822 = vmatpush1.bf16.msra.mxu0 0
        %823 = vmatprep.mubr.bf16.mxu0 0
        %824 = vmatmul.mubr.bf16.gmra.mrb[0].mxu0 %v786
        %v825 = vpop.f32.mrb[0].mxu0
        %v826 = vadd.f32 0.0, %v825
        %v827 = vpop.f32.mrb[0].mxu0
        %v828 = vpop.f32.mrb[0].mxu0
        %v829 = vpop.f32.mrb[0].mxu0
        %830 = vdwg.mxu0
        %v831 = vpack.c.bf16 %v730, %v682
        %v832 = vpack.c.bf16 %v826, %v778
        %833 = vst.msk [vmem:[#allocation2] sm:$0xff] %vm393, %v831
        %834 = vst.msk [vmem:[#allocation2 + $0x8] sm:$0xff] %vm393, %v832
        %835 = vrot.lane.b32.xlu0 %v387, 120
        %v836 = vpop.permute.xlu0 %835
        %837 = vrot.lane.b32.xlu0 %v387, 88
        %v838 = vpop.permute.xlu0 %837
        %v840 = vsel %vm393, %v836, 0
        %v843 = vsel %vm393, %v838, 0
        %845 = vmatprep.subr.bf16.mxu0 0
        %846 = vmatpush1.bf16.xpose.msra.mxu0 %v843
        %847 = vmatprep.subr.bf16.mxu0 0
        %848 = vmatpush1.bf16.xpose.msra.mxu0 0
        %849 = vmatprep.subr.bf16.mxu0 0
        %850 = vmatpush1.bf16.xpose.msra.mxu0 0
        %851 = vmatprep.subr.bf16.mxu0 0
        %852 = vmatpush1.bf16.xpose.msra.mxu0 0
        %853 = vmatprep.subr.bf16.mxu0 0
        %854 = vmatpush1.bf16.xpose.msra.mxu0 0
        %855 = vmatprep.subr.bf16.mxu0 0
        %856 = vmatpush1.bf16.xpose.msra.mxu0 0
        %857 = vmatprep.subr.bf16.mxu0 0
        %858 = vmatpush1.bf16.xpose.msra.mxu0 0
        %859 = vmatprep.subr.bf16.mxu0 0
        %860 = vmatpush1.bf16.xpose.msra.mxu0 0
        %861 = vmatprep.subr.bf16.mxu0 0
        %862 = vmatpush1.bf16.xpose.msra.mxu0 0
        %863 = vmatprep.subr.bf16.mxu0 0
        %864 = vmatpush1.bf16.xpose.msra.mxu0 0
        %865 = vmatprep.subr.bf16.mxu0 0
        %866 = vmatpush1.bf16.xpose.msra.mxu0 0
        %867 = vmatprep.subr.bf16.mxu0 0
        %868 = vmatpush1.bf16.xpose.msra.mxu0 0
        %869 = vmatprep.subr.bf16.mxu0 0
        %870 = vmatpush1.bf16.xpose.msra.mxu0 0
        %871 = vmatprep.subr.bf16.mxu0 0
        %872 = vmatpush1.bf16.xpose.msra.mxu0 0
        %873 = vmatprep.subr.bf16.mxu0 0
        %874 = vmatpush1.bf16.xpose.msra.mxu0 0
        %875 = vmatprep.subr.bf16.mxu0 0
        %876 = vmatpush1.bf16.xpose.msra.mxu0 0
        %877 = vmatprep.mubr.bf16.mxu0 0
        %878 = vmatmul.mubr.bf16.gmra.mrb[0].mxu0 %v840
        %v879 = vpop.f32.mrb[0].mxu0
        %v880 = vadd.f32 0.0, %v879
        %v881 = vpop.f32.mrb[0].mxu0
        %v882 = vpop.f32.mrb[0].mxu0
        %v883 = vpop.f32.mrb[0].mxu0
        %884 = vdwg.mxu0
        %885 = vrot.lane.b32.xlu0 %v388, 120
        %v886 = vpop.permute.xlu0 %885
        %887 = vrot.lane.b32.xlu0 %v388, 88
        %v888 = vpop.permute.xlu0 %887
        %v890 = vsel %vm393, %v886, 0
        %v893 = vsel %vm393, %v888, 0
        %895 = vmatprep.subr.bf16.mxu0 0
        %896 = vmatpush1.bf16.xpose.msra.mxu0 %v893
        %897 = vmatprep.subr.bf16.mxu0 0
        %898 = vmatpush1.bf16.xpose.msra.mxu0 0
        %899 = vmatprep.subr.bf16.mxu0 0
        %900 = vmatpush1.bf16.xpose.msra.mxu0 0
        %901 = vmatprep.subr.bf16.mxu0 0
        %902 = vmatpush1.bf16.xpose.msra.mxu0 0
        %903 = vmatprep.subr.bf16.mxu0 0
        %904 = vmatpush1.bf16.xpose.msra.mxu0 0
        %905 = vmatprep.subr.bf16.mxu0 0
        %906 = vmatpush1.bf16.xpose.msra.mxu0 0
        %907 = vmatprep.subr.bf16.mxu0 0
        %908 = vmatpush1.bf16.xpose.msra.mxu0 0
        %909 = vmatprep.subr.bf16.mxu0 0
        %910 = vmatpush1.bf16.xpose.msra.mxu0 0
        %911 = vmatprep.subr.bf16.mxu0 0
        %912 = vmatpush1.bf16.xpose.msra.mxu0 0
        %913 = vmatprep.subr.bf16.mxu0 0
        %914 = vmatpush1.bf16.xpose.msra.mxu0 0
        %915 = vmatprep.subr.bf16.mxu0 0
        %916 = vmatpush1.bf16.xpose.msra.mxu0 0
        %917 = vmatprep.subr.bf16.mxu0 0
        %918 = vmatpush1.bf16.xpose.msra.mxu0 0
        %919 = vmatprep.subr.bf16.mxu0 0
        %920 = vmatpush1.bf16.xpose.msra.mxu0 0
        %921 = vmatprep.subr.bf16.mxu0 0
        %922 = vmatpush1.bf16.xpose.msra.mxu0 0
        %923 = vmatprep.subr.bf16.mxu0 0
        %924 = vmatpush1.bf16.xpose.msra.mxu0 0
        %925 = vmatprep.subr.bf16.mxu0 0
        %926 = vmatpush1.bf16.xpose.msra.mxu0 0
        %927 = vmatprep.mubr.bf16.mxu0 0
        %928 = vmatmul.mubr.bf16.gmra.mrb[0].mxu0 %v890
        %v929 = vpop.f32.mrb[0].mxu0
        %v930 = vadd.f32 0.0, %v929
        %v931 = vpop.f32.mrb[0].mxu0
        %v932 = vpop.f32.mrb[0].mxu0
        %v933 = vpop.f32.mrb[0].mxu0
        %934 = vdwg.mxu0
        %935 = vrot.lane.b32.xlu0 %v389, 120
        %v936 = vpop.permute.xlu0 %935
        %937 = vrot.lane.b32.xlu0 %v389, 88
        %v938 = vpop.permute.xlu0 %937
        %v940 = vsel %vm393, %v936, 0
        %v943 = vsel %vm393, %v938, 0
        %945 = vmatprep.subr.bf16.mxu0 0
        %946 = vmatpush1.bf16.xpose.msra.mxu0 %v943
        %947 = vmatprep.subr.bf16.mxu0 0
        %948 = vmatpush1.bf16.xpose.msra.mxu0 0
        %949 = vmatprep.subr.bf16.mxu0 0
        %950 = vmatpush1.bf16.xpose.msra.mxu0 0
        %951 = vmatprep.subr.bf16.mxu0 0
        %952 = vmatpush1.bf16.xpose.msra.mxu0 0
        %953 = vmatprep.subr.bf16.mxu0 0
        %954 = vmatpush1.bf16.xpose.msra.mxu0 0
        %955 = vmatprep.subr.bf16.mxu0 0
        %956 = vmatpush1.bf16.xpose.msra.mxu0 0
        %957 = vmatprep.subr.bf16.mxu0 0
        %958 = vmatpush1.bf16.xpose.msra.mxu0 0
        %959 = vmatprep.subr.bf16.mxu0 0
        %960 = vmatpush1.bf16.xpose.msra.mxu0 0
        %961 = vmatprep.subr.bf16.mxu0 0
        %962 = vmatpush1.bf16.xpose.msra.mxu0 0
        %963 = vmatprep.subr.bf16.mxu0 0
        %964 = vmatpush1.bf16.xpose.msra.mxu0 0
        %965 = vmatprep.subr.bf16.mxu0 0
        %966 = vmatpush1.bf16.xpose.msra.mxu0 0
        %967 = vmatprep.subr.bf16.mxu0 0
        %968 = vmatpush1.bf16.xpose.msra.mxu0 0
        %969 = vmatprep.subr.bf16.mxu0 0
        %970 = vmatpush1.bf16.xpose.msra.mxu0 0
        %971 = vmatprep.subr.bf16.mxu0 0
        %972 = vmatpush1.bf16.xpose.msra.mxu0 0
        %973 = vmatprep.subr.bf16.mxu0 0
        %974 = vmatpush1.bf16.xpose.msra.mxu0 0
        %975 = vmatprep.subr.bf16.mxu0 0
        %976 = vmatpush1.bf16.xpose.msra.mxu0 0
        %977 = vmatprep.mubr.bf16.mxu0 0
        %978 = vmatmul.mubr.bf16.gmra.mrb[0].mxu0 %v940
        %v979 = vpop.f32.mrb[0].mxu0
        %v980 = vadd.f32 0.0, %v979
        %v981 = vpop.f32.mrb[0].mxu0
        %v982 = vpop.f32.mrb[0].mxu0
        %v983 = vpop.f32.mrb[0].mxu0
        %984 = vdwg.mxu0
        %985 = vrot.lane.b32.xlu0 %v390, 120
        %v986 = vpop.permute.xlu0 %985
        %987 = vrot.lane.b32.xlu0 %v390, 88
        %v988 = vpop.permute.xlu0 %987
        %v990 = vsel %vm393, %v986, 0
        %v993 = vsel %vm393, %v988, 0
        %995 = vmatprep.subr.bf16.mxu0 0
        %996 = vmatpush1.bf16.xpose.msra.mxu0 %v993
        %997 = vmatprep.subr.bf16.mxu0 0
        %998 = vmatpush1.bf16.xpose.msra.mxu0 0
        %999 = vmatprep.subr.bf16.mxu0 0
        %1000 = vmatpush1.bf16.xpose.msra.mxu0 0
        %1001 = vmatprep.subr.bf16.mxu0 0
        %1002 = vmatpush1.bf16.xpose.msra.mxu0 0
        %1003 = vmatprep.subr.bf16.mxu0 0
        %1004 = vmatpush1.bf16.xpose.msra.mxu0 0
        %1005 = vmatprep.subr.bf16.mxu0 0
        %1006 = vmatpush1.bf16.xpose.msra.mxu0 0
        %1007 = vmatprep.subr.bf16.mxu0 0
        %1008 = vmatpush1.bf16.xpose.msra.mxu0 0
        %1009 = vmatprep.subr.bf16.mxu0 0
        %1010 = vmatpush1.bf16.xpose.msra.mxu0 0
        %1011 = vmatprep.subr.bf16.mxu0 0
        %1012 = vmatpush1.bf16.xpose.msra.mxu0 0
        %1013 = vmatprep.subr.bf16.mxu0 0
        %1014 = vmatpush1.bf16.xpose.msra.mxu0 0
        %1015 = vmatprep.subr.bf16.mxu0 0
        %1016 = vmatpush1.bf16.xpose.msra.mxu0 0
        %1017 = vmatprep.subr.bf16.mxu0 0
        %1018 = vmatpush1.bf16.xpose.msra.mxu0 0
        %1019 = vmatprep.subr.bf16.mxu0 0
        %1020 = vmatpush1.bf16.xpose.msra.mxu0 0
        %1021 = vmatprep.subr.bf16.mxu0 0
        %1022 = vmatpush1.bf16.xpose.msra.mxu0 0
        %1023 = vmatprep.subr.bf16.mxu0 0
        %1024 = vmatpush1.bf16.xpose.msra.mxu0 0
        %1025 = vmatprep.subr.bf16.mxu0 0
        %1026 = vmatpush1.bf16.xpose.msra.mxu0 0
        %1027 = vmatprep.mubr.bf16.mxu0 0
        %1028 = vmatmul.mubr.bf16.gmra.mrb[0].mxu0 %v990
        %v1029 = vpop.f32.mrb[0].mxu0
        %v1030 = vadd.f32 0.0, %v1029
        %v1031 = vpop.f32.mrb[0].mxu0
        %v1032 = vpop.f32.mrb[0].mxu0
        %v1033 = vpop.f32.mrb[0].mxu0
        %1034 = vdwg.mxu0
        %v1035 = vsel %vm585, %v880, -1e+30
        %v1036 = vsel %vm585, %v930, -1e+30
        %v1037 = vsel %vm585, %v980, -1e+30
        %v1038 = vsel %vm585, %v1030, -1e+30
        %v1039 = vsel %vm393, %v1035, -inf
        %1040 = vmax.xlane.f32.xlu0 %v1039
        %v1041 = vpop.xlane.xlu0 %1040
        %v1042 = vsel %vm393, %v1036, -inf
        %1043 = vmax.xlane.f32.xlu0 %v1042
        %v1044 = vpop.xlane.xlu0 %1043
        %v1045 = vsel %vm393, %v1037, -inf
        %1046 = vmax.xlane.f32.xlu0 %v1045
        %v1047 = vpop.xlane.xlu0 %1046
        %v1048 = vsel %vm393, %v1038, -inf
        %1049 = vmax.xlane.f32.xlu0 %v1048
        %v1050 = vpop.xlane.xlu0 %1049
        %v1051 = vsub.f32 %v1035, %v1041
        %v1052 = vsub.f32 %v1036, %v1044
        %v1053 = vsub.f32 %v1037, %v1047
        %v1054 = vsub.f32 %v1038, %v1050
        %v1055 = vmul.f32 %v1051, 1.442695
        %v1056 = vpow.pop %v1055
        %v1057 = vmul.f32 %v1052, 1.442695
        %v1058 = vpow.pop %v1057
        %v1059 = vmul.f32 %v1053, 1.442695
        %v1060 = vpow.pop %v1059
        %v1061 = vmul.f32 %v1054, 1.442695
        %v1062 = vpow.pop %v1061
        %v1063 = vsel %vm393, %v1056, 0.0
        %1064 = vadd.xlane.f32.xlu0 %v1063
        %v1065 = vpop.xlane.xlu0 %1064
        %v1066 = vsel %vm393, %v1058, 0.0
        %1067 = vadd.xlane.f32.xlu0 %v1066
        %v1068 = vpop.xlane.xlu0 %1067
        %v1069 = vsel %vm393, %v1060, 0.0
        %1070 = vadd.xlane.f32.xlu0 %v1069
        %v1071 = vpop.xlane.xlu0 %1070
        %v1072 = vsel %vm393, %v1062, 0.0
        %1073 = vadd.xlane.f32.xlu0 %v1072
        %v1074 = vpop.xlane.xlu0 %1073
        %v1075 = vrcp.pop %v1065
        %v1076 = vrcp.pop %v1068
        %v1077 = vrcp.pop %v1071
        %v1078 = vrcp.pop %v1074
        %v1079 = vmul.f32 %v1056, %v1075
        %v1080 = vmul.f32 %v1058, %v1076
        %v1081 = vmul.f32 %v1060, %v1077
        %v1082 = vmul.f32 %v1062, %v1078
        %v1083 = vpack.c.bf16 %v1079, %v1079
        %v1084 = vpack.c.bf16 %v1080, %v1080
        %v1085 = vpack.c.bf16 %v1081, %v1081
        %v1086 = vpack.c.bf16 %v1082, %v1082
        %1087 = vrot.lane.b32.xlu0 %v387, 56
        %v1088 = vpop.permute.xlu0 %1087
        %v1090 = vsel %vm393, %v1083, 0
        %v1093 = vsel %vm643, %v1088, 0
        %1095 = vmatprep.subr.bf16.mxu0 0
        %1096 = vmatpush1.bf16.msra.mxu0 %v1093
        %1097 = vmatprep.subr.bf16.mxu0 0
        %1098 = vmatpush1.bf16.msra.mxu0 0
        %1099 = vmatprep.subr.bf16.mxu0 0
        %1100 = vmatpush1.bf16.msra.mxu0 0
        %1101 = vmatprep.subr.bf16.mxu0 0
        %1102 = vmatpush1.bf16.msra.mxu0 0
        %1103 = vmatprep.subr.bf16.mxu0 0
        %1104 = vmatpush1.bf16.msra.mxu0 0
        %1105 = vmatprep.subr.bf16.mxu0 0
        %1106 = vmatpush1.bf16.msra.mxu0 0
        %1107 = vmatprep.subr.bf16.mxu0 0
        %1108 = vmatpush1.bf16.msra.mxu0 0
        %1109 = vmatprep.subr.bf16.mxu0 0
        %1110 = vmatpush1.bf16.msra.mxu0 0
        %1111 = vmatprep.subr.bf16.mxu0 0
        %1112 = vmatpush1.bf16.msra.mxu0 0
        %1113 = vmatprep.subr.bf16.mxu0 0
        %1114 = vmatpush1.bf16.msra.mxu0 0
        %1115 = vmatprep.subr.bf16.mxu0 0
        %1116 = vmatpush1.bf16.msra.mxu0 0
        %1117 = vmatprep.subr.bf16.mxu0 0
        %1118 = vmatpush1.bf16.msra.mxu0 0
        %1119 = vmatprep.subr.bf16.mxu0 0
        %1120 = vmatpush1.bf16.msra.mxu0 0
        %1121 = vmatprep.subr.bf16.mxu0 0
        %1122 = vmatpush1.bf16.msra.mxu0 0
        %1123 = vmatprep.subr.bf16.mxu0 0
        %1124 = vmatpush1.bf16.msra.mxu0 0
        %1125 = vmatprep.subr.bf16.mxu0 0
        %1126 = vmatpush1.bf16.msra.mxu0 0
        %1127 = vmatprep.mubr.bf16.mxu0 0
        %1128 = vmatmul.mubr.bf16.gmra.mrb[0].mxu0 %v1090
        %v1129 = vpop.f32.mrb[0].mxu0
        %v1130 = vadd.f32 0.0, %v1129
        %v1131 = vpop.f32.mrb[0].mxu0
        %v1132 = vpop.f32.mrb[0].mxu0
        %v1133 = vpop.f32.mrb[0].mxu0
        %1134 = vdwg.mxu0
        %1135 = vrot.lane.b32.xlu0 %v388, 56
        %v1136 = vpop.permute.xlu0 %1135
        %v1138 = vsel %vm393, %v1084, 0
        %v1141 = vsel %vm643, %v1136, 0
        %1143 = vmatprep.subr.bf16.mxu0 0
        %1144 = vmatpush1.bf16.msra.mxu0 %v1141
        %1145 = vmatprep.subr.bf16.mxu0 0
        %1146 = vmatpush1.bf16.msra.mxu0 0
        %1147 = vmatprep.subr.bf16.mxu0 0
        %1148 = vmatpush1.bf16.msra.mxu0 0
        %1149 = vmatprep.subr.bf16.mxu0 0
        %1150 = vmatpush1.bf16.msra.mxu0 0
        %1151 = vmatprep.subr.bf16.mxu0 0
        %1152 = vmatpush1.bf16.msra.mxu0 0
        %1153 = vmatprep.subr.bf16.mxu0 0
        %1154 = vmatpush1.bf16.msra.mxu0 0
        %1155 = vmatprep.subr.bf16.mxu0 0
        %1156 = vmatpush1.bf16.msra.mxu0 0
        %1157 = vmatprep.subr.bf16.mxu0 0
        %1158 = vmatpush1.bf16.msra.mxu0 0
        %1159 = vmatprep.subr.bf16.mxu0 0
        %1160 = vmatpush1.bf16.msra.mxu0 0
        %1161 = vmatprep.subr.bf16.mxu0 0
        %1162 = vmatpush1.bf16.msra.mxu0 0
        %1163 = vmatprep.subr.bf16.mxu0 0
        %1164 = vmatpush1.bf16.msra.mxu0 0
        %1165 = vmatprep.subr.bf16.mxu0 0
        %1166 = vmatpush1.bf16.msra.mxu0 0
        %1167 = vmatprep.subr.bf16.mxu0 0
        %1168 = vmatpush1.bf16.msra.mxu0 0
        %1169 = vmatprep.subr.bf16.mxu0 0
        %1170 = vmatpush1.bf16.msra.mxu0 0
        %1171 = vmatprep.subr.bf16.mxu0 0
        %1172 = vmatpush1.bf16.msra.mxu0 0
        %1173 = vmatprep.subr.bf16.mxu0 0
        %1174 = vmatpush1.bf16.msra.mxu0 0
        %1175 = vmatprep.mubr.bf16.mxu0 0
        %1176 = vmatmul.mubr.bf16.gmra.mrb[0].mxu0 %v1138
        %v1177 = vpop.f32.mrb[0].mxu0
        %v1178 = vadd.f32 0.0, %v1177
        %v1179 = vpop.f32.mrb[0].mxu0
        %v1180 = vpop.f32.mrb[0].mxu0
        %v1181 = vpop.f32.mrb[0].mxu0
        %1182 = vdwg.mxu0
        %1183 = vrot.lane.b32.xlu0 %v389, 56
        %v1184 = vpop.permute.xlu0 %1183
        %v1186 = vsel %vm393, %v1085, 0
        %v1189 = vsel %vm643, %v1184, 0
        %1191 = vmatprep.subr.bf16.mxu0 0
        %1192 = vmatpush1.bf16.msra.mxu0 %v1189
        %1193 = vmatprep.subr.bf16.mxu0 0
        %1194 = vmatpush1.bf16.msra.mxu0 0
        %1195 = vmatprep.subr.bf16.mxu0 0
        %1196 = vmatpush1.bf16.msra.mxu0 0
        %1197 = vmatprep.subr.bf16.mxu0 0
        %1198 = vmatpush1.bf16.msra.mxu0 0
        %1199 = vmatprep.subr.bf16.mxu0 0
        %1200 = vmatpush1.bf16.msra.mxu0 0
        %1201 = vmatprep.subr.bf16.mxu0 0
        %1202 = vmatpush1.bf16.msra.mxu0 0
        %1203 = vmatprep.subr.bf16.mxu0 0
        %1204 = vmatpush1.bf16.msra.mxu0 0
        %1205 = vmatprep.subr.bf16.mxu0 0
        %1206 = vmatpush1.bf16.msra.mxu0 0
        %1207 = vmatprep.subr.bf16.mxu0 0
        %1208 = vmatpush1.bf16.msra.mxu0 0
        %1209 = vmatprep.subr.bf16.mxu0 0
        %1210 = vmatpush1.bf16.msra.mxu0 0
        %1211 = vmatprep.subr.bf16.mxu0 0
        %1212 = vmatpush1.bf16.msra.mxu0 0
        %1213 = vmatprep.subr.bf16.mxu0 0
        %1214 = vmatpush1.bf16.msra.mxu0 0
        %1215 = vmatprep.subr.bf16.mxu0 0
        %1216 = vmatpush1.bf16.msra.mxu0 0
        %1217 = vmatprep.subr.bf16.mxu0 0
        %1218 = vmatpush1.bf16.msra.mxu0 0
        %1219 = vmatprep.subr.bf16.mxu0 0
        %1220 = vmatpush1.bf16.msra.mxu0 0
        %1221 = vmatprep.subr.bf16.mxu0 0
        %1222 = vmatpush1.bf16.msra.mxu0 0
        %1223 = vmatprep.mubr.bf16.mxu0 0
        %1224 = vmatmul.mubr.bf16.gmra.mrb[0].mxu0 %v1186
        %v1225 = vpop.f32.mrb[0].mxu0
        %v1226 = vadd.f32 0.0, %v1225
        %v1227 = vpop.f32.mrb[0].mxu0
        %v1228 = vpop.f32.mrb[0].mxu0
        %v1229 = vpop.f32.mrb[0].mxu0
        %1230 = vdwg.mxu0
        %1231 = vrot.lane.b32.xlu0 %v390, 56
        %v1232 = vpop.permute.xlu0 %1231
        %v1234 = vsel %vm393, %v1086, 0
        %v1237 = vsel %vm643, %v1232, 0
        %1239 = vmatprep.subr.bf16.mxu0 0
        %1240 = vmatpush1.bf16.msra.mxu0 %v1237
        %1241 = vmatprep.subr.bf16.mxu0 0
        %1242 = vmatpush1.bf16.msra.mxu0 0
        %1243 = vmatprep.subr.bf16.mxu0 0
        %1244 = vmatpush1.bf16.msra.mxu0 0
        %1245 = vmatprep.subr.bf16.mxu0 0
        %1246 = vmatpush1.bf16.msra.mxu0 0
        %1247 = vmatprep.subr.bf16.mxu0 0
        %1248 = vmatpush1.bf16.msra.mxu0 0
        %1249 = vmatprep.subr.bf16.mxu0 0
        %1250 = vmatpush1.bf16.msra.mxu0 0
        %1251 = vmatprep.subr.bf16.mxu0 0
        %1252 = vmatpush1.bf16.msra.mxu0 0
        %1253 = vmatprep.subr.bf16.mxu0 0
        %1254 = vmatpush1.bf16.msra.mxu0 0
        %1255 = vmatprep.subr.bf16.mxu0 0
        %1256 = vmatpush1.bf16.msra.mxu0 0
        %1257 = vmatprep.subr.bf16.mxu0 0
        %1258 = vmatpush1.bf16.msra.mxu0 0
        %1259 = vmatprep.subr.bf16.mxu0 0
        %1260 = vmatpush1.bf16.msra.mxu0 0
        %1261 = vmatprep.subr.bf16.mxu0 0
        %1262 = vmatpush1.bf16.msra.mxu0 0
        %1263 = vmatprep.subr.bf16.mxu0 0
        %1264 = vmatpush1.bf16.msra.mxu0 0
        %1265 = vmatprep.subr.bf16.mxu0 0
        %1266 = vmatpush1.bf16.msra.mxu0 0
        %1267 = vmatprep.subr.bf16.mxu0 0
        %1268 = vmatpush1.bf16.msra.mxu0 0
        %1269 = vmatprep.subr.bf16.mxu0 0
        %1270 = vmatpush1.bf16.msra.mxu0 0
        %1271 = vmatprep.mubr.bf16.mxu0 0
        %1272 = vmatmul.mubr.bf16.gmra.mrb[0].mxu0 %v1234
        %v1273 = vpop.f32.mrb[0].mxu0
        %v1274 = vadd.f32 0.0, %v1273
        %v1275 = vpop.f32.mrb[0].mxu0
        %v1276 = vpop.f32.mrb[0].mxu0
        %v1277 = vpop.f32.mrb[0].mxu0
        %1278 = vdwg.mxu0
        %v1279 = vpack.c.bf16 %v1178, %v1130
        %v1280 = vpack.c.bf16 %v1274, %v1226
        %1283 = vrot.lane.b32.xlu0 %v1279, 8
        %v1284 = vpop.permute.xlu0 %1283
        %1285 = vrot.lane.b32.xlu0 %v1280, 8
        %v1286 = vpop.permute.xlu0 %1285
        %vm1289 = vcmask 130112
        %1290 = vst.msk [vmem:[#allocation2] sm:$0xff] %vm1289, %v1284
        %1291 = vst.msk [vmem:[#allocation2 + $0x8] sm:$0xff] %vm1289, %v1286
        %1292 = vrot.lane.b32.xlu0 %v387, 112
        %v1293 = vpop.permute.xlu0 %1292
        %1294 = vrot.lane.b32.xlu0 %v387, 80
        %v1295 = vpop.permute.xlu0 %1294
        %v1297 = vsel %vm393, %v1293, 0
        %v1300 = vsel %vm393, %v1295, 0
        %1302 = vmatprep.subr.bf16.mxu0 0
        %1303 = vmatpush1.bf16.xpose.msra.mxu0 %v1300
        %1304 = vmatprep.subr.bf16.mxu0 0
        %1305 = vmatpush1.bf16.xpose.msra.mxu0 0
        %1306 = vmatprep.subr.bf16.mxu0 0
        %1307 = vmatpush1.bf16.xpose.msra.mxu0 0
        %1308 = vmatprep.subr.bf16.mxu0 0
        %1309 = vmatpush1.bf16.xpose.msra.mxu0 0
        %1310 = vmatprep.subr.bf16.mxu0 0
        %1311 = vmatpush1.bf16.xpose.msra.mxu0 0
        %1312 = vmatprep.subr.bf16.mxu0 0
        %1313 = vmatpush1.bf16.xpose.msra.mxu0 0
        %1314 = vmatprep.subr.bf16.mxu0 0
        %1315 = vmatpush1.bf16.xpose.msra.mxu0 0
        %1316 = vmatprep.subr.bf16.mxu0 0
        %1317 = vmatpush1.bf16.xpose.msra.mxu0 0
        %1318 = vmatprep.subr.bf16.mxu0 0
        %1319 = vmatpush1.bf16.xpose.msra.mxu0 0
        %1320 = vmatprep.subr.bf16.mxu0 0
        %1321 = vmatpush1.bf16.xpose.msra.mxu0 0
        %1322 = vmatprep.subr.bf16.mxu0 0
        %1323 = vmatpush1.bf16.xpose.msra.mxu0 0
        %1324 = vmatprep.subr.bf16.mxu0 0
        %1325 = vmatpush1.bf16.xpose.msra.mxu0 0
        %1326 = vmatprep.subr.bf16.mxu0 0
        %1327 = vmatpush1.bf16.xpose.msra.mxu0 0
        %1328 = vmatprep.subr.bf16.mxu0 0
        %1329 = vmatpush1.bf16.xpose.msra.mxu0 0
        %1330 = vmatprep.subr.bf16.mxu0 0
        %1331 = vmatpush1.bf16.xpose.msra.mxu0 0
        %1332 = vmatprep.subr.bf16.mxu0 0
        %1333 = vmatpush1.bf16.xpose.msra.mxu0 0
        %1334 = vmatprep.mubr.bf16.mxu0 0
        %1335 = vmatmul.mubr.bf16.gmra.mrb[0].mxu0 %v1297
        %v1336 = vpop.f32.mrb[0].mxu0
        %v1337 = vadd.f32 0.0, %v1336
        %v1338 = vpop.f32.mrb[0].mxu0
        %v1339 = vpop.f32.mrb[0].mxu0
        %v1340 = vpop.f32.mrb[0].mxu0
        %1341 = vdwg.mxu0
        %1342 = vrot.lane.b32.xlu0 %v388, 112
        %v1343 = vpop.permute.xlu0 %1342
        %1344 = vrot.lane.b32.xlu0 %v388, 80
        %v1345 = vpop.permute.xlu0 %1344
        %v1347 = vsel %vm393, %v1343, 0
        %v1350 = vsel %vm393, %v1345, 0
        %1352 = vmatprep.subr.bf16.mxu0 0
        %1353 = vmatpush1.bf16.xpose.msra.mxu0 %v1350
        %1354 = vmatprep.subr.bf16.mxu0 0
        %1355 = vmatpush1.bf16.xpose.msra.mxu0 0
        %1356 = vmatprep.subr.bf16.mxu0 0
        %1357 = vmatpush1.bf16.xpose.msra.mxu0 0
        %1358 = vmatprep.subr.bf16.mxu0 0
        %1359 = vmatpush1.bf16.xpose.msra.mxu0 0
        %1360 = vmatprep.subr.bf16.mxu0 0
        %1361 = vmatpush1.bf16.xpose.msra.mxu0 0
        %1362 = vmatprep.subr.bf16.mxu0 0
        %1363 = vmatpush1.bf16.xpose.msra.mxu0 0
        %1364 = vmatprep.subr.bf16.mxu0 0
        %1365 = vmatpush1.bf16.xpose.msra.mxu0 0
        %1366 = vmatprep.subr.bf16.mxu0 0
        %1367 = vmatpush1.bf16.xpose.msra.mxu0 0
        %1368 = vmatprep.subr.bf16.mxu0 0
        %1369 = vmatpush1.bf16.xpose.msra.mxu0 0
        %1370 = vmatprep.subr.bf16.mxu0 0
        %1371 = vmatpush1.bf16.xpose.msra.mxu0 0
        %1372 = vmatprep.subr.bf16.mxu0 0
        %1373 = vmatpush1.bf16.xpose.msra.mxu0 0
        %1374 = vmatprep.subr.bf16.mxu0 0
        %1375 = vmatpush1.bf16.xpose.msra.mxu0 0
        %1376 = vmatprep.subr.bf16.mxu0 0
        %1377 = vmatpush1.bf16.xpose.msra.mxu0 0
        %1378 = vmatprep.subr.bf16.mxu0 0
        %1379 = vmatpush1.bf16.xpose.msra.mxu0 0
        %1380 = vmatprep.subr.bf16.mxu0 0
        %1381 = vmatpush1.bf16.xpose.msra.mxu0 0
        %1382 = vmatprep.subr.bf16.mxu0 0
        %1383 = vmatpush1.bf16.xpose.msra.mxu0 0
        %1384 = vmatprep.mubr.bf16.mxu0 0
        %1385 = vmatmul.mubr.bf16.gmra.mrb[0].mxu0 %v1347
        %v1386 = vpop.f32.mrb[0].mxu0
        %v1387 = vadd.f32 0.0, %v1386
        %v1388 = vpop.f32.mrb[0].mxu0
        %v1389 = vpop.f32.mrb[0].mxu0
        %v1390 = vpop.f32.mrb[0].mxu0
        %1391 = vdwg.mxu0
        %1392 = vrot.lane.b32.xlu0 %v389, 112
        %v1393 = vpop.permute.xlu0 %1392
        %1394 = vrot.lane.b32.xlu0 %v389, 80
        %v1395 = vpop.permute.xlu0 %1394
        %v1397 = vsel %vm393, %v1393, 0
        %v1400 = vsel %vm393, %v1395, 0
        %1402 = vmatprep.subr.bf16.mxu0 0
        %1403 = vmatpush1.bf16.xpose.msra.mxu0 %v1400
        %1404 = vmatprep.subr.bf16.mxu0 0
        %1405 = vmatpush1.bf16.xpose.msra.mxu0 0
        %1406 = vmatprep.subr.bf16.mxu0 0
        %1407 = vmatpush1.bf16.xpose.msra.mxu0 0
        %1408 = vmatprep.subr.bf16.mxu0 0
        %1409 = vmatpush1.bf16.xpose.msra.mxu0 0
        %1410 = vmatprep.subr.bf16.mxu0 0
        %1411 = vmatpush1.bf16.xpose.msra.mxu0 0
        %1412 = vmatprep.subr.bf16.mxu0 0
        %1413 = vmatpush1.bf16.xpose.msra.mxu0 0
        %1414 = vmatprep.subr.bf16.mxu0 0
        %1415 = vmatpush1.bf16.xpose.msra.mxu0 0
        %1416 = vmatprep.subr.bf16.mxu0 0
        %1417 = vmatpush1.bf16.xpose.msra.mxu0 0
        %1418 = vmatprep.subr.bf16.mxu0 0
        %1419 = vmatpush1.bf16.xpose.msra.mxu0 0
        %1420 = vmatprep.subr.bf16.mxu0 0
        %1421 = vmatpush1.bf16.xpose.msra.mxu0 0
        %1422 = vmatprep.subr.bf16.mxu0 0
        %1423 = vmatpush1.bf16.xpose.msra.mxu0 0
        %1424 = vmatprep.subr.bf16.mxu0 0
        %1425 = vmatpush1.bf16.xpose.msra.mxu0 0
        %1426 = vmatprep.subr.bf16.mxu0 0
        %1427 = vmatpush1.bf16.xpose.msra.mxu0 0
        %1428 = vmatprep.subr.bf16.mxu0 0
        %1429 = vmatpush1.bf16.xpose.msra.mxu0 0
        %1430 = vmatprep.subr.bf16.mxu0 0
        %1431 = vmatpush1.bf16.xpose.msra.mxu0 0
        %1432 = vmatprep.subr.bf16.mxu0 0
        %1433 = vmatpush1.bf16.xpose.msra.mxu0 0
        %1434 = vmatprep.mubr.bf16.mxu0 0
        %1435 = vmatmul.mubr.bf16.gmra.mrb[0].mxu0 %v1397
        %v1436 = vpop.f32.mrb[0].mxu0
        %v1437 = vadd.f32 0.0, %v1436
        %v1438 = vpop.f32.mrb[0].mxu0
        %v1439 = vpop.f32.mrb[0].mxu0
        %v1440 = vpop.f32.mrb[0].mxu0
        %1441 = vdwg.mxu0
        %1442 = vrot.lane.b32.xlu0 %v390, 112
        %v1443 = vpop.permute.xlu0 %1442
        %1444 = vrot.lane.b32.xlu0 %v390, 80
        %v1445 = vpop.permute.xlu0 %1444
        %v1447 = vsel %vm393, %v1443, 0
        %v1450 = vsel %vm393, %v1445, 0
        %1452 = vmatprep.subr.bf16.mxu0 0
        %1453 = vmatpush1.bf16.xpose.msra.mxu0 %v1450
        %1454 = vmatprep.subr.bf16.mxu0 0
        %1455 = vmatpush1.bf16.xpose.msra.mxu0 0
        %1456 = vmatprep.subr.bf16.mxu0 0
        %1457 = vmatpush1.bf16.xpose.msra.mxu0 0
        %1458 = vmatprep.subr.bf16.mxu0 0
        %1459 = vmatpush1.bf16.xpose.msra.mxu0 0
        %1460 = vmatprep.subr.bf16.mxu0 0
        %1461 = vmatpush1.bf16.xpose.msra.mxu0 0
        %1462 = vmatprep.subr.bf16.mxu0 0
        %1463 = vmatpush1.bf16.xpose.msra.mxu0 0
        %1464 = vmatprep.subr.bf16.mxu0 0
        %1465 = vmatpush1.bf16.xpose.msra.mxu0 0
        %1466 = vmatprep.subr.bf16.mxu0 0
        %1467 = vmatpush1.bf16.xpose.msra.mxu0 0
        %1468 = vmatprep.subr.bf16.mxu0 0
        %1469 = vmatpush1.bf16.xpose.msra.mxu0 0
        %1470 = vmatprep.subr.bf16.mxu0 0
        %1471 = vmatpush1.bf16.xpose.msra.mxu0 0
        %1472 = vmatprep.subr.bf16.mxu0 0
        %1473 = vmatpush1.bf16.xpose.msra.mxu0 0
        %1474 = vmatprep.subr.bf16.mxu0 0
        %1475 = vmatpush1.bf16.xpose.msra.mxu0 0
        %1476 = vmatprep.subr.bf16.mxu0 0
        %1477 = vmatpush1.bf16.xpose.msra.mxu0 0
        %1478 = vmatprep.subr.bf16.mxu0 0
        %1479 = vmatpush1.bf16.xpose.msra.mxu0 0
        %1480 = vmatprep.subr.bf16.mxu0 0
        %1481 = vmatpush1.bf16.xpose.msra.mxu0 0
        %1482 = vmatprep.subr.bf16.mxu0 0
        %1483 = vmatpush1.bf16.xpose.msra.mxu0 0
        %1484 = vmatprep.mubr.bf16.mxu0 0
        %1485 = vmatmul.mubr.bf16.gmra.mrb[0].mxu0 %v1447
        %v1486 = vpop.f32.mrb[0].mxu0
        %v1487 = vadd.f32 0.0, %v1486
        %v1488 = vpop.f32.mrb[0].mxu0
        %v1489 = vpop.f32.mrb[0].mxu0
        %v1490 = vpop.f32.mrb[0].mxu0
        %1491 = vdwg.mxu0
        %v1492 = vsel %vm585, %v1337, -1e+30
        %v1493 = vsel %vm585, %v1387, -1e+30
        %v1494 = vsel %vm585, %v1437, -1e+30
        %v1495 = vsel %vm585, %v1487, -1e+30
        %v1496 = vsel %vm393, %v1492, -inf
        %1497 = vmax.xlane.f32.xlu0 %v1496
        %v1498 = vpop.xlane.xlu0 %1497
        %v1499 = vsel %vm393, %v1493, -inf
        %1500 = vmax.xlane.f32.xlu0 %v1499
        %v1501 = vpop.xlane.xlu0 %1500
        %v1502 = vsel %vm393, %v1494, -inf
        %1503 = vmax.xlane.f32.xlu0 %v1502
        %v1504 = vpop.xlane.xlu0 %1503
        %v1505 = vsel %vm393, %v1495, -inf
        %1506 = vmax.xlane.f32.xlu0 %v1505
        %v1507 = vpop.xlane.xlu0 %1506
        %v1508 = vsub.f32 %v1492, %v1498
        %v1509 = vsub.f32 %v1493, %v1501
        %v1510 = vsub.f32 %v1494, %v1504
        %v1511 = vsub.f32 %v1495, %v1507
        %v1512 = vmul.f32 %v1508, 1.442695
        %v1513 = vpow.pop %v1512
        %v1514 = vmul.f32 %v1509, 1.442695
        %v1515 = vpow.pop %v1514
        %v1516 = vmul.f32 %v1510, 1.442695
        %v1517 = vpow.pop %v1516
        %v1518 = vmul.f32 %v1511, 1.442695
        %v1519 = vpow.pop %v1518
        %v1520 = vsel %vm393, %v1513, 0.0
        %1521 = vadd.xlane.f32.xlu0 %v1520
        %v1522 = vpop.xlane.xlu0 %1521
        %v1523 = vsel %vm393, %v1515, 0.0
        %1524 = vadd.xlane.f32.xlu0 %v1523
        %v1525 = vpop.xlane.xlu0 %1524
        %v1526 = vsel %vm393, %v1517, 0.0
        %1527 = vadd.xlane.f32.xlu0 %v1526
        %v1528 = vpop.xlane.xlu0 %1527
        %v1529 = vsel %vm393, %v1519, 0.0
        %1530 = vadd.xlane.f32.xlu0 %v1529
        %v1531 = vpop.xlane.xlu0 %1530
        %v1532 = vrcp.pop %v1522
        %v1533 = vrcp.pop %v1525
        %v1534 = vrcp.pop %v1528
        %v1535 = vrcp.pop %v1531
        %v1536 = vmul.f32 %v1513, %v1532
        %v1537 = vmul.f32 %v1515, %v1533
        %v1538 = vmul.f32 %v1517, %v1534
        %v1539 = vmul.f32 %v1519, %v1535
        %v1540 = vpack.c.bf16 %v1536, %v1536
        %v1541 = vpack.c.bf16 %v1537, %v1537
        %v1542 = vpack.c.bf16 %v1538, %v1538
        %v1543 = vpack.c.bf16 %v1539, %v1539
        %1544 = vrot.lane.b32.xlu0 %v387, 48
        %v1545 = vpop.permute.xlu0 %1544
        %v1547 = vsel %vm393, %v1540, 0
        %v1550 = vsel %vm643, %v1545, 0
        %1552 = vmatprep.subr.bf16.mxu0 0
        %1553 = vmatpush1.bf16.msra.mxu0 %v1550
        %1554 = vmatprep.subr.bf16.mxu0 0
        %1555 = vmatpush1.bf16.msra.mxu0 0
        %1556 = vmatprep.subr.bf16.mxu0 0
        %1557 = vmatpush1.bf16.msra.mxu0 0
        %1558 = vmatprep.subr.bf16.mxu0 0
        %1559 = vmatpush1.bf16.msra.mxu0 0
        %1560 = vmatprep.subr.bf16.mxu0 0
        %1561 = vmatpush1.bf16.msra.mxu0 0
        %1562 = vmatprep.subr.bf16.mxu0 0
        %1563 = vmatpush1.bf16.msra.mxu0 0
        %1564 = vmatprep.subr.bf16.mxu0 0
        %1565 = vmatpush1.bf16.msra.mxu0 0
        %1566 = vmatprep.subr.bf16.mxu0 0
        %1567 = vmatpush1.bf16.msra.mxu0 0
        %1568 = vmatprep.subr.bf16.mxu0 0
        %1569 = vmatpush1.bf16.msra.mxu0 0
        %1570 = vmatprep.subr.bf16.mxu0 0
        %1571 = vmatpush1.bf16.msra.mxu0 0
        %1572 = vmatprep.subr.bf16.mxu0 0
        %1573 = vmatpush1.bf16.msra.mxu0 0
        %1574 = vmatprep.subr.bf16.mxu0 0
        %1575 = vmatpush1.bf16.msra.mxu0 0
        %1576 = vmatprep.subr.bf16.mxu0 0
        %1577 = vmatpush1.bf16.msra.mxu0 0
        %1578 = vmatprep.subr.bf16.mxu0 0
        %1579 = vmatpush1.bf16.msra.mxu0 0
        %1580 = vmatprep.subr.bf16.mxu0 0
        %1581 = vmatpush1.bf16.msra.mxu0 0
        %1582 = vmatprep.subr.bf16.mxu0 0
        %1583 = vmatpush1.bf16.msra.mxu0 0
        %1584 = vmatprep.mubr.bf16.mxu0 0
        %1585 = vmatmul.mubr.bf16.gmra.mrb[0].mxu0 %v1547
        %v1586 = vpop.f32.mrb[0].mxu0
        %v1587 = vadd.f32 0.0, %v1586
        %v1588 = vpop.f32.mrb[0].mxu0
        %v1589 = vpop.f32.mrb[0].mxu0
        %v1590 = vpop.f32.mrb[0].mxu0
        %1591 = vdwg.mxu0
        %1592 = vrot.lane.b32.xlu0 %v388, 48
        %v1593 = vpop.permute.xlu0 %1592
        %v1595 = vsel %vm393, %v1541, 0
        %v1598 = vsel %vm643, %v1593, 0
        %1600 = vmatprep.subr.bf16.mxu0 0
        %1601 = vmatpush1.bf16.msra.mxu0 %v1598
        %1602 = vmatprep.subr.bf16.mxu0 0
        %1603 = vmatpush1.bf16.msra.mxu0 0
        %1604 = vmatprep.subr.bf16.mxu0 0
        %1605 = vmatpush1.bf16.msra.mxu0 0
        %1606 = vmatprep.subr.bf16.mxu0 0
        %1607 = vmatpush1.bf16.msra.mxu0 0
        %1608 = vmatprep.subr.bf16.mxu0 0
        %1609 = vmatpush1.bf16.msra.mxu0 0
        %1610 = vmatprep.subr.bf16.mxu0 0
        %1611 = vmatpush1.bf16.msra.mxu0 0
        %1612 = vmatprep.subr.bf16.mxu0 0
        %1613 = vmatpush1.bf16.msra.mxu0 0
        %1614 = vmatprep.subr.bf16.mxu0 0
        %1615 = vmatpush1.bf16.msra.mxu0 0
        %1616 = vmatprep.subr.bf16.mxu0 0
        %1617 = vmatpush1.bf16.msra.mxu0 0
        %1618 = vmatprep.subr.bf16.mxu0 0
        %1619 = vmatpush1.bf16.msra.mxu0 0
        %1620 = vmatprep.subr.bf16.mxu0 0
        %1621 = vmatpush1.bf16.msra.mxu0 0
        %1622 = vmatprep.subr.bf16.mxu0 0
        %1623 = vmatpush1.bf16.msra.mxu0 0
        %1624 = vmatprep.subr.bf16.mxu0 0
        %1625 = vmatpush1.bf16.msra.mxu0 0
        %1626 = vmatprep.subr.bf16.mxu0 0
        %1627 = vmatpush1.bf16.msra.mxu0 0
        %1628 = vmatprep.subr.bf16.mxu0 0
        %1629 = vmatpush1.bf16.msra.mxu0 0
        %1630 = vmatprep.subr.bf16.mxu0 0
        %1631 = vmatpush1.bf16.msra.mxu0 0
        %1632 = vmatprep.mubr.bf16.mxu0 0
        %1633 = vmatmul.mubr.bf16.gmra.mrb[0].mxu0 %v1595
        %v1634 = vpop.f32.mrb[0].mxu0
        %v1635 = vadd.f32 0.0, %v1634
        %v1636 = vpop.f32.mrb[0].mxu0
        %v1637 = vpop.f32.mrb[0].mxu0
        %v1638 = vpop.f32.mrb[0].mxu0
        %1639 = vdwg.mxu0
        %1640 = vrot.lane.b32.xlu0 %v389, 48
        %v1641 = vpop.permute.xlu0 %1640
        %v1643 = vsel %vm393, %v1542, 0
        %v1646 = vsel %vm643, %v1641, 0
        %1648 = vmatprep.subr.bf16.mxu0 0
        %1649 = vmatpush1.bf16.msra.mxu0 %v1646
        %1650 = vmatprep.subr.bf16.mxu0 0
        %1651 = vmatpush1.bf16.msra.mxu0 0
        %1652 = vmatprep.subr.bf16.mxu0 0
        %1653 = vmatpush1.bf16.msra.mxu0 0
        %1654 = vmatprep.subr.bf16.mxu0 0
        %1655 = vmatpush1.bf16.msra.mxu0 0
        %1656 = vmatprep.subr.bf16.mxu0 0
        %1657 = vmatpush1.bf16.msra.mxu0 0
        %1658 = vmatprep.subr.bf16.mxu0 0
        %1659 = vmatpush1.bf16.msra.mxu0 0
        %1660 = vmatprep.subr.bf16.mxu0 0
        %1661 = vmatpush1.bf16.msra.mxu0 0
        %1662 = vmatprep.subr.bf16.mxu0 0
        %1663 = vmatpush1.bf16.msra.mxu0 0
        %1664 = vmatprep.subr.bf16.mxu0 0
        %1665 = vmatpush1.bf16.msra.mxu0 0
        %1666 = vmatprep.subr.bf16.mxu0 0
        %1667 = vmatpush1.bf16.msra.mxu0 0
        %1668 = vmatprep.subr.bf16.mxu0 0
        %1669 = vmatpush1.bf16.msra.mxu0 0
        %1670 = vmatprep.subr.bf16.mxu0 0
        %1671 = vmatpush1.bf16.msra.mxu0 0
        %1672 = vmatprep.subr.bf16.mxu0 0
        %1673 = vmatpush1.bf16.msra.mxu0 0
        %1674 = vmatprep.subr.bf16.mxu0 0
        %1675 = vmatpush1.bf16.msra.mxu0 0
        %1676 = vmatprep.subr.bf16.mxu0 0
        %1677 = vmatpush1.bf16.msra.mxu0 0
        %1678 = vmatprep.subr.bf16.mxu0 0
        %1679 = vmatpush1.bf16.msra.mxu0 0
        %1680 = vmatprep.mubr.bf16.mxu0 0
        %1681 = vmatmul.mubr.bf16.gmra.mrb[0].mxu0 %v1643
        %v1682 = vpop.f32.mrb[0].mxu0
        %v1683 = vadd.f32 0.0, %v1682
        %v1684 = vpop.f32.mrb[0].mxu0
        %v1685 = vpop.f32.mrb[0].mxu0
        %v1686 = vpop.f32.mrb[0].mxu0
        %1687 = vdwg.mxu0
        %1688 = vrot.lane.b32.xlu0 %v390, 48
        %v1689 = vpop.permute.xlu0 %1688
        %v1691 = vsel %vm393, %v1543, 0
        %v1694 = vsel %vm643, %v1689, 0
        %1696 = vmatprep.subr.bf16.mxu0 0
        %1697 = vmatpush1.bf16.msra.mxu0 %v1694
        %1698 = vmatprep.subr.bf16.mxu0 0
        %1699 = vmatpush1.bf16.msra.mxu0 0
        %1700 = vmatprep.subr.bf16.mxu0 0
        %1701 = vmatpush1.bf16.msra.mxu0 0
        %1702 = vmatprep.subr.bf16.mxu0 0
        %1703 = vmatpush1.bf16.msra.mxu0 0
        %1704 = vmatprep.subr.bf16.mxu0 0
        %1705 = vmatpush1.bf16.msra.mxu0 0
        %1706 = vmatprep.subr.bf16.mxu0 0
        %1707 = vmatpush1.bf16.msra.mxu0 0
        %1708 = vmatprep.subr.bf16.mxu0 0
        %1709 = vmatpush1.bf16.msra.mxu0 0
        %1710 = vmatprep.subr.bf16.mxu0 0
        %1711 = vmatpush1.bf16.msra.mxu0 0
        %1712 = vmatprep.subr.bf16.mxu0 0
        %1713 = vmatpush1.bf16.msra.mxu0 0
        %1714 = vmatprep.subr.bf16.mxu0 0
        %1715 = vmatpush1.bf16.msra.mxu0 0
        %1716 = vmatprep.subr.bf16.mxu0 0
        %1717 = vmatpush1.bf16.msra.mxu0 0
        %1718 = vmatprep.subr.bf16.mxu0 0
        %1719 = vmatpush1.bf16.msra.mxu0 0
        %1720 = vmatprep.subr.bf16.mxu0 0
        %1721 = vmatpush1.bf16.msra.mxu0 0
        %1722 = vmatprep.subr.bf16.mxu0 0
        %1723 = vmatpush1.bf16.msra.mxu0 0
        %1724 = vmatprep.subr.bf16.mxu0 0
        %1725 = vmatpush1.bf16.msra.mxu0 0
        %1726 = vmatprep.subr.bf16.mxu0 0
        %1727 = vmatpush1.bf16.msra.mxu0 0
        %1728 = vmatprep.mubr.bf16.mxu0 0
        %1729 = vmatmul.mubr.bf16.gmra.mrb[0].mxu0 %v1691
        %v1730 = vpop.f32.mrb[0].mxu0
        %v1731 = vadd.f32 0.0, %v1730
        %v1732 = vpop.f32.mrb[0].mxu0
        %v1733 = vpop.f32.mrb[0].mxu0
        %v1734 = vpop.f32.mrb[0].mxu0
        %1735 = vdwg.mxu0
        %v1736 = vpack.c.bf16 %v1635, %v1587
        %v1737 = vpack.c.bf16 %v1731, %v1683
        %1740 = vrot.lane.b32.xlu0 %v1736, 16
        %v1741 = vpop.permute.xlu0 %1740
        %1742 = vrot.lane.b32.xlu0 %v1737, 16
        %v1743 = vpop.permute.xlu0 %1742
        %vm1746 = vcmask 195712
        %1747 = vst.msk [vmem:[#allocation2] sm:$0xff] %vm1746, %v1741
        %1748 = vst.msk [vmem:[#allocation2 + $0x8] sm:$0xff] %vm1746, %v1743
        %1749 = vrot.lane.b32.xlu0 %v387, 104
        %v1750 = vpop.permute.xlu0 %1749
        %1751 = vrot.lane.b32.xlu0 %v387, 72
        %v1752 = vpop.permute.xlu0 %1751
        %v1754 = vsel %vm393, %v1750, 0
        %v1757 = vsel %vm393, %v1752, 0
        %1759 = vmatprep.subr.bf16.mxu0 0
        %1760 = vmatpush1.bf16.xpose.msra.mxu0 %v1757
        %1761 = vmatprep.subr.bf16.mxu0 0
        %1762 = vmatpush1.bf16.xpose.msra.mxu0 0
        %1763 = vmatprep.subr.bf16.mxu0 0
        %1764 = vmatpush1.bf16.xpose.msra.mxu0 0
        %1765 = vmatprep.subr.bf16.mxu0 0
        %1766 = vmatpush1.bf16.xpose.msra.mxu0 0
        %1767 = vmatprep.subr.bf16.mxu0 0
        %1768 = vmatpush1.bf16.xpose.msra.mxu0 0
        %1769 = vmatprep.subr.bf16.mxu0 0
        %1770 = vmatpush1.bf16.xpose.msra.mxu0 0
        %1771 = vmatprep.subr.bf16.mxu0 0
        %1772 = vmatpush1.bf16.xpose.msra.mxu0 0
        %1773 = vmatprep.subr.bf16.mxu0 0
        %1774 = vmatpush1.bf16.xpose.msra.mxu0 0
        %1775 = vmatprep.subr.bf16.mxu0 0
        %1776 = vmatpush1.bf16.xpose.msra.mxu0 0
        %1777 = vmatprep.subr.bf16.mxu0 0
        %1778 = vmatpush1.bf16.xpose.msra.mxu0 0
        %1779 = vmatprep.subr.bf16.mxu0 0
        %1780 = vmatpush1.bf16.xpose.msra.mxu0 0
        %1781 = vmatprep.subr.bf16.mxu0 0
        %1782 = vmatpush1.bf16.xpose.msra.mxu0 0
        %1783 = vmatprep.subr.bf16.mxu0 0
        %1784 = vmatpush1.bf16.xpose.msra.mxu0 0
        %1785 = vmatprep.subr.bf16.mxu0 0
        %1786 = vmatpush1.bf16.xpose.msra.mxu0 0
        %1787 = vmatprep.subr.bf16.mxu0 0
        %1788 = vmatpush1.bf16.xpose.msra.mxu0 0
        %1789 = vmatprep.subr.bf16.mxu0 0
        %1790 = vmatpush1.bf16.xpose.msra.mxu0 0
        %1791 = vmatprep.mubr.bf16.mxu0 0
        %1792 = vmatmul.mubr.bf16.gmra.mrb[0].mxu0 %v1754
        %v1793 = vpop.f32.mrb[0].mxu0
        %v1794 = vadd.f32 0.0, %v1793
        %v1795 = vpop.f32.mrb[0].mxu0
        %v1796 = vpop.f32.mrb[0].mxu0
        %v1797 = vpop.f32.mrb[0].mxu0
        %1798 = vdwg.mxu0
        %1799 = vrot.lane.b32.xlu0 %v388, 104
        %v1800 = vpop.permute.xlu0 %1799
        %1801 = vrot.lane.b32.xlu0 %v388, 72
        %v1802 = vpop.permute.xlu0 %1801
        %v1804 = vsel %vm393, %v1800, 0
        %v1807 = vsel %vm393, %v1802, 0
        %1809 = vmatprep.subr.bf16.mxu0 0
        %1810 = vmatpush1.bf16.xpose.msra.mxu0 %v1807
        %1811 = vmatprep.subr.bf16.mxu0 0
        %1812 = vmatpush1.bf16.xpose.msra.mxu0 0
        %1813 = vmatprep.subr.bf16.mxu0 0
        %1814 = vmatpush1.bf16.xpose.msra.mxu0 0
        %1815 = vmatprep.subr.bf16.mxu0 0
        %1816 = vmatpush1.bf16.xpose.msra.mxu0 0
        %1817 = vmatprep.subr.bf16.mxu0 0
        %1818 = vmatpush1.bf16.xpose.msra.mxu0 0
        %1819 = vmatprep.subr.bf16.mxu0 0
        %1820 = vmatpush1.bf16.xpose.msra.mxu0 0
        %1821 = vmatprep.subr.bf16.mxu0 0
        %1822 = vmatpush1.bf16.xpose.msra.mxu0 0
        %1823 = vmatprep.subr.bf16.mxu0 0
        %1824 = vmatpush1.bf16.xpose.msra.mxu0 0
        %1825 = vmatprep.subr.bf16.mxu0 0
        %1826 = vmatpush1.bf16.xpose.msra.mxu0 0
        %1827 = vmatprep.subr.bf16.mxu0 0
        %1828 = vmatpush1.bf16.xpose.msra.mxu0 0
        %1829 = vmatprep.subr.bf16.mxu0 0
        %1830 = vmatpush1.bf16.xpose.msra.mxu0 0
        %1831 = vmatprep.subr.bf16.mxu0 0
        %1832 = vmatpush1.bf16.xpose.msra.mxu0 0
        %1833 = vmatprep.subr.bf16.mxu0 0
        %1834 = vmatpush1.bf16.xpose.msra.mxu0 0
        %1835 = vmatprep.subr.bf16.mxu0 0
        %1836 = vmatpush1.bf16.xpose.msra.mxu0 0
        %1837 = vmatprep.subr.bf16.mxu0 0
        %1838 = vmatpush1.bf16.xpose.msra.mxu0 0
        %1839 = vmatprep.subr.bf16.mxu0 0
        %1840 = vmatpush1.bf16.xpose.msra.mxu0 0
        %1841 = vmatprep.mubr.bf16.mxu0 0
        %1842 = vmatmul.mubr.bf16.gmra.mrb[0].mxu0 %v1804
        %v1843 = vpop.f32.mrb[0].mxu0
        %v1844 = vadd.f32 0.0, %v1843
        %v1845 = vpop.f32.mrb[0].mxu0
        %v1846 = vpop.f32.mrb[0].mxu0
        %v1847 = vpop.f32.mrb[0].mxu0
        %1848 = vdwg.mxu0
        %1849 = vrot.lane.b32.xlu0 %v389, 104
        %v1850 = vpop.permute.xlu0 %1849
        %1851 = vrot.lane.b32.xlu0 %v389, 72
        %v1852 = vpop.permute.xlu0 %1851
        %v1854 = vsel %vm393, %v1850, 0
        %v1857 = vsel %vm393, %v1852, 0
        %1859 = vmatprep.subr.bf16.mxu0 0
        %1860 = vmatpush1.bf16.xpose.msra.mxu0 %v1857
        %1861 = vmatprep.subr.bf16.mxu0 0
        %1862 = vmatpush1.bf16.xpose.msra.mxu0 0
        %1863 = vmatprep.subr.bf16.mxu0 0
        %1864 = vmatpush1.bf16.xpose.msra.mxu0 0
        %1865 = vmatprep.subr.bf16.mxu0 0
        %1866 = vmatpush1.bf16.xpose.msra.mxu0 0
        %1867 = vmatprep.subr.bf16.mxu0 0
        %1868 = vmatpush1.bf16.xpose.msra.mxu0 0
        %1869 = vmatprep.subr.bf16.mxu0 0
        %1870 = vmatpush1.bf16.xpose.msra.mxu0 0
        %1871 = vmatprep.subr.bf16.mxu0 0
        %1872 = vmatpush1.bf16.xpose.msra.mxu0 0
        %1873 = vmatprep.subr.bf16.mxu0 0
        %1874 = vmatpush1.bf16.xpose.msra.mxu0 0
        %1875 = vmatprep.subr.bf16.mxu0 0
        %1876 = vmatpush1.bf16.xpose.msra.mxu0 0
        %1877 = vmatprep.subr.bf16.mxu0 0
        %1878 = vmatpush1.bf16.xpose.msra.mxu0 0
        %1879 = vmatprep.subr.bf16.mxu0 0
        %1880 = vmatpush1.bf16.xpose.msra.mxu0 0
        %1881 = vmatprep.subr.bf16.mxu0 0
        %1882 = vmatpush1.bf16.xpose.msra.mxu0 0
        %1883 = vmatprep.subr.bf16.mxu0 0
        %1884 = vmatpush1.bf16.xpose.msra.mxu0 0
        %1885 = vmatprep.subr.bf16.mxu0 0
        %1886 = vmatpush1.bf16.xpose.msra.mxu0 0
        %1887 = vmatprep.subr.bf16.mxu0 0
        %1888 = vmatpush1.bf16.xpose.msra.mxu0 0
        %1889 = vmatprep.subr.bf16.mxu0 0
        %1890 = vmatpush1.bf16.xpose.msra.mxu0 0
        %1891 = vmatprep.mubr.bf16.mxu0 0
        %1892 = vmatmul.mubr.bf16.gmra.mrb[0].mxu0 %v1854
        %v1893 = vpop.f32.mrb[0].mxu0
        %v1894 = vadd.f32 0.0, %v1893
        %v1895 = vpop.f32.mrb[0].mxu0
        %v1896 = vpop.f32.mrb[0].mxu0
        %v1897 = vpop.f32.mrb[0].mxu0
        %1898 = vdwg.mxu0
        %1899 = vrot.lane.b32.xlu0 %v390, 104
        %v1900 = vpop.permute.xlu0 %1899
        %1901 = vrot.lane.b32.xlu0 %v390, 72
        %v1902 = vpop.permute.xlu0 %1901
        %v1904 = vsel %vm393, %v1900, 0
        %v1907 = vsel %vm393, %v1902, 0
        %1909 = vmatprep.subr.bf16.mxu0 0
        %1910 = vmatpush1.bf16.xpose.msra.mxu0 %v1907
        %1911 = vmatprep.subr.bf16.mxu0 0
        %1912 = vmatpush1.bf16.xpose.msra.mxu0 0
        %1913 = vmatprep.subr.bf16.mxu0 0
        %1914 = vmatpush1.bf16.xpose.msra.mxu0 0
        %1915 = vmatprep.subr.bf16.mxu0 0
        %1916 = vmatpush1.bf16.xpose.msra.mxu0 0
        %1917 = vmatprep.subr.bf16.mxu0 0
        %1918 = vmatpush1.bf16.xpose.msra.mxu0 0
        %1919 = vmatprep.subr.bf16.mxu0 0
        %1920 = vmatpush1.bf16.xpose.msra.mxu0 0
        %1921 = vmatprep.subr.bf16.mxu0 0
        %1922 = vmatpush1.bf16.xpose.msra.mxu0 0
        %1923 = vmatprep.subr.bf16.mxu0 0
        %1924 = vmatpush1.bf16.xpose.msra.mxu0 0
        %1925 = vmatprep.subr.bf16.mxu0 0
        %1926 = vmatpush1.bf16.xpose.msra.mxu0 0
        %1927 = vmatprep.subr.bf16.mxu0 0
        %1928 = vmatpush1.bf16.xpose.msra.mxu0 0
        %1929 = vmatprep.subr.bf16.mxu0 0
        %1930 = vmatpush1.bf16.xpose.msra.mxu0 0
        %1931 = vmatprep.subr.bf16.mxu0 0
        %1932 = vmatpush1.bf16.xpose.msra.mxu0 0
        %1933 = vmatprep.subr.bf16.mxu0 0
        %1934 = vmatpush1.bf16.xpose.msra.mxu0 0
        %1935 = vmatprep.subr.bf16.mxu0 0
        %1936 = vmatpush1.bf16.xpose.msra.mxu0 0
        %1937 = vmatprep.subr.bf16.mxu0 0
        %1938 = vmatpush1.bf16.xpose.msra.mxu0 0
        %1939 = vmatprep.subr.bf16.mxu0 0
        %1940 = vmatpush1.bf16.xpose.msra.mxu0 0
        %1941 = vmatprep.mubr.bf16.mxu0 0
        %1942 = vmatmul.mubr.bf16.gmra.mrb[0].mxu0 %v1904
        %v1943 = vpop.f32.mrb[0].mxu0
        %v1944 = vadd.f32 0.0, %v1943
        %v1945 = vpop.f32.mrb[0].mxu0
        %v1946 = vpop.f32.mrb[0].mxu0
        %v1947 = vpop.f32.mrb[0].mxu0
        %1948 = vdwg.mxu0
        %v1949 = vsel %vm585, %v1794, -1e+30
        %v1950 = vsel %vm585, %v1844, -1e+30
        %v1951 = vsel %vm585, %v1894, -1e+30
        %v1952 = vsel %vm585, %v1944, -1e+30
        %v1953 = vsel %vm393, %v1949, -inf
        %1954 = vmax.xlane.f32.xlu0 %v1953
        %v1955 = vpop.xlane.xlu0 %1954
        %v1956 = vsel %vm393, %v1950, -inf
        %1957 = vmax.xlane.f32.xlu0 %v1956
        %v1958 = vpop.xlane.xlu0 %1957
        %v1959 = vsel %vm393, %v1951, -inf
        %1960 = vmax.xlane.f32.xlu0 %v1959
        %v1961 = vpop.xlane.xlu0 %1960
        %v1962 = vsel %vm393, %v1952, -inf
        %1963 = vmax.xlane.f32.xlu0 %v1962
        %v1964 = vpop.xlane.xlu0 %1963
        %v1965 = vsub.f32 %v1949, %v1955
        %v1966 = vsub.f32 %v1950, %v1958
        %v1967 = vsub.f32 %v1951, %v1961
        %v1968 = vsub.f32 %v1952, %v1964
        %v1969 = vmul.f32 %v1965, 1.442695
        %v1970 = vpow.pop %v1969
        %v1971 = vmul.f32 %v1966, 1.442695
        %v1972 = vpow.pop %v1971
        %v1973 = vmul.f32 %v1967, 1.442695
        %v1974 = vpow.pop %v1973
        %v1975 = vmul.f32 %v1968, 1.442695
        %v1976 = vpow.pop %v1975
        %v1977 = vsel %vm393, %v1970, 0.0
        %1978 = vadd.xlane.f32.xlu0 %v1977
        %v1979 = vpop.xlane.xlu0 %1978
        %v1980 = vsel %vm393, %v1972, 0.0
        %1981 = vadd.xlane.f32.xlu0 %v1980
        %v1982 = vpop.xlane.xlu0 %1981
        %v1983 = vsel %vm393, %v1974, 0.0
        %1984 = vadd.xlane.f32.xlu0 %v1983
        %v1985 = vpop.xlane.xlu0 %1984
        %v1986 = vsel %vm393, %v1976, 0.0
        %1987 = vadd.xlane.f32.xlu0 %v1986
        %v1988 = vpop.xlane.xlu0 %1987
        %v1989 = vrcp.pop %v1979
        %v1990 = vrcp.pop %v1982
        %v1991 = vrcp.pop %v1985
        %v1992 = vrcp.pop %v1988
        %v1993 = vmul.f32 %v1970, %v1989
        %v1994 = vmul.f32 %v1972, %v1990
        %v1995 = vmul.f32 %v1974, %v1991
        %v1996 = vmul.f32 %v1976, %v1992
        %v1997 = vpack.c.bf16 %v1993, %v1993
        %v1998 = vpack.c.bf16 %v1994, %v1994
        %v1999 = vpack.c.bf16 %v1995, %v1995
        %v2000 = vpack.c.bf16 %v1996, %v1996
        %2001 = vrot.lane.b32.xlu0 %v387, 40
        %v2002 = vpop.permute.xlu0 %2001
        %v2004 = vsel %vm393, %v1997, 0
        %v2007 = vsel %vm643, %v2002, 0
        %2009 = vmatprep.subr.bf16.mxu0 0
        %2010 = vmatpush1.bf16.msra.mxu0 %v2007
        %2011 = vmatprep.subr.bf16.mxu0 0
        %2012 = vmatpush1.bf16.msra.mxu0 0
        %2013 = vmatprep.subr.bf16.mxu0 0
        %2014 = vmatpush1.bf16.msra.mxu0 0
        %2015 = vmatprep.subr.bf16.mxu0 0
        %2016 = vmatpush1.bf16.msra.mxu0 0
        %2017 = vmatprep.subr.bf16.mxu0 0
        %2018 = vmatpush1.bf16.msra.mxu0 0
        %2019 = vmatprep.subr.bf16.mxu0 0
        %2020 = vmatpush1.bf16.msra.mxu0 0
        %2021 = vmatprep.subr.bf16.mxu0 0
        %2022 = vmatpush1.bf16.msra.mxu0 0
        %2023 = vmatprep.subr.bf16.mxu0 0
        %2024 = vmatpush1.bf16.msra.mxu0 0
        %2025 = vmatprep.subr.bf16.mxu0 0
        %2026 = vmatpush1.bf16.msra.mxu0 0
        %2027 = vmatprep.subr.bf16.mxu0 0
        %2028 = vmatpush1.bf16.msra.mxu0 0
        %2029 = vmatprep.subr.bf16.mxu0 0
        %2030 = vmatpush1.bf16.msra.mxu0 0
        %2031 = vmatprep.subr.bf16.mxu0 0
        %2032 = vmatpush1.bf16.msra.mxu0 0
        %2033 = vmatprep.subr.bf16.mxu0 0
        %2034 = vmatpush1.bf16.msra.mxu0 0
        %2035 = vmatprep.subr.bf16.mxu0 0
        %2036 = vmatpush1.bf16.msra.mxu0 0
        %2037 = vmatprep.subr.bf16.mxu0 0
        %2038 = vmatpush1.bf16.msra.mxu0 0
        %2039 = vmatprep.subr.bf16.mxu0 0
        %2040 = vmatpush1.bf16.msra.mxu0 0
        %2041 = vmatprep.mubr.bf16.mxu0 0
        %2042 = vmatmul.mubr.bf16.gmra.mrb[0].mxu0 %v2004
        %v2043 = vpop.f32.mrb[0].mxu0
        %v2044 = vadd.f32 0.0, %v2043
        %v2045 = vpop.f32.mrb[0].mxu0
        %v2046 = vpop.f32.mrb[0].mxu0
        %v2047 = vpop.f32.mrb[0].mxu0
        %2048 = vdwg.mxu0
        %2049 = vrot.lane.b32.xlu0 %v388, 40
        %v2050 = vpop.permute.xlu0 %2049
        %v2052 = vsel %vm393, %v1998, 0
        %v2055 = vsel %vm643, %v2050, 0
        %2057 = vmatprep.subr.bf16.mxu0 0
        %2058 = vmatpush1.bf16.msra.mxu0 %v2055
        %2059 = vmatprep.subr.bf16.mxu0 0
        %2060 = vmatpush1.bf16.msra.mxu0 0
        %2061 = vmatprep.subr.bf16.mxu0 0
        %2062 = vmatpush1.bf16.msra.mxu0 0
        %2063 = vmatprep.subr.bf16.mxu0 0
        %2064 = vmatpush1.bf16.msra.mxu0 0
        %2065 = vmatprep.subr.bf16.mxu0 0
        %2066 = vmatpush1.bf16.msra.mxu0 0
        %2067 = vmatprep.subr.bf16.mxu0 0
        %2068 = vmatpush1.bf16.msra.mxu0 0
        %2069 = vmatprep.subr.bf16.mxu0 0
        %2070 = vmatpush1.bf16.msra.mxu0 0
        %2071 = vmatprep.subr.bf16.mxu0 0
        %2072 = vmatpush1.bf16.msra.mxu0 0
        %2073 = vmatprep.subr.bf16.mxu0 0
        %2074 = vmatpush1.bf16.msra.mxu0 0
        %2075 = vmatprep.subr.bf16.mxu0 0
        %2076 = vmatpush1.bf16.msra.mxu0 0
        %2077 = vmatprep.subr.bf16.mxu0 0
        %2078 = vmatpush1.bf16.msra.mxu0 0
        %2079 = vmatprep.subr.bf16.mxu0 0
        %2080 = vmatpush1.bf16.msra.mxu0 0
        %2081 = vmatprep.subr.bf16.mxu0 0
        %2082 = vmatpush1.bf16.msra.mxu0 0
        %2083 = vmatprep.subr.bf16.mxu0 0
        %2084 = vmatpush1.bf16.msra.mxu0 0
        %2085 = vmatprep.subr.bf16.mxu0 0
        %2086 = vmatpush1.bf16.msra.mxu0 0
        %2087 = vmatprep.subr.bf16.mxu0 0
        %2088 = vmatpush1.bf16.msra.mxu0 0
        %2089 = vmatprep.mubr.bf16.mxu0 0
        %2090 = vmatmul.mubr.bf16.gmra.mrb[0].mxu0 %v2052
        %v2091 = vpop.f32.mrb[0].mxu0
        %v2092 = vadd.f32 0.0, %v2091
        %v2093 = vpop.f32.mrb[0].mxu0
        %v2094 = vpop.f32.mrb[0].mxu0
        %v2095 = vpop.f32.mrb[0].mxu0
        %2096 = vdwg.mxu0
        %2097 = vrot.lane.b32.xlu0 %v389, 40
        %v2098 = vpop.permute.xlu0 %2097
        %v2100 = vsel %vm393, %v1999, 0
        %v2103 = vsel %vm643, %v2098, 0
        %2105 = vmatprep.subr.bf16.mxu0 0
        %2106 = vmatpush1.bf16.msra.mxu0 %v2103
        %2107 = vmatprep.subr.bf16.mxu0 0
        %2108 = vmatpush1.bf16.msra.mxu0 0
        %2109 = vmatprep.subr.bf16.mxu0 0
        %2110 = vmatpush1.bf16.msra.mxu0 0
        %2111 = vmatprep.subr.bf16.mxu0 0
        %2112 = vmatpush1.bf16.msra.mxu0 0
        %2113 = vmatprep.subr.bf16.mxu0 0
        %2114 = vmatpush1.bf16.msra.mxu0 0
        %2115 = vmatprep.subr.bf16.mxu0 0
        %2116 = vmatpush1.bf16.msra.mxu0 0
        %2117 = vmatprep.subr.bf16.mxu0 0
        %2118 = vmatpush1.bf16.msra.mxu0 0
        %2119 = vmatprep.subr.bf16.mxu0 0
        %2120 = vmatpush1.bf16.msra.mxu0 0
        %2121 = vmatprep.subr.bf16.mxu0 0
        %2122 = vmatpush1.bf16.msra.mxu0 0
        %2123 = vmatprep.subr.bf16.mxu0 0
        %2124 = vmatpush1.bf16.msra.mxu0 0
        %2125 = vmatprep.subr.bf16.mxu0 0
        %2126 = vmatpush1.bf16.msra.mxu0 0
        %2127 = vmatprep.subr.bf16.mxu0 0
        %2128 = vmatpush1.bf16.msra.mxu0 0
        %2129 = vmatprep.subr.bf16.mxu0 0
        %2130 = vmatpush1.bf16.msra.mxu0 0
        %2131 = vmatprep.subr.bf16.mxu0 0
        %2132 = vmatpush1.bf16.msra.mxu0 0
        %2133 = vmatprep.subr.bf16.mxu0 0
        %2134 = vmatpush1.bf16.msra.mxu0 0
        %2135 = vmatprep.subr.bf16.mxu0 0
        %2136 = vmatpush1.bf16.msra.mxu0 0
        %2137 = vmatprep.mubr.bf16.mxu0 0
        %2138 = vmatmul.mubr.bf16.gmra.mrb[0].mxu0 %v2100
        %v2139 = vpop.f32.mrb[0].mxu0
        %v2140 = vadd.f32 0.0, %v2139
        %v2141 = vpop.f32.mrb[0].mxu0
        %v2142 = vpop.f32.mrb[0].mxu0
        %v2143 = vpop.f32.mrb[0].mxu0
        %2144 = vdwg.mxu0
        %2145 = vrot.lane.b32.xlu0 %v390, 40
        %v2146 = vpop.permute.xlu0 %2145
        %v2148 = vsel %vm393, %v2000, 0
        %v2151 = vsel %vm643, %v2146, 0
        %2153 = vmatprep.subr.bf16.mxu0 0
        %2154 = vmatpush1.bf16.msra.mxu0 %v2151
        %2155 = vmatprep.subr.bf16.mxu0 0
        %2156 = vmatpush1.bf16.msra.mxu0 0
        %2157 = vmatprep.subr.bf16.mxu0 0
        %2158 = vmatpush1.bf16.msra.mxu0 0
        %2159 = vmatprep.subr.bf16.mxu0 0
        %2160 = vmatpush1.bf16.msra.mxu0 0
        %2161 = vmatprep.subr.bf16.mxu0 0
        %2162 = vmatpush1.bf16.msra.mxu0 0
        %2163 = vmatprep.subr.bf16.mxu0 0
        %2164 = vmatpush1.bf16.msra.mxu0 0
        %2165 = vmatprep.subr.bf16.mxu0 0
        %2166 = vmatpush1.bf16.msra.mxu0 0
        %2167 = vmatprep.subr.bf16.mxu0 0
        %2168 = vmatpush1.bf16.msra.mxu0 0
        %2169 = vmatprep.subr.bf16.mxu0 0
        %2170 = vmatpush1.bf16.msra.mxu0 0
        %2171 = vmatprep.subr.bf16.mxu0 0
        %2172 = vmatpush1.bf16.msra.mxu0 0
        %2173 = vmatprep.subr.bf16.mxu0 0
        %2174 = vmatpush1.bf16.msra.mxu0 0
        %2175 = vmatprep.subr.bf16.mxu0 0
        %2176 = vmatpush1.bf16.msra.mxu0 0
        %2177 = vmatprep.subr.bf16.mxu0 0
        %2178 = vmatpush1.bf16.msra.mxu0 0
        %2179 = vmatprep.subr.bf16.mxu0 0
        %2180 = vmatpush1.bf16.msra.mxu0 0
        %2181 = vmatprep.subr.bf16.mxu0 0
        %2182 = vmatpush1.bf16.msra.mxu0 0
        %2183 = vmatprep.subr.bf16.mxu0 0
        %2184 = vmatpush1.bf16.msra.mxu0 0
        %2185 = vmatprep.mubr.bf16.mxu0 0
        %2186 = vmatmul.mubr.bf16.gmra.mrb[0].mxu0 %v2148
        %v2187 = vpop.f32.mrb[0].mxu0
        %v2188 = vadd.f32 0.0, %v2187
        %v2189 = vpop.f32.mrb[0].mxu0
        %v2190 = vpop.f32.mrb[0].mxu0
        %v2191 = vpop.f32.mrb[0].mxu0
        %2192 = vdwg.mxu0
        %v2193 = vpack.c.bf16 %v2092, %v2044
        %v2194 = vpack.c.bf16 %v2188, %v2140
        %2197 = vrot.lane.b32.xlu0 %v2193, 24
        %v2198 = vpop.permute.xlu0 %2197
        %2199 = vrot.lane.b32.xlu0 %v2194, 24
        %v2200 = vpop.permute.xlu0 %2199
        %vm2203 = vcmask 261312
        %2204 = vst.msk [vmem:[#allocation2] sm:$0xff] %vm2203, %v2198
        %2205 = vst.msk [vmem:[#allocation2 + $0x8] sm:$0xff] %vm2203, %v2200
        %v2206 = vld [vmem:[#allocation2] sm:$0xff]
        %v2207 = vld [vmem:[#allocation2 + $0x8] sm:$0xff]
        %v2208 = vld [vmem:[#allocation8] sm:$0xf]
        %v2209 = vld [vmem:[#allocation8 + $0x4] sm:$0xf]
        %v2210 = vld [vmem:[#allocation8 + $0x8] sm:$0xf]
        %v2211 = vld [vmem:[#allocation8 + $0xc] sm:$0xf]
        %v2212 = vld [vmem:[%s4] sm:$0x1]
        %v2214 = vlaneseq
        %v2215 = vshrl.u32 %v2214, 7
        %v2216 = vsub.s32 0, %v2215
        %v2217 = vrot.slane %v2212, %v2216
        %v2223 = vunpack.c.l.b16 %v2208
        %v2224 = vunpack.c.l.b16 %v2209
        %v2225 = vunpack.c.l.b16 %v2210
        %v2226 = vunpack.c.l.b16 %v2211
        %v2227 = vpack.c.b16 %v2224, %v2223
        %v2228 = vpack.c.b16 %v2226, %v2225
        %v2232 = vsel %vm318, %v2206, 0
        %v2235 = vsel %vm318, %v2207, 0
        %2237 = vmatprep.subr.bf16.mxu0 0
        %2238 = vmatpush1.bf16.msra.mxu0 %v2227
        %2239 = vmatprep.subr.bf16.mxu0 0
        %2240 = vmatpush1.bf16.msra.mxu0 %v2228
        %2241 = vmatprep.subr.bf16.mxu0 0
        %2242 = vmatpush1.bf16.msra.mxu0 0
        %2243 = vmatprep.subr.bf16.mxu0 0
        %2244 = vmatpush1.bf16.msra.mxu0 0
        %2245 = vmatprep.subr.bf16.mxu0 0
        %2246 = vmatpush1.bf16.msra.mxu0 0
        %2247 = vmatprep.subr.bf16.mxu0 0
        %2248 = vmatpush1.bf16.msra.mxu0 0
        %2249 = vmatprep.subr.bf16.mxu0 0
        %2250 = vmatpush1.bf16.msra.mxu0 0
        %2251 = vmatprep.subr.bf16.mxu0 0
        %2252 = vmatpush1.bf16.msra.mxu0 0
        %2253 = vmatprep.subr.bf16.mxu0 0
        %2254 = vmatpush1.bf16.msra.mxu0 0
        %2255 = vmatprep.subr.bf16.mxu0 0
        %2256 = vmatpush1.bf16.msra.mxu0 0
        %2257 = vmatprep.subr.bf16.mxu0 0
        %2258 = vmatpush1.bf16.msra.mxu0 0
        %2259 = vmatprep.subr.bf16.mxu0 0
        %2260 = vmatpush1.bf16.msra.mxu0 0
        %2261 = vmatprep.subr.bf16.mxu0 0
        %2262 = vmatpush1.bf16.msra.mxu0 0
        %2263 = vmatprep.subr.bf16.mxu0 0
        %2264 = vmatpush1.bf16.msra.mxu0 0
        %2265 = vmatprep.subr.bf16.mxu0 0
        %2266 = vmatpush1.bf16.msra.mxu0 0
        %2267 = vmatprep.subr.bf16.mxu0 0
        %2268 = vmatpush1.bf16.msra.mxu0 0
        %2269 = vmatprep.mubr.bf16.mxu0 0
        %2270 = vmatmul.mubr.bf16.gmra.mrb[0].mxu0 %v2232
        %v2271 = vpop.f32.mrb[0].mxu0
        %v2272 = vadd.f32 %v2217, %v2271
        %v2273 = vpop.f32.mrb[0].mxu0
        %v2274 = vpop.f32.mrb[0].mxu0
        %v2275 = vadd.f32 %v2217, %v2274
        %v2276 = vpop.f32.mrb[0].mxu0
        %2277 = vmatprep.mubr.bf16.mxu0 0
        %2278 = vmatmul.mubr.bf16.gmra.mrb[0].mxu0 %v2235
        %v2279 = vpop.f32.mrb[0].mxu0
        %v2280 = vadd.f32 %v2217, %v2279
        %v2281 = vpop.f32.mrb[0].mxu0
        %v2282 = vpop.f32.mrb[0].mxu0
        %v2283 = vadd.f32 %v2217, %v2282
        %v2284 = vpop.f32.mrb[0].mxu0
        %2285 = vdwg.mxu0
        %2286 = vst.msk [vmem:[%s277] sm:$0xff] %vm318, %v2272
        %2287 = vst.msk [vmem:[%s277 + $0x8] sm:$0xff] %vm318, %v2275
        %2288 = vst.msk [vmem:[%s277 + $0x10] sm:$0xff] %vm318, %v2280
        %2289 = vst.msk [vmem:[%s277 + $0x18] sm:$0xff] %vm318, %v2283
        %s2290 = sand.u32 %s141, 1
        %s2291 = scalar_lea.sflag [#allocation5], %s2290
        %s2292 = sand.u32 %s141, 1
        %s2293 = smul.addr %s2292, 32
        %s2294 = scalar_lea.vmem [#allocation9], %s2293
        // Predicated region
        $region53: #{tpu_custom_call.1} parent=39 // pred_check
          %p2295 = pneg %p151
        $region54: #{tpu_custom_call.1} parent=39 // pred_check_branch
          %2297 = sbr.rel (%p2295) target = $region56
        $region55: #{tpu_custom_call.1} parent=39 // pred_region
          %s2298 = smul.u32 4, %s23
          %s2299 = ssub.s32 6, %s2298
          %p2300 = scmp.lt.s32.totalorder %s2299, 4
          %s2301 = scalar_select %p2300, %s2299, 4
          %s2302 = smul.u32 128, %s2301
          %s2304 = ssub.s32 512, %s2302
          %2305 = vsyncadd %s2291, %s2304
          %p2306 = scmp.ne.s32.totalorder 0, %s2302
          %s2307 = smul.addr %s2298, 128
          %s2308 = scalar_lea.hbm %s5, %s2307
          %s2309 = smul.u32 8, %s2301
          %s2310 = sshll.u32 %s2294, 4
          %s2311 = int_to_ptr.vmem [resolvable:$true] %s2310
          %s2312 = sshll.u32 %s2309, 4
          %2316 = dma.vmem_to_hbm [thread:$0]  (%p2306), %s2311, %s2312, %s2308, %s2291, 128, 128, 8
        $region56: #{tpu_custom_call.1} parent=39 // pred_fallthru
          _
      $region40: #{tpu_custom_call.1} parent=5 // pred_fallthru
        _
      %p2317 = scmp.le.s32.totalorder 2, %s18
      // Predicated region
      $region57: #{tpu_custom_call.1} parent=5 // pred_check
        %p2318 = pneg %p2317
      $region58: #{tpu_custom_call.1} parent=5 // pred_check_branch
        %2320 = sbr.rel (%p2318) target = $region60
      $region59: #{tpu_custom_call.1} parent=5 // pred_region
        %s2321 = ssub.s32 %s18, 2
        // Predicated region
        $region61: #{tpu_custom_call.1} parent=59 // pred_check
          %p2322 = pneg %p157
        $region62: #{tpu_custom_call.1} parent=59 // pred_check_branch
          %2324 = sbr.rel (%p2322) target = $region64
        $region63: #{tpu_custom_call.1} parent=59 // pred_region
          %s2325 = sand.u32 %s142, 1
          %s2326 = scalar_lea.sflag [#allocation5], %s2325
          %s2327 = sand.u32 %s142, 1
          %s2328 = smul.addr %s2327, 32
          %s2329 = scalar_lea.vmem [#allocation9], %s2328
          %2330 = dma.done %s2326, 512
        $region64: #{tpu_custom_call.1} parent=59 // pred_fallthru
          _
      $region60: #{tpu_custom_call.1} parent=5 // pred_fallthru
        _
    $region6: #{tpu_custom_call.1} parent=1 // loop_footer
      %s22 = sadd.s32 1, %s18
    $region7: #{tpu_custom_call.1} parent=1 // loop_footer_branch
      %17 = sbr.rel target = $region3
    $region8: #{tpu_custom_call.1} parent=1 // loop_exit
      _
    %2331 = vsyncpa [#allocation4], 1
    %s2332 = scalar_lea.sflag [#allocation4], 1
    %2333 = vsyncpa %s2332, 1
    %2334 = vsyncpa [#allocation7], 1
    %2335 = vsyncpa [#allocation5], 1
    %s2336 = scalar_lea.sflag [#allocation5], 1
    %2337 = vsyncpa %s2336, 1

</llo_original>
